<compile_context>
chip_gen: v7x
topology: tpu7x:2x2x1
jax: 0.10.0
libtpu: 0.0.40
codegen_flags: <defaults>
</compile_context>

<pallas_src>
import functools

import jax
import jax.numpy as jnp
from jax import lax
from jax.experimental import pallas as pl
from jax.experimental.pallas import tpu as pltpu


LANES = 128        # channel (lane) width; all layers padded to this
TILE_N_MAX = 32    # batch tile cap (4 f32 vregs per LIF vector op)
MAX_DELAY = 3      # static upper bound on the axonal delay (example uses 0..3)
CHUNK_MAX = 256    # max time-chunk length (bounds VMEM, keeps MXU M large)

# Loihi-style neuron constants (vThMant=80, vDecay=128, iDecay=1024).
NEURON = dict(
    alpha_u=1.0 - 1024.0 / 4096.0,   # synaptic current decay
    alpha_v=1.0 - 128.0 / 4096.0,    # membrane voltage decay
    theta=80.0 * 64.0,               # firing threshold
)
IN_GAIN = 64.0                       # weight-exponent gain, folded into weights


# ----------------------------- Pallas kernel -------------------------------
def _fused_snn_kernel(x_ref, w1_ref, w2_ref, w3_ref, d1_ref, d2_ref,
                      out_ref, cnt_ref,
                      z_scr, s1_hist, s2_hist, state_scr,
                      *, alpha_u, alpha_v, theta, max_delay):
    """One (batch_tile, time_chunk) grid step of the fused 3-layer SNN.

    x_ref:     (CH, tile_n, 128) bf16 input spikes for this chunk (zero-padded chans)
    w*_ref:    (128, 128)        bf16 weights, (C_in, C_out), in_gain folded
    d*_ref:    (1, 128)          int32 per-channel axonal delays (0..max_delay)
    out_ref:   (CH, tile_n, 128) bf16 layer-3 spikes (already delayShift(1)-ed)
    cnt_ref:   (1, 3, tile_n, 128) f32 per-element spike totals (resident accumulator)
    z_scr:     (CH, tile_n, 128) f32 synaptic-drive buffer (reused per layer)
    s1_hist,s2_hist: (CH+max_delay, tile_n, 128) bf16 spike history (head = prev chunk tail)
    state_scr: (3, 3, tile_n, 128) f32 carried LIF state [layer, {u, v, s_prev}]
    """
    CH, Np, C = out_ref.shape
    tc = pl.program_id(1)
    n_tc = pl.num_programs(1)
    unroll = next(u for u in (8, 4, 2, 1) if CH % u == 0)

    # ----- per-batch-tile init (time chunk 0) -------------------------------
    @pl.when(tc == 0)
    def _init():
        cnt_ref[...] = jnp.zeros_like(cnt_ref)
        state_scr[...] = jnp.zeros_like(state_scr)
        zeros_head = jnp.zeros((max_delay, Np, C), s1_hist.dtype)
        s1_hist[pl.ds(0, max_delay)] = zeros_head
        s2_hist[pl.ds(0, max_delay)] = zeros_head

    # ----- helpers -----------------------------------------------------------
    def matmul_into_z(x2d_bf16, w_ref):
        # (CH*tile_n, 128) @ (128, 128) on the MXU, f32 accumulation.
        z = lax.dot_general(
            x2d_bf16, w_ref[...],
            dimension_numbers=(((1,), (0,)), ((), ())),
            preferred_element_type=jnp.float32)
        z_scr[...] = z.reshape(CH, Np, C)

    def delayed(hist, d_ref):
        # slayer.delay: out[t, :, c] = shifted_spike[t - d_c, :, c]; realised as
        # max_delay+1 static shifted slices of the history buffer + masked select.
        sdel = hist[pl.ds(max_delay, CH)]                      # delay == 0
        for dd in range(1, max_delay + 1):
            shifted = hist[pl.ds(max_delay - dd, CH)]
            mask = (d_ref[...] == dd)[:, None, :]              # (1, 1, 128)
            sdel = jnp.where(mask, shifted, sdel)
        return sdel                                            # bf16

    def lif_pass(layer, store_fn):
        """CUBA-LIF recurrence over z_scr for this chunk.  store_fn(t, s_prev)
        receives the delayShift(1)-ed spike for chunk-local timestep t.  LIF
        state is carried across chunks via state_scr; counts go to cnt_ref."""
        u = state_scr[layer, 0]
        v = state_scr[layer, 1]
        s_prev = state_scr[layer, 2]
        tot = jnp.zeros((Np, C), jnp.float32)

        def step(t, carry):
            u, v, s_prev, tot = carry
            store_fn(t, s_prev)                       # slayer.delayShift(spike, 1)
            tot = tot + s_prev                        # vector count accumulation
            zt = z_scr[t]
            u = alpha_u * u + zt                      # synaptic current (CUBA)
            v = alpha_v * v + u                       # membrane voltage
            spk = v >= theta                          # Loihi spike (compare reused)
            s = spk.astype(jnp.float32)
            v = jnp.where(spk, 0.0, v)                # reset on spike
            return (u, v, s, tot)

        def body(i, carry):
            t0 = pl.multiple_of(i * unroll, unroll)   # aligned dynamic index
            for j in range(unroll):                   # manual unroll (LLO visibility)
                carry = step(t0 + j, carry)
            return carry

        u, v, s_prev, tot = lax.fori_loop(0, CH // unroll, body,
                                          (u, v, s_prev, tot))
        state_scr[layer, 0] = u
        state_scr[layer, 1] = v
        state_scr[layer, 2] = s_prev
        cnt_ref[0, layer] += tot

    # --------------------- layer 1: fc1 -> LIF -> shift ---------------------
    matmul_into_z(x_ref[...].reshape(CH * Np, C), w1_ref)

    def store1(t, s):
        s1_hist[max_delay + t] = s.astype(s1_hist.dtype)
    lif_pass(0, store1)

    # ----------------- layer 2: delay1 -> fc2 -> LIF -> shift ---------------
    sdel1 = delayed(s1_hist, d1_ref)
    matmul_into_z(sdel1.reshape(CH * Np, C), w2_ref)

    def store2(t, s):
        s2_hist[max_delay + t] = s.astype(s2_hist.dtype)
    lif_pass(1, store2)

    # ----------------- layer 3: delay2 -> fc3 -> LIF -> shift ---------------
    sdel2 = delayed(s2_hist, d2_ref)
    matmul_into_z(sdel2.reshape(CH * Np, C), w3_ref)

    def store3(t, s):
        out_ref[t] = s.astype(out_ref.dtype)
    lif_pass(2, store3)

    # ----- roll spike history so the next chunk sees the last max_delay steps
    @pl.when(tc + 1 < n_tc)
    def _roll():
        s1_hist[pl.ds(0, max_delay)] = s1_hist[pl.ds(CH, max_delay)]
        s2_hist[pl.ds(0, max_delay)] = s2_hist[pl.ds(CH, max_delay)]


# ------------------------------- JAX glue -----------------------------------
def weight_norm(v, g):
    """torch.nn.utils.weight_norm: w = g * v / ||v|| (norm over input dims per row)."""
    norm = jnp.sqrt(jnp.sum(v * v, axis=1, keepdims=True))
    return g[:, None] * v / norm


def _prep_weight(v, g, gain):
    """weight_norm, fold the Loihi input gain, zero-pad to (128,128), transpose to
    (C_in_pad, C_out_pad), cast to bf16 for the MXU."""
    w = weight_norm(v, g) * gain                     # (c_out, c_in)
    c_out, c_in = w.shape
    wp = jnp.zeros((LANES, LANES), jnp.float32).at[:c_out, :c_in].set(w)
    return jnp.transpose(wp).astype(jnp.bfloat16)    # (c_in_pad, c_out_pad)


def _round_up(a, b):
    return ((a + b - 1) // b) * b


def _choose_batch_tile(n):
    """Batch tile up to TILE_N_MAX rows (multiple of 8) so each LIF op spans
    several vregs; keep >1 tiles when N allows for megacore sharding."""
    n8 = _round_up(max(n, 1), 8)
    tile = min(TILE_N_MAX, n8)
    n_pad = _round_up(n8, tile)
    return tile, n_pad, n_pad // tile


def _choose_time_chunk(t):
    """Largest divisor of T not exceeding CHUNK_MAX (bounds VMEM; exact divisor
    avoids padded timesteps corrupting spike counts)."""
    if t <= CHUNK_MAX:
        return t
    for c in range(CHUNK_MAX, 0, -1):
        if t % c == 0:
            return c
    return 1


def _vmem_limit_bytes(chunk, tile_n):
    f32, bf16 = 4, 2
    blk = tile_n * LANES
    io = 2 * (2 * chunk * blk * bf16)                          # x + out, double-buffered
    cnt = 2 * (3 * blk * f32)
    wts = 2 * (3 * LANES * LANES * bf16 + 2 * LANES * f32)
    scr = (chunk * blk * f32                                   # z
           + 2 * (chunk + MAX_DELAY) * blk * bf16              # spike histories
           + 9 * blk * f32)                                    # LIF state
    total = int((io + cnt + wts + scr) * 1.5) + (8 << 20)      # temporaries headroom
    return int(min(max(total, 16 << 20), 64 << 20))


def network_forward(x, params):
    """x: (N, 16, 1, 1, T) spike tensor (PyTorch NCHW+T layout)."""
    N = x.shape[0]
    T = x.shape[-1]
    c_in = x.shape[1] * x.shape[2] * x.shape[3]              # 16
    spike = jnp.transpose(x.reshape(N, c_in, T), (2, 0, 1))  # (T, N, 16)

    tile_n, n_pad, num_tiles = _choose_batch_tile(N)
    chunk = _choose_time_chunk(T)
    num_chunks = T // chunk

    # Pad batch to the tile and channels to a full lane tile.
    xp = jnp.zeros((T, n_pad, LANES), jnp.bfloat16)
    xp = xp.at[:, :N, :c_in].set(spike.astype(jnp.bfloat16))

    w1 = _prep_weight(params["fc1_v"], params["fc1_g"], IN_GAIN)
    w2 = _prep_weight(params["fc2_v"], params["fc2_g"], IN_GAIN)
    w3 = _prep_weight(params["fc3_v"], params["fc3_g"], IN_GAIN)

    d1 = jnp.clip(params["delay1"].astype(jnp.int32), 0, MAX_DELAY).reshape(1, LANES)
    d2 = jnp.clip(params["delay2"].astype(jnp.int32), 0, MAX_DELAY).reshape(1, LANES)

    kern = functools.partial(_fused_snn_kernel, max_delay=MAX_DELAY, **NEURON)

    out, cnt = pl.pallas_call(
        kern,
        grid=(num_tiles, num_chunks),
        in_specs=[
            pl.BlockSpec((chunk, tile_n, LANES), lambda b, c: (c, b, 0)),   # x chunk
            pl.BlockSpec((LANES, LANES), lambda b, c: (0, 0)),              # w1^T
            pl.BlockSpec((LANES, LANES), lambda b, c: (0, 0)),              # w2^T
            pl.BlockSpec((LANES, LANES), lambda b, c: (0, 0)),              # w3^T
            pl.BlockSpec((1, LANES), lambda b, c: (0, 0)),                  # delay1
            pl.BlockSpec((1, LANES), lambda b, c: (0, 0)),                  # delay2
        ],
        out_specs=(
            pl.BlockSpec((chunk, tile_n, LANES), lambda b, c: (c, b, 0)),        # spikes
            pl.BlockSpec((1, 3, tile_n, LANES), lambda b, c: (b, 0, 0, 0)),      # counts
        ),
        out_shape=(
            jax.ShapeDtypeStruct((T, n_pad, LANES), jnp.bfloat16),
            jax.ShapeDtypeStruct((num_tiles, 3, tile_n, LANES), jnp.float32),
        ),
        scratch_shapes=[
            pltpu.VMEM((chunk, tile_n, LANES), jnp.float32),                 # synaptic drive
            pltpu.VMEM((chunk + MAX_DELAY, tile_n, LANES), jnp.bfloat16),    # layer-1 spikes
            pltpu.VMEM((chunk + MAX_DELAY, tile_n, LANES), jnp.bfloat16),    # layer-2 spikes
            pltpu.VMEM((3, 3, tile_n, LANES), jnp.float32),                  # LIF state carry
        ],
        compiler_params=pltpu.CompilerParams(
            dimension_semantics=("parallel", "arbitrary"),
            vmem_limit_bytes=_vmem_limit_bytes(chunk, tile_n)),
    )(xp, w1, w2, w3, d1, d2)

    # Strip the channel/batch padding (padded rows/channels never spike).
    spikes = jnp.transpose(out[:, :N, :5].astype(jnp.float32),
                           (1, 2, 0)).reshape(N, 5, 1, 1, T)
    counts = jnp.sum(cnt, axis=(0, 2, 3)).reshape(1, 3)
    return spikes, counts


# --------------------------------- main --------------------------------------
if __name__ == "__main__":
    key = jax.random.PRNGKey(0)
    k = jax.random.split(key, 8)

    N, C_IN, T = 2, 16, 16
    # Deterministic binary input spike train (N, 16, 1, 1, T).
    x = (jax.random.uniform(k[0], (N, C_IN, 1, 1, T)) < 0.3).astype(jnp.float32)

    def make_fc(kk, cin, cout):
        # weight_norm init: g = ||v|| so that w == v initially (matches torch).
        # scale ~ weightScale=100 / sqrt(fan_in) so the neurons actually spike.
        v = jax.random.normal(kk, (cout, cin), jnp.float32) * (100.0 / float(cin) ** 0.5)
        g = jnp.sqrt(jnp.sum(v * v, axis=1))
        return v, g

    fc1_v, fc1_g = make_fc(k[1], 16, 128)
    fc2_v, fc2_g = make_fc(k[2], 128, 128)
    fc3_v, fc3_g = make_fc(k[3], 128, 5)
    delay1 = jax.random.randint(k[4], (128,), 0, MAX_DELAY + 1)
    delay2 = jax.random.randint(k[5], (128,), 0, MAX_DELAY + 1)

    params = dict(fc1_v=fc1_v, fc1_g=fc1_g,
                  fc2_v=fc2_v, fc2_g=fc2_g,
                  fc3_v=fc3_v, fc3_g=fc3_g,
                  delay1=delay1, delay2=delay2)

    out_spikes, spike_counts = jax.jit(network_forward)(x, params)
    jax.block_until_ready((out_spikes, spike_counts))

    assert out_spikes.shape == (N, 5, 1, 1, T)
    assert spike_counts.shape == (1, 3)
    print("KERNEL_OK")
</pallas_src>

<mosaic_0001>
module attributes {stable_mosaic.version = 11 : i64} {
  func.func @_fused_snn_kernel(%arg0: i32, %arg1: i32, %arg2: memref<16x8x128xbf16, #tpu.memory_space<vmem>>, %arg3: memref<128x128xbf16, #tpu.memory_space<vmem>>, %arg4: memref<128x128xbf16, #tpu.memory_space<vmem>>, %arg5: memref<128x128xbf16, #tpu.memory_space<vmem>>, %arg6: memref<1x128xi32, #tpu.memory_space<vmem>>, %arg7: memref<1x128xi32, #tpu.memory_space<vmem>>, %arg8: memref<16x8x128xbf16, #tpu.memory_space<vmem>>, %arg9: memref<1x3x8x128xf32, #tpu.memory_space<vmem>>, %arg10: memref<16x8x128xf32, #tpu.memory_space<vmem>>, %arg11: memref<19x8x128xbf16, #tpu.memory_space<vmem>>, %arg12: memref<19x8x128xbf16, #tpu.memory_space<vmem>>, %arg13: memref<3x3x8x128xf32, #tpu.memory_space<vmem>>) attributes {dimension_semantics = [#tpu.dimension_semantics<parallel>, #tpu.dimension_semantics<arbitrary>], iteration_bounds = array<i64: 1, 1>, scalar_prefetch = 0 : i64, scratch_operands = 4 : i64, tpu.core_type = #tpu.core_type<tc>, window_params = [{transform_indices = @transform_0, window_bounds = array<i64: 16, 8, 128>}, {pipeline_mode = #tpu.pipeline_mode<synchronous>, transform_indices = @transform_1, window_bounds = array<i64: 128, 128>}, {pipeline_mode = #tpu.pipeline_mode<synchronous>, transform_indices = @transform_2, window_bounds = array<i64: 128, 128>}, {pipeline_mode = #tpu.pipeline_mode<synchronous>, transform_indices = @transform_3, window_bounds = array<i64: 128, 128>}, {pipeline_mode = #tpu.pipeline_mode<synchronous>, transform_indices = @transform_4, window_bounds = array<i64: 1, 128>}, {pipeline_mode = #tpu.pipeline_mode<synchronous>, transform_indices = @transform_5, window_bounds = array<i64: 1, 128>}, {transform_indices = @transform_6, window_bounds = array<i64: 16, 8, 128>}, {transform_indices = @transform_7, window_bounds = array<i64: 1, 3, 8, 128>}]} {
    %c0_i32 = arith.constant 0 : i32
    %0 = arith.cmpi eq, %arg1, %c0_i32 : i32
    %1 = arith.extui %0 : i1 to i32
    %c0_i32_0 = arith.constant 0 : i32
    %2 = arith.cmpi ne, %1, %c0_i32_0 : i32
    scf.if %2 {
      %cst_170 = arith.constant 0.000000e+00 : f32
      %145 = vector.broadcast %cst_170 : f32 to vector<1x3x8x128xf32>
      %c0_171 = arith.constant 0 : index
      %c0_172 = arith.constant 0 : index
      %c0_173 = arith.constant 0 : index
      %c0_174 = arith.constant 0 : index
      %146 = vector.load %arg9[%c0_171, %c0_172, %c0_173, %c0_174] : memref<1x3x8x128xf32, #tpu.memory_space<vmem>>, vector<1x3x8x128xf32>
      tpu.vector_store %arg9[%c0_171, %c0_172, %c0_173, %c0_174], %145 {strides = array<i32>} : memref<1x3x8x128xf32, #tpu.memory_space<vmem>>, vector<1x3x8x128xf32>,
      %cst_175 = arith.constant 0.000000e+00 : f32
      %147 = vector.broadcast %cst_175 : f32 to vector<3x3x8x128xf32>
      %c0_176 = arith.constant 0 : index
      %c0_177 = arith.constant 0 : index
      %c0_178 = arith.constant 0 : index
      %c0_179 = arith.constant 0 : index
      %148 = vector.load %arg13[%c0_176, %c0_177, %c0_178, %c0_179] : memref<3x3x8x128xf32, #tpu.memory_space<vmem>>, vector<3x3x8x128xf32>
      tpu.vector_store %arg13[%c0_176, %c0_177, %c0_178, %c0_179], %147 {strides = array<i32>} : memref<3x3x8x128xf32, #tpu.memory_space<vmem>>, vector<3x3x8x128xf32>,
      %cst_180 = arith.constant 0.000000e+00 : bf16
      %149 = vector.broadcast %cst_180 : bf16 to vector<3x8x128xbf16>
      %c0_181 = arith.constant 0 : index
      %c0_182 = arith.constant 0 : index
      %c0_183 = arith.constant 0 : index
      %150 = vector.load %arg11[%c0_181, %c0_182, %c0_183] : memref<19x8x128xbf16, #tpu.memory_space<vmem>>, vector<3x8x128xbf16>
      tpu.vector_store %arg11[%c0_181, %c0_182, %c0_183], %149 {strides = array<i32>} : memref<19x8x128xbf16, #tpu.memory_space<vmem>>, vector<3x8x128xbf16>,
      %c0_184 = arith.constant 0 : index
      %c0_185 = arith.constant 0 : index
      %c0_186 = arith.constant 0 : index
      %151 = vector.load %arg12[%c0_184, %c0_185, %c0_186] : memref<19x8x128xbf16, #tpu.memory_space<vmem>>, vector<3x8x128xbf16>
      tpu.vector_store %arg12[%c0_184, %c0_185, %c0_186], %149 {strides = array<i32>} : memref<19x8x128xbf16, #tpu.memory_space<vmem>>, vector<3x8x128xbf16>,
    } else {
    }
    %c0 = arith.constant 0 : index
    %c0_1 = arith.constant 0 : index
    %c0_2 = arith.constant 0 : index
    %3 = vector.load %arg2[%c0, %c0_1, %c0_2] : memref<16x8x128xbf16, #tpu.memory_space<vmem>>, vector<16x8x128xbf16>
    %4 = vector.shape_cast %3 : vector<16x8x128xbf16> to vector<128x128xbf16>
    %c0_3 = arith.constant 0 : index
    %c0_4 = arith.constant 0 : index
    %5 = vector.load %arg3[%c0_3, %c0_4] : memref<128x128xbf16, #tpu.memory_space<vmem>>, vector<128x128xbf16>
    %cst = arith.constant dense<0.000000e+00> : vector<128x128xf32>
    %6 = tpu.matmul %4, %5, %cst {dimension_numbers = #tpu.dot_dimension_numbers<[1], [0], [0], [1], [0, 0, 1, 1], [], []>} : vector<128x128xbf16>, vector<128x128xbf16>, vector<128x128xf32> -> vector<128x128xf32>
    %7 = vector.shape_cast %6 : vector<128x128xf32> to vector<16x8x128xf32>
    %c0_5 = arith.constant 0 : index
    %c0_6 = arith.constant 0 : index
    %c0_7 = arith.constant 0 : index
    %8 = vector.load %arg10[%c0_5, %c0_6, %c0_7] : memref<16x8x128xf32, #tpu.memory_space<vmem>>, vector<16x8x128xf32>
    tpu.vector_store %arg10[%c0_5, %c0_6, %c0_7], %7 {strides = array<i32>} : memref<16x8x128xf32, #tpu.memory_space<vmem>>, vector<16x8x128xf32>,
    %c0_8 = arith.constant 0 : index
    %c0_9 = arith.constant 0 : index
    %c0_10 = arith.constant 0 : index
    %c0_11 = arith.constant 0 : index
    %9 = vector.load %arg13[%c0_8, %c0_9, %c0_10, %c0_11] : memref<3x3x8x128xf32, #tpu.memory_space<vmem>>, vector<1x1x8x128xf32>
    %10 = vector.shape_cast %9 : vector<1x1x8x128xf32> to vector<8x128xf32>
    %c0_12 = arith.constant 0 : index
    %c1 = arith.constant 1 : index
    %c0_13 = arith.constant 0 : index
    %c0_14 = arith.constant 0 : index
    %11 = vector.load %arg13[%c0_12, %c1, %c0_13, %c0_14] : memref<3x3x8x128xf32, #tpu.memory_space<vmem>>, vector<1x1x8x128xf32>
    %12 = vector.shape_cast %11 : vector<1x1x8x128xf32> to vector<8x128xf32>
    %c0_15 = arith.constant 0 : index
    %c2 = arith.constant 2 : index
    %c0_16 = arith.constant 0 : index
    %c0_17 = arith.constant 0 : index
    %13 = vector.load %arg13[%c0_15, %c2, %c0_16, %c0_17] : memref<3x3x8x128xf32, #tpu.memory_space<vmem>>, vector<1x1x8x128xf32>
    %14 = vector.shape_cast %13 : vector<1x1x8x128xf32> to vector<8x128xf32>
    %cst_18 = arith.constant 0.000000e+00 : f32
    %15 = vector.broadcast %cst_18 : f32 to vector<8x128xf32>
    %c0_i32_19 = arith.constant 0 : i32
    %c2_i32 = arith.constant 2 : i32
    %16 = arith.addi %c0_i32_19, %c2_i32 : i32
    %c1_i32 = arith.constant 1 : i32
    %17:4 = scf.for %arg14 = %c0_i32_19 to %16 step %c1_i32 iter_args(%arg15 = %10, %arg16 = %12, %arg17 = %14, %arg18 = %15) -> (vector<8x128xf32>, vector<8x128xf32>, vector<8x128xf32>, vector<8x128xf32>)  : i32 {
      %c8_i32 = arith.constant 8 : i32
      %145 = arith.muli %arg14, %c8_i32 : i32
      %146 = tpu.assume_multiple %145, 8 : i32
      %c0_i32_170 = arith.constant 0 : i32
      %147 = arith.addi %146, %c0_i32_170 : i32
      %148 = arith.truncf %arg17 : vector<8x128xf32> to vector<8x128xbf16>
      %c3_i32_171 = arith.constant 3 : i32
      %149 = arith.addi %c3_i32_171, %147 : i32
      %150 = arith.index_cast %149 : i32 to index
      %c0_172 = arith.constant 0 : index
      %c0_173 = arith.constant 0 : index
      %151 = vector.load %arg11[%150, %c0_172, %c0_173] : memref<19x8x128xbf16, #tpu.memory_space<vmem>>, vector<1x8x128xbf16>
      %152 = vector.shape_cast %151 : vector<1x8x128xbf16> to vector<8x128xbf16>
      %153 = vector.shape_cast %148 : vector<8x128xbf16> to vector<1x8x128xbf16>
      tpu.vector_store %arg11[%150, %c0_172, %c0_173], %153 {strides = array<i32>} : memref<19x8x128xbf16, #tpu.memory_space<vmem>>, vector<1x8x128xbf16>,
      %154 = arith.addf %arg18, %arg17 : vector<8x128xf32>
      %155 = arith.index_cast %147 : i32 to index
      %c0_174 = arith.constant 0 : index
      %c0_175 = arith.constant 0 : index
      %156 = vector.load %arg10[%155, %c0_174, %c0_175] : memref<16x8x128xf32, #tpu.memory_space<vmem>>, vector<1x8x128xf32>
      %157 = vector.shape_cast %156 : vector<1x8x128xf32> to vector<8x128xf32>
      %cst_176 = arith.constant 7.500000e-01 : f32
      %158 = vector.broadcast %cst_176 : f32 to vector<8x128xf32>
      %159 = arith.mulf %158, %arg15 : vector<8x128xf32>
      %160 = arith.addf %159, %157 : vector<8x128xf32>
      %cst_177 = arith.constant 9.687500e-01 : f32
      %161 = vector.broadcast %cst_177 : f32 to vector<8x128xf32>
      %162 = arith.mulf %161, %arg16 : vector<8x128xf32>
      %163 = arith.addf %162, %160 : vector<8x128xf32>
      %cst_178 = arith.constant 5.120000e+03 : f32
      %164 = vector.broadcast %cst_178 : f32 to vector<8x128xf32>
      %165 = arith.cmpf oge, %163, %164 : vector<8x128xf32>
      %166 = arith.extui %165 : vector<8x128xi1> to vector<8x128xi32>
      %167 = arith.sitofp %166 : vector<8x128xi32> to vector<8x128xf32>
      %cst_179 = arith.constant 0.000000e+00 : f32
      %168 = vector.broadcast %cst_179 : f32 to vector<8x128xf32>
      %169 = arith.select %165, %168, %163 : vector<8x128xi1>, vector<8x128xf32>
      %c1_i32_180 = arith.constant 1 : i32
      %170 = arith.addi %146, %c1_i32_180 : i32
      %171 = arith.truncf %167 : vector<8x128xf32> to vector<8x128xbf16>
      %c3_i32_181 = arith.constant 3 : i32
      %172 = arith.addi %c3_i32_181, %170 : i32
      %173 = arith.index_cast %172 : i32 to index
      %c0_182 = arith.constant 0 : index
      %c0_183 = arith.constant 0 : index
      %174 = vector.load %arg11[%173, %c0_182, %c0_183] : memref<19x8x128xbf16, #tpu.memory_space<vmem>>, vector<1x8x128xbf16>
      %175 = vector.shape_cast %174 : vector<1x8x128xbf16> to vector<8x128xbf16>
      %176 = vector.shape_cast %171 : vector<8x128xbf16> to vector<1x8x128xbf16>
      tpu.vector_store %arg11[%173, %c0_182, %c0_183], %176 {strides = array<i32>} : memref<19x8x128xbf16, #tpu.memory_space<vmem>>, vector<1x8x128xbf16>,
      %177 = arith.addf %154, %167 : vector<8x128xf32>
      %178 = arith.index_cast %170 : i32 to index
      %c0_184 = arith.constant 0 : index
      %c0_185 = arith.constant 0 : index
      %179 = vector.load %arg10[%178, %c0_184, %c0_185] : memref<16x8x128xf32, #tpu.memory_space<vmem>>, vector<1x8x128xf32>
      %180 = vector.shape_cast %179 : vector<1x8x128xf32> to vector<8x128xf32>
      %cst_186 = arith.constant 7.500000e-01 : f32
      %181 = vector.broadcast %cst_186 : f32 to vector<8x128xf32>
      %182 = arith.mulf %181, %160 : vector<8x128xf32>
      %183 = arith.addf %182, %180 : vector<8x128xf32>
      %cst_187 = arith.constant 9.687500e-01 : f32
      %184 = vector.broadcast %cst_187 : f32 to vector<8x128xf32>
      %185 = arith.mulf %184, %169 : vector<8x128xf32>
      %186 = arith.addf %185, %183 : vector<8x128xf32>
      %cst_188 = arith.constant 5.120000e+03 : f32
      %187 = vector.broadcast %cst_188 : f32 to vector<8x128xf32>
      %188 = arith.cmpf oge, %186, %187 : vector<8x128xf32>
      %189 = arith.extui %188 : vector<8x128xi1> to vector<8x128xi32>
      %190 = arith.sitofp %189 : vector<8x128xi32> to vector<8x128xf32>
      %cst_189 = arith.constant 0.000000e+00 : f32
      %191 = vector.broadcast %cst_189 : f32 to vector<8x128xf32>
      %192 = arith.select %188, %191, %186 : vector<8x128xi1>, vector<8x128xf32>
      %c2_i32_190 = arith.constant 2 : i32
      %193 = arith.addi %146, %c2_i32_190 : i32
      %194 = arith.truncf %190 : vector<8x128xf32> to vector<8x128xbf16>
      %c3_i32_191 = arith.constant 3 : i32
      %195 = arith.addi %c3_i32_191, %193 : i32
      %196 = arith.index_cast %195 : i32 to index
      %c0_192 = arith.constant 0 : index
      %c0_193 = arith.constant 0 : index
      %197 = vector.load %arg11[%196, %c0_192, %c0_193] : memref<19x8x128xbf16, #tpu.memory_space<vmem>>, vector<1x8x128xbf16>
      %198 = vector.shape_cast %197 : vector<1x8x128xbf16> to vector<8x128xbf16>
      %199 = vector.shape_cast %194 : vector<8x128xbf16> to vector<1x8x128xbf16>
      tpu.vector_store %arg11[%196, %c0_192, %c0_193], %199 {strides = array<i32>} : memref<19x8x128xbf16, #tpu.memory_space<vmem>>, vector<1x8x128xbf16>,
      %200 = arith.addf %177, %190 : vector<8x128xf32>
      %201 = arith.index_cast %193 : i32 to index
      %c0_194 = arith.constant 0 : index
      %c0_195 = arith.constant 0 : index
      %202 = vector.load %arg10[%201, %c0_194, %c0_195] : memref<16x8x128xf32, #tpu.memory_space<vmem>>, vector<1x8x128xf32>
      %203 = vector.shape_cast %202 : vector<1x8x128xf32> to vector<8x128xf32>
      %cst_196 = arith.constant 7.500000e-01 : f32
      %204 = vector.broadcast %cst_196 : f32 to vector<8x128xf32>
      %205 = arith.mulf %204, %183 : vector<8x128xf32>
      %206 = arith.addf %205, %203 : vector<8x128xf32>
      %cst_197 = arith.constant 9.687500e-01 : f32
      %207 = vector.broadcast %cst_197 : f32 to vector<8x128xf32>
      %208 = arith.mulf %207, %192 : vector<8x128xf32>
      %209 = arith.addf %208, %206 : vector<8x128xf32>
      %cst_198 = arith.constant 5.120000e+03 : f32
      %210 = vector.broadcast %cst_198 : f32 to vector<8x128xf32>
      %211 = arith.cmpf oge, %209, %210 : vector<8x128xf32>
      %212 = arith.extui %211 : vector<8x128xi1> to vector<8x128xi32>
      %213 = arith.sitofp %212 : vector<8x128xi32> to vector<8x128xf32>
      %cst_199 = arith.constant 0.000000e+00 : f32
      %214 = vector.broadcast %cst_199 : f32 to vector<8x128xf32>
      %215 = arith.select %211, %214, %209 : vector<8x128xi1>, vector<8x128xf32>
      %c3_i32_200 = arith.constant 3 : i32
      %216 = arith.addi %146, %c3_i32_200 : i32
      %217 = arith.truncf %213 : vector<8x128xf32> to vector<8x128xbf16>
      %c3_i32_201 = arith.constant 3 : i32
      %218 = arith.addi %c3_i32_201, %216 : i32
      %219 = arith.index_cast %218 : i32 to index
      %c0_202 = arith.constant 0 : index
      %c0_203 = arith.constant 0 : index
      %220 = vector.load %arg11[%219, %c0_202, %c0_203] : memref<19x8x128xbf16, #tpu.memory_space<vmem>>, vector<1x8x128xbf16>
      %221 = vector.shape_cast %220 : vector<1x8x128xbf16> to vector<8x128xbf16>
      %222 = vector.shape_cast %217 : vector<8x128xbf16> to vector<1x8x128xbf16>
      tpu.vector_store %arg11[%219, %c0_202, %c0_203], %222 {strides = array<i32>} : memref<19x8x128xbf16, #tpu.memory_space<vmem>>, vector<1x8x128xbf16>,
      %223 = arith.addf %200, %213 : vector<8x128xf32>
      %224 = arith.index_cast %216 : i32 to index
      %c0_204 = arith.constant 0 : index
      %c0_205 = arith.constant 0 : index
      %225 = vector.load %arg10[%224, %c0_204, %c0_205] : memref<16x8x128xf32, #tpu.memory_space<vmem>>, vector<1x8x128xf32>
      %226 = vector.shape_cast %225 : vector<1x8x128xf32> to vector<8x128xf32>
      %cst_206 = arith.constant 7.500000e-01 : f32
      %227 = vector.broadcast %cst_206 : f32 to vector<8x128xf32>
      %228 = arith.mulf %227, %206 : vector<8x128xf32>
      %229 = arith.addf %228, %226 : vector<8x128xf32>
      %cst_207 = arith.constant 9.687500e-01 : f32
      %230 = vector.broadcast %cst_207 : f32 to vector<8x128xf32>
      %231 = arith.mulf %230, %215 : vector<8x128xf32>
      %232 = arith.addf %231, %229 : vector<8x128xf32>
      %cst_208 = arith.constant 5.120000e+03 : f32
      %233 = vector.broadcast %cst_208 : f32 to vector<8x128xf32>
      %234 = arith.cmpf oge, %232, %233 : vector<8x128xf32>
      %235 = arith.extui %234 : vector<8x128xi1> to vector<8x128xi32>
      %236 = arith.sitofp %235 : vector<8x128xi32> to vector<8x128xf32>
      %cst_209 = arith.constant 0.000000e+00 : f32
      %237 = vector.broadcast %cst_209 : f32 to vector<8x128xf32>
      %238 = arith.select %234, %237, %232 : vector<8x128xi1>, vector<8x128xf32>
      %c4_i32 = arith.constant 4 : i32
      %239 = arith.addi %146, %c4_i32 : i32
      %240 = arith.truncf %236 : vector<8x128xf32> to vector<8x128xbf16>
      %c3_i32_210 = arith.constant 3 : i32
      %241 = arith.addi %c3_i32_210, %239 : i32
      %242 = arith.index_cast %241 : i32 to index
      %c0_211 = arith.constant 0 : index
      %c0_212 = arith.constant 0 : index
      %243 = vector.load %arg11[%242, %c0_211, %c0_212] : memref<19x8x128xbf16, #tpu.memory_space<vmem>>, vector<1x8x128xbf16>
      %244 = vector.shape_cast %243 : vector<1x8x128xbf16> to vector<8x128xbf16>
      %245 = vector.shape_cast %240 : vector<8x128xbf16> to vector<1x8x128xbf16>
      tpu.vector_store %arg11[%242, %c0_211, %c0_212], %245 {strides = array<i32>} : memref<19x8x128xbf16, #tpu.memory_space<vmem>>, vector<1x8x128xbf16>,
      %246 = arith.addf %223, %236 : vector<8x128xf32>
      %247 = arith.index_cast %239 : i32 to index
      %c0_213 = arith.constant 0 : index
      %c0_214 = arith.constant 0 : index
      %248 = vector.load %arg10[%247, %c0_213, %c0_214] : memref<16x8x128xf32, #tpu.memory_space<vmem>>, vector<1x8x128xf32>
      %249 = vector.shape_cast %248 : vector<1x8x128xf32> to vector<8x128xf32>
      %cst_215 = arith.constant 7.500000e-01 : f32
      %250 = vector.broadcast %cst_215 : f32 to vector<8x128xf32>
      %251 = arith.mulf %250, %229 : vector<8x128xf32>
      %252 = arith.addf %251, %249 : vector<8x128xf32>
      %cst_216 = arith.constant 9.687500e-01 : f32
      %253 = vector.broadcast %cst_216 : f32 to vector<8x128xf32>
      %254 = arith.mulf %253, %238 : vector<8x128xf32>
      %255 = arith.addf %254, %252 : vector<8x128xf32>
      %cst_217 = arith.constant 5.120000e+03 : f32
      %256 = vector.broadcast %cst_217 : f32 to vector<8x128xf32>
      %257 = arith.cmpf oge, %255, %256 : vector<8x128xf32>
      %258 = arith.extui %257 : vector<8x128xi1> to vector<8x128xi32>
      %259 = arith.sitofp %258 : vector<8x128xi32> to vector<8x128xf32>
      %cst_218 = arith.constant 0.000000e+00 : f32
      %260 = vector.broadcast %cst_218 : f32 to vector<8x128xf32>
      %261 = arith.select %257, %260, %255 : vector<8x128xi1>, vector<8x128xf32>
      %c5_i32 = arith.constant 5 : i32
      %262 = arith.addi %146, %c5_i32 : i32
      %263 = arith.truncf %259 : vector<8x128xf32> to vector<8x128xbf16>
      %c3_i32_219 = arith.constant 3 : i32
      %264 = arith.addi %c3_i32_219, %262 : i32
      %265 = arith.index_cast %264 : i32 to index
      %c0_220 = arith.constant 0 : index
      %c0_221 = arith.constant 0 : index
      %266 = vector.load %arg11[%265, %c0_220, %c0_221] : memref<19x8x128xbf16, #tpu.memory_space<vmem>>, vector<1x8x128xbf16>
      %267 = vector.shape_cast %266 : vector<1x8x128xbf16> to vector<8x128xbf16>
      %268 = vector.shape_cast %263 : vector<8x128xbf16> to vector<1x8x128xbf16>
      tpu.vector_store %arg11[%265, %c0_220, %c0_221], %268 {strides = array<i32>} : memref<19x8x128xbf16, #tpu.memory_space<vmem>>, vector<1x8x128xbf16>,
      %269 = arith.addf %246, %259 : vector<8x128xf32>
      %270 = arith.index_cast %262 : i32 to index
      %c0_222 = arith.constant 0 : index
      %c0_223 = arith.constant 0 : index
      %271 = vector.load %arg10[%270, %c0_222, %c0_223] : memref<16x8x128xf32, #tpu.memory_space<vmem>>, vector<1x8x128xf32>
      %272 = vector.shape_cast %271 : vector<1x8x128xf32> to vector<8x128xf32>
      %cst_224 = arith.constant 7.500000e-01 : f32
      %273 = vector.broadcast %cst_224 : f32 to vector<8x128xf32>
      %274 = arith.mulf %273, %252 : vector<8x128xf32>
      %275 = arith.addf %274, %272 : vector<8x128xf32>
      %cst_225 = arith.constant 9.687500e-01 : f32
      %276 = vector.broadcast %cst_225 : f32 to vector<8x128xf32>
      %277 = arith.mulf %276, %261 : vector<8x128xf32>
      %278 = arith.addf %277, %275 : vector<8x128xf32>
      %cst_226 = arith.constant 5.120000e+03 : f32
      %279 = vector.broadcast %cst_226 : f32 to vector<8x128xf32>
      %280 = arith.cmpf oge, %278, %279 : vector<8x128xf32>
      %281 = arith.extui %280 : vector<8x128xi1> to vector<8x128xi32>
      %282 = arith.sitofp %281 : vector<8x128xi32> to vector<8x128xf32>
      %cst_227 = arith.constant 0.000000e+00 : f32
      %283 = vector.broadcast %cst_227 : f32 to vector<8x128xf32>
      %284 = arith.select %280, %283, %278 : vector<8x128xi1>, vector<8x128xf32>
      %c6_i32 = arith.constant 6 : i32
      %285 = arith.addi %146, %c6_i32 : i32
      %286 = arith.truncf %282 : vector<8x128xf32> to vector<8x128xbf16>
      %c3_i32_228 = arith.constant 3 : i32
      %287 = arith.addi %c3_i32_228, %285 : i32
      %288 = arith.index_cast %287 : i32 to index
      %c0_229 = arith.constant 0 : index
      %c0_230 = arith.constant 0 : index
      %289 = vector.load %arg11[%288, %c0_229, %c0_230] : memref<19x8x128xbf16, #tpu.memory_space<vmem>>, vector<1x8x128xbf16>
      %290 = vector.shape_cast %289 : vector<1x8x128xbf16> to vector<8x128xbf16>
      %291 = vector.shape_cast %286 : vector<8x128xbf16> to vector<1x8x128xbf16>
      tpu.vector_store %arg11[%288, %c0_229, %c0_230], %291 {strides = array<i32>} : memref<19x8x128xbf16, #tpu.memory_space<vmem>>, vector<1x8x128xbf16>,
      %292 = arith.addf %269, %282 : vector<8x128xf32>
      %293 = arith.index_cast %285 : i32 to index
      %c0_231 = arith.constant 0 : index
      %c0_232 = arith.constant 0 : index
      %294 = vector.load %arg10[%293, %c0_231, %c0_232] : memref<16x8x128xf32, #tpu.memory_space<vmem>>, vector<1x8x128xf32>
      %295 = vector.shape_cast %294 : vector<1x8x128xf32> to vector<8x128xf32>
      %cst_233 = arith.constant 7.500000e-01 : f32
      %296 = vector.broadcast %cst_233 : f32 to vector<8x128xf32>
      %297 = arith.mulf %296, %275 : vector<8x128xf32>
      %298 = arith.addf %297, %295 : vector<8x128xf32>
      %cst_234 = arith.constant 9.687500e-01 : f32
      %299 = vector.broadcast %cst_234 : f32 to vector<8x128xf32>
      %300 = arith.mulf %299, %284 : vector<8x128xf32>
      %301 = arith.addf %300, %298 : vector<8x128xf32>
      %cst_235 = arith.constant 5.120000e+03 : f32
      %302 = vector.broadcast %cst_235 : f32 to vector<8x128xf32>
      %303 = arith.cmpf oge, %301, %302 : vector<8x128xf32>
      %304 = arith.extui %303 : vector<8x128xi1> to vector<8x128xi32>
      %305 = arith.sitofp %304 : vector<8x128xi32> to vector<8x128xf32>
      %cst_236 = arith.constant 0.000000e+00 : f32
      %306 = vector.broadcast %cst_236 : f32 to vector<8x128xf32>
      %307 = arith.select %303, %306, %301 : vector<8x128xi1>, vector<8x128xf32>
      %c7_i32 = arith.constant 7 : i32
      %308 = arith.addi %146, %c7_i32 : i32
      %309 = arith.truncf %305 : vector<8x128xf32> to vector<8x128xbf16>
      %c3_i32_237 = arith.constant 3 : i32
      %310 = arith.addi %c3_i32_237, %308 : i32
      %311 = arith.index_cast %310 : i32 to index
      %c0_238 = arith.constant 0 : index
      %c0_239 = arith.constant 0 : index
      %312 = vector.load %arg11[%311, %c0_238, %c0_239] : memref<19x8x128xbf16, #tpu.memory_space<vmem>>, vector<1x8x128xbf16>
      %313 = vector.shape_cast %312 : vector<1x8x128xbf16> to vector<8x128xbf16>
      %314 = vector.shape_cast %309 : vector<8x128xbf16> to vector<1x8x128xbf16>
      tpu.vector_store %arg11[%311, %c0_238, %c0_239], %314 {strides = array<i32>} : memref<19x8x128xbf16, #tpu.memory_space<vmem>>, vector<1x8x128xbf16>,
      %315 = arith.addf %292, %305 : vector<8x128xf32>
      %316 = arith.index_cast %308 : i32 to index
      %c0_240 = arith.constant 0 : index
      %c0_241 = arith.constant 0 : index
      %317 = vector.load %arg10[%316, %c0_240, %c0_241] : memref<16x8x128xf32, #tpu.memory_space<vmem>>, vector<1x8x128xf32>
      %318 = vector.shape_cast %317 : vector<1x8x128xf32> to vector<8x128xf32>
      %cst_242 = arith.constant 7.500000e-01 : f32
      %319 = vector.broadcast %cst_242 : f32 to vector<8x128xf32>
      %320 = arith.mulf %319, %298 : vector<8x128xf32>
      %321 = arith.addf %320, %318 : vector<8x128xf32>
      %cst_243 = arith.constant 9.687500e-01 : f32
      %322 = vector.broadcast %cst_243 : f32 to vector<8x128xf32>
      %323 = arith.mulf %322, %307 : vector<8x128xf32>
      %324 = arith.addf %323, %321 : vector<8x128xf32>
      %cst_244 = arith.constant 5.120000e+03 : f32
      %325 = vector.broadcast %cst_244 : f32 to vector<8x128xf32>
      %326 = arith.cmpf oge, %324, %325 : vector<8x128xf32>
      %327 = arith.extui %326 : vector<8x128xi1> to vector<8x128xi32>
      %328 = arith.sitofp %327 : vector<8x128xi32> to vector<8x128xf32>
      %cst_245 = arith.constant 0.000000e+00 : f32
      %329 = vector.broadcast %cst_245 : f32 to vector<8x128xf32>
      %330 = arith.select %326, %329, %324 : vector<8x128xi1>, vector<8x128xf32>
      scf.yield %321, %330, %328, %315 : vector<8x128xf32>, vector<8x128xf32>, vector<8x128xf32>, vector<8x128xf32>
    }
    %c2_i32_20 = arith.constant 2 : i32
    %c0_21 = arith.constant 0 : index
    %c0_22 = arith.constant 0 : index
    %c0_23 = arith.constant 0 : index
    %c0_24 = arith.constant 0 : index
    %18 = vector.load %arg13[%c0_21, %c0_22, %c0_23, %c0_24] : memref<3x3x8x128xf32, #tpu.memory_space<vmem>>, vector<1x1x8x128xf32>
    %19 = vector.shape_cast %18 : vector<1x1x8x128xf32> to vector<8x128xf32>
    %20 = vector.shape_cast %17#0 : vector<8x128xf32> to vector<1x1x8x128xf32>
    tpu.vector_store %arg13[%c0_21, %c0_22, %c0_23, %c0_24], %20 {strides = array<i32>} : memref<3x3x8x128xf32, #tpu.memory_space<vmem>>, vector<1x1x8x128xf32>,
    %c0_25 = arith.constant 0 : index
    %c1_26 = arith.constant 1 : index
    %c0_27 = arith.constant 0 : index
    %c0_28 = arith.constant 0 : index
    %21 = vector.load %arg13[%c0_25, %c1_26, %c0_27, %c0_28] : memref<3x3x8x128xf32, #tpu.memory_space<vmem>>, vector<1x1x8x128xf32>
    %22 = vector.shape_cast %21 : vector<1x1x8x128xf32> to vector<8x128xf32>
    %23 = vector.shape_cast %17#1 : vector<8x128xf32> to vector<1x1x8x128xf32>
    tpu.vector_store %arg13[%c0_25, %c1_26, %c0_27, %c0_28], %23 {strides = array<i32>} : memref<3x3x8x128xf32, #tpu.memory_space<vmem>>, vector<1x1x8x128xf32>,
    %c0_29 = arith.constant 0 : index
    %c2_30 = arith.constant 2 : index
    %c0_31 = arith.constant 0 : index
    %c0_32 = arith.constant 0 : index
    %24 = vector.load %arg13[%c0_29, %c2_30, %c0_31, %c0_32] : memref<3x3x8x128xf32, #tpu.memory_space<vmem>>, vector<1x1x8x128xf32>
    %25 = vector.shape_cast %24 : vector<1x1x8x128xf32> to vector<8x128xf32>
    %26 = vector.shape_cast %17#2 : vector<8x128xf32> to vector<1x1x8x128xf32>
    tpu.vector_store %arg13[%c0_29, %c2_30, %c0_31, %c0_32], %26 {strides = array<i32>} : memref<3x3x8x128xf32, #tpu.memory_space<vmem>>, vector<1x1x8x128xf32>,
    %c0_33 = arith.constant 0 : index
    %c0_34 = arith.constant 0 : index
    %c0_35 = arith.constant 0 : index
    %c0_36 = arith.constant 0 : index
    %27 = vector.load %arg9[%c0_33, %c0_34, %c0_35, %c0_36] : memref<1x3x8x128xf32, #tpu.memory_space<vmem>>, vector<1x1x8x128xf32>
    %28 = vector.shape_cast %27 : vector<1x1x8x128xf32> to vector<8x128xf32>
    %29 = arith.addf %28, %17#3 : vector<8x128xf32>
    %c0_37 = arith.constant 0 : index
    %c0_38 = arith.constant 0 : index
    %c0_39 = arith.constant 0 : index
    %c0_40 = arith.constant 0 : index
    %30 = vector.load %arg9[%c0_37, %c0_38, %c0_39, %c0_40] : memref<1x3x8x128xf32, #tpu.memory_space<vmem>>, vector<1x1x8x128xf32>
    %31 = vector.shape_cast %30 : vector<1x1x8x128xf32> to vector<8x128xf32>
    %32 = vector.shape_cast %29 : vector<8x128xf32> to vector<1x1x8x128xf32>
    tpu.vector_store %arg9[%c0_37, %c0_38, %c0_39, %c0_40], %32 {strides = array<i32>} : memref<1x3x8x128xf32, #tpu.memory_space<vmem>>, vector<1x1x8x128xf32>,
    %c3 = arith.constant 3 : index
    %c0_41 = arith.constant 0 : index
    %c0_42 = arith.constant 0 : index
    %33 = vector.load %arg11[%c3, %c0_41, %c0_42] : memref<19x8x128xbf16, #tpu.memory_space<vmem>>, vector<16x8x128xbf16>
    %c2_43 = arith.constant 2 : index
    %c0_44 = arith.constant 0 : index
    %c0_45 = arith.constant 0 : index
    %34 = vector.load %arg11[%c2_43, %c0_44, %c0_45] : memref<19x8x128xbf16, #tpu.memory_space<vmem>>, vector<16x8x128xbf16>
    %c0_46 = arith.constant 0 : index
    %c0_47 = arith.constant 0 : index
    %35 = vector.load %arg6[%c0_46, %c0_47] : memref<1x128xi32, #tpu.memory_space<vmem>>, vector<1x128xi32>
    %c1_i32_48 = arith.constant 1 : i32
    %36 = vector.broadcast %c1_i32_48 : i32 to vector<1x128xi32>
    %37 = arith.cmpi eq, %35, %36 : vector<1x128xi32>
    %38 = vector.shape_cast %37 : vector<1x128xi1> to vector<1x1x128xi1>
    %39 = vector.shape_cast %38 : vector<1x1x128xi1> to vector<1x1x128xi1>
    %40 = vector.broadcast %39 : vector<1x1x128xi1> to vector<16x8x128xi1>
    %41 = arith.select %40, %34, %33 : vector<16x8x128xi1>, vector<16x8x128xbf16>
    %c1_49 = arith.constant 1 : index
    %c0_50 = arith.constant 0 : index
    %c0_51 = arith.constant 0 : index
    %42 = vector.load %arg11[%c1_49, %c0_50, %c0_51] : memref<19x8x128xbf16, #tpu.memory_space<vmem>>, vector<16x8x128xbf16>
    %c0_52 = arith.constant 0 : index
    %c0_53 = arith.constant 0 : index
    %43 = vector.load %arg6[%c0_52, %c0_53] : memref<1x128xi32, #tpu.memory_space<vmem>>, vector<1x128xi32>
    %c2_i32_54 = arith.constant 2 : i32
    %44 = vector.broadcast %c2_i32_54 : i32 to vector<1x128xi32>
    %45 = arith.cmpi eq, %43, %44 : vector<1x128xi32>
    %46 = vector.shape_cast %45 : vector<1x128xi1> to vector<1x1x128xi1>
    %47 = vector.shape_cast %46 : vector<1x1x128xi1> to vector<1x1x128xi1>
    %48 = vector.broadcast %47 : vector<1x1x128xi1> to vector<16x8x128xi1>
    %49 = arith.select %48, %42, %41 : vector<16x8x128xi1>, vector<16x8x128xbf16>
    %c0_55 = arith.constant 0 : index
    %c0_56 = arith.constant 0 : index
    %c0_57 = arith.constant 0 : index
    %50 = vector.load %arg11[%c0_55, %c0_56, %c0_57] : memref<19x8x128xbf16, #tpu.memory_space<vmem>>, vector<16x8x128xbf16>
    %c0_58 = arith.constant 0 : index
    %c0_59 = arith.constant 0 : index
    %51 = vector.load %arg6[%c0_58, %c0_59] : memref<1x128xi32, #tpu.memory_space<vmem>>, vector<1x128xi32>
    %c3_i32 = arith.constant 3 : i32
    %52 = vector.broadcast %c3_i32 : i32 to vector<1x128xi32>
    %53 = arith.cmpi eq, %51, %52 : vector<1x128xi32>
    %54 = vector.shape_cast %53 : vector<1x128xi1> to vector<1x1x128xi1>
    %55 = vector.shape_cast %54 : vector<1x1x128xi1> to vector<1x1x128xi1>
    %56 = vector.broadcast %55 : vector<1x1x128xi1> to vector<16x8x128xi1>
    %57 = arith.select %56, %50, %49 : vector<16x8x128xi1>, vector<16x8x128xbf16>
    %58 = vector.shape_cast %57 : vector<16x8x128xbf16> to vector<128x128xbf16>
    %c0_60 = arith.constant 0 : index
    %c0_61 = arith.constant 0 : index
    %59 = vector.load %arg4[%c0_60, %c0_61] : memref<128x128xbf16, #tpu.memory_space<vmem>>, vector<128x128xbf16>
    %cst_62 = arith.constant dense<0.000000e+00> : vector<128x128xf32>
    %60 = tpu.matmul %58, %59, %cst_62 {dimension_numbers = #tpu.dot_dimension_numbers<[1], [0], [0], [1], [0, 0, 1, 1], [], []>} : vector<128x128xbf16>, vector<128x128xbf16>, vector<128x128xf32> -> vector<128x128xf32>
    %61 = vector.shape_cast %60 : vector<128x128xf32> to vector<16x8x128xf32>
    %c0_63 = arith.constant 0 : index
    %c0_64 = arith.constant 0 : index
    %c0_65 = arith.constant 0 : index
    %62 = vector.load %arg10[%c0_63, %c0_64, %c0_65] : memref<16x8x128xf32, #tpu.memory_space<vmem>>, vector<16x8x128xf32>
    tpu.vector_store %arg10[%c0_63, %c0_64, %c0_65], %61 {strides = array<i32>} : memref<16x8x128xf32, #tpu.memory_space<vmem>>, vector<16x8x128xf32>,
    %c1_66 = arith.constant 1 : index
    %c0_67 = arith.constant 0 : index
    %c0_68 = arith.constant 0 : index
    %c0_69 = arith.constant 0 : index
    %63 = vector.load %arg13[%c1_66, %c0_67, %c0_68, %c0_69] : memref<3x3x8x128xf32, #tpu.memory_space<vmem>>, vector<1x1x8x128xf32>
    %64 = vector.shape_cast %63 : vector<1x1x8x128xf32> to vector<8x128xf32>
    %c1_70 = arith.constant 1 : index
    %c1_71 = arith.constant 1 : index
    %c0_72 = arith.constant 0 : index
    %c0_73 = arith.constant 0 : index
    %65 = vector.load %arg13[%c1_70, %c1_71, %c0_72, %c0_73] : memref<3x3x8x128xf32, #tpu.memory_space<vmem>>, vector<1x1x8x128xf32>
    %66 = vector.shape_cast %65 : vector<1x1x8x128xf32> to vector<8x128xf32>
    %c1_74 = arith.constant 1 : index
    %c2_75 = arith.constant 2 : index
    %c0_76 = arith.constant 0 : index
    %c0_77 = arith.constant 0 : index
    %67 = vector.load %arg13[%c1_74, %c2_75, %c0_76, %c0_77] : memref<3x3x8x128xf32, #tpu.memory_space<vmem>>, vector<1x1x8x128xf32>
    %68 = vector.shape_cast %67 : vector<1x1x8x128xf32> to vector<8x128xf32>
    %cst_78 = arith.constant 0.000000e+00 : f32
    %69 = vector.broadcast %cst_78 : f32 to vector<8x128xf32>
    %c0_i32_79 = arith.constant 0 : i32
    %c2_i32_80 = arith.constant 2 : i32
    %70 = arith.addi %c0_i32_79, %c2_i32_80 : i32
    %c1_i32_81 = arith.constant 1 : i32
    %71:4 = scf.for %arg14 = %c0_i32_79 to %70 step %c1_i32_81 iter_args(%arg15 = %64, %arg16 = %66, %arg17 = %68, %arg18 = %69) -> (vector<8x128xf32>, vector<8x128xf32>, vector<8x128xf32>, vector<8x128xf32>)  : i32 {
      %c8_i32 = arith.constant 8 : i32
      %145 = arith.muli %arg14, %c8_i32 : i32
      %146 = tpu.assume_multiple %145, 8 : i32
      %c0_i32_170 = arith.constant 0 : i32
      %147 = arith.addi %146, %c0_i32_170 : i32
      %148 = arith.truncf %arg17 : vector<8x128xf32> to vector<8x128xbf16>
      %c3_i32_171 = arith.constant 3 : i32
      %149 = arith.addi %c3_i32_171, %147 : i32
      %150 = arith.index_cast %149 : i32 to index
      %c0_172 = arith.constant 0 : index
      %c0_173 = arith.constant 0 : index
      %151 = vector.load %arg12[%150, %c0_172, %c0_173] : memref<19x8x128xbf16, #tpu.memory_space<vmem>>, vector<1x8x128xbf16>
      %152 = vector.shape_cast %151 : vector<1x8x128xbf16> to vector<8x128xbf16>
      %153 = vector.shape_cast %148 : vector<8x128xbf16> to vector<1x8x128xbf16>
      tpu.vector_store %arg12[%150, %c0_172, %c0_173], %153 {strides = array<i32>} : memref<19x8x128xbf16, #tpu.memory_space<vmem>>, vector<1x8x128xbf16>,
      %154 = arith.addf %arg18, %arg17 : vector<8x128xf32>
      %155 = arith.index_cast %147 : i32 to index
      %c0_174 = arith.constant 0 : index
      %c0_175 = arith.constant 0 : index
      %156 = vector.load %arg10[%155, %c0_174, %c0_175] : memref<16x8x128xf32, #tpu.memory_space<vmem>>, vector<1x8x128xf32>
      %157 = vector.shape_cast %156 : vector<1x8x128xf32> to vector<8x128xf32>
      %cst_176 = arith.constant 7.500000e-01 : f32
      %158 = vector.broadcast %cst_176 : f32 to vector<8x128xf32>
      %159 = arith.mulf %158, %arg15 : vector<8x128xf32>
      %160 = arith.addf %159, %157 : vector<8x128xf32>
      %cst_177 = arith.constant 9.687500e-01 : f32
      %161 = vector.broadcast %cst_177 : f32 to vector<8x128xf32>
      %162 = arith.mulf %161, %arg16 : vector<8x128xf32>
      %163 = arith.addf %162, %160 : vector<8x128xf32>
      %cst_178 = arith.constant 5.120000e+03 : f32
      %164 = vector.broadcast %cst_178 : f32 to vector<8x128xf32>
      %165 = arith.cmpf oge, %163, %164 : vector<8x128xf32>
      %166 = arith.extui %165 : vector<8x128xi1> to vector<8x128xi32>
      %167 = arith.sitofp %166 : vector<8x128xi32> to vector<8x128xf32>
      %cst_179 = arith.constant 0.000000e+00 : f32
      %168 = vector.broadcast %cst_179 : f32 to vector<8x128xf32>
      %169 = arith.select %165, %168, %163 : vector<8x128xi1>, vector<8x128xf32>
      %c1_i32_180 = arith.constant 1 : i32
      %170 = arith.addi %146, %c1_i32_180 : i32
      %171 = arith.truncf %167 : vector<8x128xf32> to vector<8x128xbf16>
      %c3_i32_181 = arith.constant 3 : i32
      %172 = arith.addi %c3_i32_181, %170 : i32
      %173 = arith.index_cast %172 : i32 to index
      %c0_182 = arith.constant 0 : index
      %c0_183 = arith.constant 0 : index
      %174 = vector.load %arg12[%173, %c0_182, %c0_183] : memref<19x8x128xbf16, #tpu.memory_space<vmem>>, vector<1x8x128xbf16>
      %175 = vector.shape_cast %174 : vector<1x8x128xbf16> to vector<8x128xbf16>
      %176 = vector.shape_cast %171 : vector<8x128xbf16> to vector<1x8x128xbf16>
      tpu.vector_store %arg12[%173, %c0_182, %c0_183], %176 {strides = array<i32>} : memref<19x8x128xbf16, #tpu.memory_space<vmem>>, vector<1x8x128xbf16>,
      %177 = arith.addf %154, %167 : vector<8x128xf32>
      %178 = arith.index_cast %170 : i32 to index
      %c0_184 = arith.constant 0 : index
      %c0_185 = arith.constant 0 : index
      %179 = vector.load %arg10[%178, %c0_184, %c0_185] : memref<16x8x128xf32, #tpu.memory_space<vmem>>, vector<1x8x128xf32>
      %180 = vector.shape_cast %179 : vector<1x8x128xf32> to vector<8x128xf32>
      %cst_186 = arith.constant 7.500000e-01 : f32
      %181 = vector.broadcast %cst_186 : f32 to vector<8x128xf32>
      %182 = arith.mulf %181, %160 : vector<8x128xf32>
      %183 = arith.addf %182, %180 : vector<8x128xf32>
      %cst_187 = arith.constant 9.687500e-01 : f32
      %184 = vector.broadcast %cst_187 : f32 to vector<8x128xf32>
      %185 = arith.mulf %184, %169 : vector<8x128xf32>
      %186 = arith.addf %185, %183 : vector<8x128xf32>
      %cst_188 = arith.constant 5.120000e+03 : f32
      %187 = vector.broadcast %cst_188 : f32 to vector<8x128xf32>
      %188 = arith.cmpf oge, %186, %187 : vector<8x128xf32>
      %189 = arith.extui %188 : vector<8x128xi1> to vector<8x128xi32>
      %190 = arith.sitofp %189 : vector<8x128xi32> to vector<8x128xf32>
      %cst_189 = arith.constant 0.000000e+00 : f32
      %191 = vector.broadcast %cst_189 : f32 to vector<8x128xf32>
      %192 = arith.select %188, %191, %186 : vector<8x128xi1>, vector<8x128xf32>
      %c2_i32_190 = arith.constant 2 : i32
      %193 = arith.addi %146, %c2_i32_190 : i32
      %194 = arith.truncf %190 : vector<8x128xf32> to vector<8x128xbf16>
      %c3_i32_191 = arith.constant 3 : i32
      %195 = arith.addi %c3_i32_191, %193 : i32
      %196 = arith.index_cast %195 : i32 to index
      %c0_192 = arith.constant 0 : index
      %c0_193 = arith.constant 0 : index
      %197 = vector.load %arg12[%196, %c0_192, %c0_193] : memref<19x8x128xbf16, #tpu.memory_space<vmem>>, vector<1x8x128xbf16>
      %198 = vector.shape_cast %197 : vector<1x8x128xbf16> to vector<8x128xbf16>
      %199 = vector.shape_cast %194 : vector<8x128xbf16> to vector<1x8x128xbf16>
      tpu.vector_store %arg12[%196, %c0_192, %c0_193], %199 {strides = array<i32>} : memref<19x8x128xbf16, #tpu.memory_space<vmem>>, vector<1x8x128xbf16>,
      %200 = arith.addf %177, %190 : vector<8x128xf32>
      %201 = arith.index_cast %193 : i32 to index
      %c0_194 = arith.constant 0 : index
      %c0_195 = arith.constant 0 : index
      %202 = vector.load %arg10[%201, %c0_194, %c0_195] : memref<16x8x128xf32, #tpu.memory_space<vmem>>, vector<1x8x128xf32>
      %203 = vector.shape_cast %202 : vector<1x8x128xf32> to vector<8x128xf32>
      %cst_196 = arith.constant 7.500000e-01 : f32
      %204 = vector.broadcast %cst_196 : f32 to vector<8x128xf32>
      %205 = arith.mulf %204, %183 : vector<8x128xf32>
      %206 = arith.addf %205, %203 : vector<8x128xf32>
      %cst_197 = arith.constant 9.687500e-01 : f32
      %207 = vector.broadcast %cst_197 : f32 to vector<8x128xf32>
      %208 = arith.mulf %207, %192 : vector<8x128xf32>
      %209 = arith.addf %208, %206 : vector<8x128xf32>
      %cst_198 = arith.constant 5.120000e+03 : f32
      %210 = vector.broadcast %cst_198 : f32 to vector<8x128xf32>
      %211 = arith.cmpf oge, %209, %210 : vector<8x128xf32>
      %212 = arith.extui %211 : vector<8x128xi1> to vector<8x128xi32>
      %213 = arith.sitofp %212 : vector<8x128xi32> to vector<8x128xf32>
      %cst_199 = arith.constant 0.000000e+00 : f32
      %214 = vector.broadcast %cst_199 : f32 to vector<8x128xf32>
      %215 = arith.select %211, %214, %209 : vector<8x128xi1>, vector<8x128xf32>
      %c3_i32_200 = arith.constant 3 : i32
      %216 = arith.addi %146, %c3_i32_200 : i32
      %217 = arith.truncf %213 : vector<8x128xf32> to vector<8x128xbf16>
      %c3_i32_201 = arith.constant 3 : i32
      %218 = arith.addi %c3_i32_201, %216 : i32
      %219 = arith.index_cast %218 : i32 to index
      %c0_202 = arith.constant 0 : index
      %c0_203 = arith.constant 0 : index
      %220 = vector.load %arg12[%219, %c0_202, %c0_203] : memref<19x8x128xbf16, #tpu.memory_space<vmem>>, vector<1x8x128xbf16>
      %221 = vector.shape_cast %220 : vector<1x8x128xbf16> to vector<8x128xbf16>
      %222 = vector.shape_cast %217 : vector<8x128xbf16> to vector<1x8x128xbf16>
      tpu.vector_store %arg12[%219, %c0_202, %c0_203], %222 {strides = array<i32>} : memref<19x8x128xbf16, #tpu.memory_space<vmem>>, vector<1x8x128xbf16>,
      %223 = arith.addf %200, %213 : vector<8x128xf32>
      %224 = arith.index_cast %216 : i32 to index
      %c0_204 = arith.constant 0 : index
      %c0_205 = arith.constant 0 : index
      %225 = vector.load %arg10[%224, %c0_204, %c0_205] : memref<16x8x128xf32, #tpu.memory_space<vmem>>, vector<1x8x128xf32>
      %226 = vector.shape_cast %225 : vector<1x8x128xf32> to vector<8x128xf32>
      %cst_206 = arith.constant 7.500000e-01 : f32
      %227 = vector.broadcast %cst_206 : f32 to vector<8x128xf32>
      %228 = arith.mulf %227, %206 : vector<8x128xf32>
      %229 = arith.addf %228, %226 : vector<8x128xf32>
      %cst_207 = arith.constant 9.687500e-01 : f32
      %230 = vector.broadcast %cst_207 : f32 to vector<8x128xf32>
      %231 = arith.mulf %230, %215 : vector<8x128xf32>
      %232 = arith.addf %231, %229 : vector<8x128xf32>
      %cst_208 = arith.constant 5.120000e+03 : f32
      %233 = vector.broadcast %cst_208 : f32 to vector<8x128xf32>
      %234 = arith.cmpf oge, %232, %233 : vector<8x128xf32>
      %235 = arith.extui %234 : vector<8x128xi1> to vector<8x128xi32>
      %236 = arith.sitofp %235 : vector<8x128xi32> to vector<8x128xf32>
      %cst_209 = arith.constant 0.000000e+00 : f32
      %237 = vector.broadcast %cst_209 : f32 to vector<8x128xf32>
      %238 = arith.select %234, %237, %232 : vector<8x128xi1>, vector<8x128xf32>
      %c4_i32 = arith.constant 4 : i32
      %239 = arith.addi %146, %c4_i32 : i32
      %240 = arith.truncf %236 : vector<8x128xf32> to vector<8x128xbf16>
      %c3_i32_210 = arith.constant 3 : i32
      %241 = arith.addi %c3_i32_210, %239 : i32
      %242 = arith.index_cast %241 : i32 to index
      %c0_211 = arith.constant 0 : index
      %c0_212 = arith.constant 0 : index
      %243 = vector.load %arg12[%242, %c0_211, %c0_212] : memref<19x8x128xbf16, #tpu.memory_space<vmem>>, vector<1x8x128xbf16>
      %244 = vector.shape_cast %243 : vector<1x8x128xbf16> to vector<8x128xbf16>
      %245 = vector.shape_cast %240 : vector<8x128xbf16> to vector<1x8x128xbf16>
      tpu.vector_store %arg12[%242, %c0_211, %c0_212], %245 {strides = array<i32>} : memref<19x8x128xbf16, #tpu.memory_space<vmem>>, vector<1x8x128xbf16>,
      %246 = arith.addf %223, %236 : vector<8x128xf32>
      %247 = arith.index_cast %239 : i32 to index
      %c0_213 = arith.constant 0 : index
      %c0_214 = arith.constant 0 : index
      %248 = vector.load %arg10[%247, %c0_213, %c0_214] : memref<16x8x128xf32, #tpu.memory_space<vmem>>, vector<1x8x128xf32>
      %249 = vector.shape_cast %248 : vector<1x8x128xf32> to vector<8x128xf32>
      %cst_215 = arith.constant 7.500000e-01 : f32
      %250 = vector.broadcast %cst_215 : f32 to vector<8x128xf32>
      %251 = arith.mulf %250, %229 : vector<8x128xf32>
      %252 = arith.addf %251, %249 : vector<8x128xf32>
      %cst_216 = arith.constant 9.687500e-01 : f32
      %253 = vector.broadcast %cst_216 : f32 to vector<8x128xf32>
      %254 = arith.mulf %253, %238 : vector<8x128xf32>
      %255 = arith.addf %254, %252 : vector<8x128xf32>
      %cst_217 = arith.constant 5.120000e+03 : f32
      %256 = vector.broadcast %cst_217 : f32 to vector<8x128xf32>
      %257 = arith.cmpf oge, %255, %256 : vector<8x128xf32>
      %258 = arith.extui %257 : vector<8x128xi1> to vector<8x128xi32>
      %259 = arith.sitofp %258 : vector<8x128xi32> to vector<8x128xf32>
      %cst_218 = arith.constant 0.000000e+00 : f32
      %260 = vector.broadcast %cst_218 : f32 to vector<8x128xf32>
      %261 = arith.select %257, %260, %255 : vector<8x128xi1>, vector<8x128xf32>
      %c5_i32 = arith.constant 5 : i32
      %262 = arith.addi %146, %c5_i32 : i32
      %263 = arith.truncf %259 : vector<8x128xf32> to vector<8x128xbf16>
      %c3_i32_219 = arith.constant 3 : i32
      %264 = arith.addi %c3_i32_219, %262 : i32
      %265 = arith.index_cast %264 : i32 to index
      %c0_220 = arith.constant 0 : index
      %c0_221 = arith.constant 0 : index
      %266 = vector.load %arg12[%265, %c0_220, %c0_221] : memref<19x8x128xbf16, #tpu.memory_space<vmem>>, vector<1x8x128xbf16>
      %267 = vector.shape_cast %266 : vector<1x8x128xbf16> to vector<8x128xbf16>
      %268 = vector.shape_cast %263 : vector<8x128xbf16> to vector<1x8x128xbf16>
      tpu.vector_store %arg12[%265, %c0_220, %c0_221], %268 {strides = array<i32>} : memref<19x8x128xbf16, #tpu.memory_space<vmem>>, vector<1x8x128xbf16>,
      %269 = arith.addf %246, %259 : vector<8x128xf32>
      %270 = arith.index_cast %262 : i32 to index
      %c0_222 = arith.constant 0 : index
      %c0_223 = arith.constant 0 : index
      %271 = vector.load %arg10[%270, %c0_222, %c0_223] : memref<16x8x128xf32, #tpu.memory_space<vmem>>, vector<1x8x128xf32>
      %272 = vector.shape_cast %271 : vector<1x8x128xf32> to vector<8x128xf32>
      %cst_224 = arith.constant 7.500000e-01 : f32
      %273 = vector.broadcast %cst_224 : f32 to vector<8x128xf32>
      %274 = arith.mulf %273, %252 : vector<8x128xf32>
      %275 = arith.addf %274, %272 : vector<8x128xf32>
      %cst_225 = arith.constant 9.687500e-01 : f32
      %276 = vector.broadcast %cst_225 : f32 to vector<8x128xf32>
      %277 = arith.mulf %276, %261 : vector<8x128xf32>
      %278 = arith.addf %277, %275 : vector<8x128xf32>
      %cst_226 = arith.constant 5.120000e+03 : f32
      %279 = vector.broadcast %cst_226 : f32 to vector<8x128xf32>
      %280 = arith.cmpf oge, %278, %279 : vector<8x128xf32>
      %281 = arith.extui %280 : vector<8x128xi1> to vector<8x128xi32>
      %282 = arith.sitofp %281 : vector<8x128xi32> to vector<8x128xf32>
      %cst_227 = arith.constant 0.000000e+00 : f32
      %283 = vector.broadcast %cst_227 : f32 to vector<8x128xf32>
      %284 = arith.select %280, %283, %278 : vector<8x128xi1>, vector<8x128xf32>
      %c6_i32 = arith.constant 6 : i32
      %285 = arith.addi %146, %c6_i32 : i32
      %286 = arith.truncf %282 : vector<8x128xf32> to vector<8x128xbf16>
      %c3_i32_228 = arith.constant 3 : i32
      %287 = arith.addi %c3_i32_228, %285 : i32
      %288 = arith.index_cast %287 : i32 to index
      %c0_229 = arith.constant 0 : index
      %c0_230 = arith.constant 0 : index
      %289 = vector.load %arg12[%288, %c0_229, %c0_230] : memref<19x8x128xbf16, #tpu.memory_space<vmem>>, vector<1x8x128xbf16>
      %290 = vector.shape_cast %289 : vector<1x8x128xbf16> to vector<8x128xbf16>
      %291 = vector.shape_cast %286 : vector<8x128xbf16> to vector<1x8x128xbf16>
      tpu.vector_store %arg12[%288, %c0_229, %c0_230], %291 {strides = array<i32>} : memref<19x8x128xbf16, #tpu.memory_space<vmem>>, vector<1x8x128xbf16>,
      %292 = arith.addf %269, %282 : vector<8x128xf32>
      %293 = arith.index_cast %285 : i32 to index
      %c0_231 = arith.constant 0 : index
      %c0_232 = arith.constant 0 : index
      %294 = vector.load %arg10[%293, %c0_231, %c0_232] : memref<16x8x128xf32, #tpu.memory_space<vmem>>, vector<1x8x128xf32>
      %295 = vector.shape_cast %294 : vector<1x8x128xf32> to vector<8x128xf32>
      %cst_233 = arith.constant 7.500000e-01 : f32
      %296 = vector.broadcast %cst_233 : f32 to vector<8x128xf32>
      %297 = arith.mulf %296, %275 : vector<8x128xf32>
      %298 = arith.addf %297, %295 : vector<8x128xf32>
      %cst_234 = arith.constant 9.687500e-01 : f32
      %299 = vector.broadcast %cst_234 : f32 to vector<8x128xf32>
      %300 = arith.mulf %299, %284 : vector<8x128xf32>
      %301 = arith.addf %300, %298 : vector<8x128xf32>
      %cst_235 = arith.constant 5.120000e+03 : f32
      %302 = vector.broadcast %cst_235 : f32 to vector<8x128xf32>
      %303 = arith.cmpf oge, %301, %302 : vector<8x128xf32>
      %304 = arith.extui %303 : vector<8x128xi1> to vector<8x128xi32>
      %305 = arith.sitofp %304 : vector<8x128xi32> to vector<8x128xf32>
      %cst_236 = arith.constant 0.000000e+00 : f32
      %306 = vector.broadcast %cst_236 : f32 to vector<8x128xf32>
      %307 = arith.select %303, %306, %301 : vector<8x128xi1>, vector<8x128xf32>
      %c7_i32 = arith.constant 7 : i32
      %308 = arith.addi %146, %c7_i32 : i32
      %309 = arith.truncf %305 : vector<8x128xf32> to vector<8x128xbf16>
      %c3_i32_237 = arith.constant 3 : i32
      %310 = arith.addi %c3_i32_237, %308 : i32
      %311 = arith.index_cast %310 : i32 to index
      %c0_238 = arith.constant 0 : index
      %c0_239 = arith.constant 0 : index
      %312 = vector.load %arg12[%311, %c0_238, %c0_239] : memref<19x8x128xbf16, #tpu.memory_space<vmem>>, vector<1x8x128xbf16>
      %313 = vector.shape_cast %312 : vector<1x8x128xbf16> to vector<8x128xbf16>
      %314 = vector.shape_cast %309 : vector<8x128xbf16> to vector<1x8x128xbf16>
      tpu.vector_store %arg12[%311, %c0_238, %c0_239], %314 {strides = array<i32>} : memref<19x8x128xbf16, #tpu.memory_space<vmem>>, vector<1x8x128xbf16>,
      %315 = arith.addf %292, %305 : vector<8x128xf32>
      %316 = arith.index_cast %308 : i32 to index
      %c0_240 = arith.constant 0 : index
      %c0_241 = arith.constant 0 : index
      %317 = vector.load %arg10[%316, %c0_240, %c0_241] : memref<16x8x128xf32, #tpu.memory_space<vmem>>, vector<1x8x128xf32>
      %318 = vector.shape_cast %317 : vector<1x8x128xf32> to vector<8x128xf32>
      %cst_242 = arith.constant 7.500000e-01 : f32
      %319 = vector.broadcast %cst_242 : f32 to vector<8x128xf32>
      %320 = arith.mulf %319, %298 : vector<8x128xf32>
      %321 = arith.addf %320, %318 : vector<8x128xf32>
      %cst_243 = arith.constant 9.687500e-01 : f32
      %322 = vector.broadcast %cst_243 : f32 to vector<8x128xf32>
      %323 = arith.mulf %322, %307 : vector<8x128xf32>
      %324 = arith.addf %323, %321 : vector<8x128xf32>
      %cst_244 = arith.constant 5.120000e+03 : f32
      %325 = vector.broadcast %cst_244 : f32 to vector<8x128xf32>
      %326 = arith.cmpf oge, %324, %325 : vector<8x128xf32>
      %327 = arith.extui %326 : vector<8x128xi1> to vector<8x128xi32>
      %328 = arith.sitofp %327 : vector<8x128xi32> to vector<8x128xf32>
      %cst_245 = arith.constant 0.000000e+00 : f32
      %329 = vector.broadcast %cst_245 : f32 to vector<8x128xf32>
      %330 = arith.select %326, %329, %324 : vector<8x128xi1>, vector<8x128xf32>
      scf.yield %321, %330, %328, %315 : vector<8x128xf32>, vector<8x128xf32>, vector<8x128xf32>, vector<8x128xf32>
    }
    %c2_i32_82 = arith.constant 2 : i32
    %c1_83 = arith.constant 1 : index
    %c0_84 = arith.constant 0 : index
    %c0_85 = arith.constant 0 : index
    %c0_86 = arith.constant 0 : index
    %72 = vector.load %arg13[%c1_83, %c0_84, %c0_85, %c0_86] : memref<3x3x8x128xf32, #tpu.memory_space<vmem>>, vector<1x1x8x128xf32>
    %73 = vector.shape_cast %72 : vector<1x1x8x128xf32> to vector<8x128xf32>
    %74 = vector.shape_cast %71#0 : vector<8x128xf32> to vector<1x1x8x128xf32>
    tpu.vector_store %arg13[%c1_83, %c0_84, %c0_85, %c0_86], %74 {strides = array<i32>} : memref<3x3x8x128xf32, #tpu.memory_space<vmem>>, vector<1x1x8x128xf32>,
    %c1_87 = arith.constant 1 : index
    %c1_88 = arith.constant 1 : index
    %c0_89 = arith.constant 0 : index
    %c0_90 = arith.constant 0 : index
    %75 = vector.load %arg13[%c1_87, %c1_88, %c0_89, %c0_90] : memref<3x3x8x128xf32, #tpu.memory_space<vmem>>, vector<1x1x8x128xf32>
    %76 = vector.shape_cast %75 : vector<1x1x8x128xf32> to vector<8x128xf32>
    %77 = vector.shape_cast %71#1 : vector<8x128xf32> to vector<1x1x8x128xf32>
    tpu.vector_store %arg13[%c1_87, %c1_88, %c0_89, %c0_90], %77 {strides = array<i32>} : memref<3x3x8x128xf32, #tpu.memory_space<vmem>>, vector<1x1x8x128xf32>,
    %c1_91 = arith.constant 1 : index
    %c2_92 = arith.constant 2 : index
    %c0_93 = arith.constant 0 : index
    %c0_94 = arith.constant 0 : index
    %78 = vector.load %arg13[%c1_91, %c2_92, %c0_93, %c0_94] : memref<3x3x8x128xf32, #tpu.memory_space<vmem>>, vector<1x1x8x128xf32>
    %79 = vector.shape_cast %78 : vector<1x1x8x128xf32> to vector<8x128xf32>
    %80 = vector.shape_cast %71#2 : vector<8x128xf32> to vector<1x1x8x128xf32>
    tpu.vector_store %arg13[%c1_91, %c2_92, %c0_93, %c0_94], %80 {strides = array<i32>} : memref<3x3x8x128xf32, #tpu.memory_space<vmem>>, vector<1x1x8x128xf32>,
    %c0_95 = arith.constant 0 : index
    %c1_96 = arith.constant 1 : index
    %c0_97 = arith.constant 0 : index
    %c0_98 = arith.constant 0 : index
    %81 = vector.load %arg9[%c0_95, %c1_96, %c0_97, %c0_98] : memref<1x3x8x128xf32, #tpu.memory_space<vmem>>, vector<1x1x8x128xf32>
    %82 = vector.shape_cast %81 : vector<1x1x8x128xf32> to vector<8x128xf32>
    %83 = arith.addf %82, %71#3 : vector<8x128xf32>
    %c0_99 = arith.constant 0 : index
    %c1_100 = arith.constant 1 : index
    %c0_101 = arith.constant 0 : index
    %c0_102 = arith.constant 0 : index
    %84 = vector.load %arg9[%c0_99, %c1_100, %c0_101, %c0_102] : memref<1x3x8x128xf32, #tpu.memory_space<vmem>>, vector<1x1x8x128xf32>
    %85 = vector.shape_cast %84 : vector<1x1x8x128xf32> to vector<8x128xf32>
    %86 = vector.shape_cast %83 : vector<8x128xf32> to vector<1x1x8x128xf32>
    tpu.vector_store %arg9[%c0_99, %c1_100, %c0_101, %c0_102], %86 {strides = array<i32>} : memref<1x3x8x128xf32, #tpu.memory_space<vmem>>, vector<1x1x8x128xf32>,
    %c3_103 = arith.constant 3 : index
    %c0_104 = arith.constant 0 : index
    %c0_105 = arith.constant 0 : index
    %87 = vector.load %arg12[%c3_103, %c0_104, %c0_105] : memref<19x8x128xbf16, #tpu.memory_space<vmem>>, vector<16x8x128xbf16>
    %c2_106 = arith.constant 2 : index
    %c0_107 = arith.constant 0 : index
    %c0_108 = arith.constant 0 : index
    %88 = vector.load %arg12[%c2_106, %c0_107, %c0_108] : memref<19x8x128xbf16, #tpu.memory_space<vmem>>, vector<16x8x128xbf16>
    %c0_109 = arith.constant 0 : index
    %c0_110 = arith.constant 0 : index
    %89 = vector.load %arg7[%c0_109, %c0_110] : memref<1x128xi32, #tpu.memory_space<vmem>>, vector<1x128xi32>
    %c1_i32_111 = arith.constant 1 : i32
    %90 = vector.broadcast %c1_i32_111 : i32 to vector<1x128xi32>
    %91 = arith.cmpi eq, %89, %90 : vector<1x128xi32>
    %92 = vector.shape_cast %91 : vector<1x128xi1> to vector<1x1x128xi1>
    %93 = vector.shape_cast %92 : vector<1x1x128xi1> to vector<1x1x128xi1>
    %94 = vector.broadcast %93 : vector<1x1x128xi1> to vector<16x8x128xi1>
    %95 = arith.select %94, %88, %87 : vector<16x8x128xi1>, vector<16x8x128xbf16>
    %c1_112 = arith.constant 1 : index
    %c0_113 = arith.constant 0 : index
    %c0_114 = arith.constant 0 : index
    %96 = vector.load %arg12[%c1_112, %c0_113, %c0_114] : memref<19x8x128xbf16, #tpu.memory_space<vmem>>, vector<16x8x128xbf16>
    %c0_115 = arith.constant 0 : index
    %c0_116 = arith.constant 0 : index
    %97 = vector.load %arg7[%c0_115, %c0_116] : memref<1x128xi32, #tpu.memory_space<vmem>>, vector<1x128xi32>
    %c2_i32_117 = arith.constant 2 : i32
    %98 = vector.broadcast %c2_i32_117 : i32 to vector<1x128xi32>
    %99 = arith.cmpi eq, %97, %98 : vector<1x128xi32>
    %100 = vector.shape_cast %99 : vector<1x128xi1> to vector<1x1x128xi1>
    %101 = vector.shape_cast %100 : vector<1x1x128xi1> to vector<1x1x128xi1>
    %102 = vector.broadcast %101 : vector<1x1x128xi1> to vector<16x8x128xi1>
    %103 = arith.select %102, %96, %95 : vector<16x8x128xi1>, vector<16x8x128xbf16>
    %c0_118 = arith.constant 0 : index
    %c0_119 = arith.constant 0 : index
    %c0_120 = arith.constant 0 : index
    %104 = vector.load %arg12[%c0_118, %c0_119, %c0_120] : memref<19x8x128xbf16, #tpu.memory_space<vmem>>, vector<16x8x128xbf16>
    %c0_121 = arith.constant 0 : index
    %c0_122 = arith.constant 0 : index
    %105 = vector.load %arg7[%c0_121, %c0_122] : memref<1x128xi32, #tpu.memory_space<vmem>>, vector<1x128xi32>
    %c3_i32_123 = arith.constant 3 : i32
    %106 = vector.broadcast %c3_i32_123 : i32 to vector<1x128xi32>
    %107 = arith.cmpi eq, %105, %106 : vector<1x128xi32>
    %108 = vector.shape_cast %107 : vector<1x128xi1> to vector<1x1x128xi1>
    %109 = vector.shape_cast %108 : vector<1x1x128xi1> to vector<1x1x128xi1>
    %110 = vector.broadcast %109 : vector<1x1x128xi1> to vector<16x8x128xi1>
    %111 = arith.select %110, %104, %103 : vector<16x8x128xi1>, vector<16x8x128xbf16>
    %112 = vector.shape_cast %111 : vector<16x8x128xbf16> to vector<128x128xbf16>
    %c0_124 = arith.constant 0 : index
    %c0_125 = arith.constant 0 : index
    %113 = vector.load %arg5[%c0_124, %c0_125] : memref<128x128xbf16, #tpu.memory_space<vmem>>, vector<128x128xbf16>
    %cst_126 = arith.constant dense<0.000000e+00> : vector<128x128xf32>
    %114 = tpu.matmul %112, %113, %cst_126 {dimension_numbers = #tpu.dot_dimension_numbers<[1], [0], [0], [1], [0, 0, 1, 1], [], []>} : vector<128x128xbf16>, vector<128x128xbf16>, vector<128x128xf32> -> vector<128x128xf32>
    %115 = vector.shape_cast %114 : vector<128x128xf32> to vector<16x8x128xf32>
    %c0_127 = arith.constant 0 : index
    %c0_128 = arith.constant 0 : index
    %c0_129 = arith.constant 0 : index
    %116 = vector.load %arg10[%c0_127, %c0_128, %c0_129] : memref<16x8x128xf32, #tpu.memory_space<vmem>>, vector<16x8x128xf32>
    tpu.vector_store %arg10[%c0_127, %c0_128, %c0_129], %115 {strides = array<i32>} : memref<16x8x128xf32, #tpu.memory_space<vmem>>, vector<16x8x128xf32>,
    %c2_130 = arith.constant 2 : index
    %c0_131 = arith.constant 0 : index
    %c0_132 = arith.constant 0 : index
    %c0_133 = arith.constant 0 : index
    %117 = vector.load %arg13[%c2_130, %c0_131, %c0_132, %c0_133] : memref<3x3x8x128xf32, #tpu.memory_space<vmem>>, vector<1x1x8x128xf32>
    %118 = vector.shape_cast %117 : vector<1x1x8x128xf32> to vector<8x128xf32>
    %c2_134 = arith.constant 2 : index
    %c1_135 = arith.constant 1 : index
    %c0_136 = arith.constant 0 : index
    %c0_137 = arith.constant 0 : index
    %119 = vector.load %arg13[%c2_134, %c1_135, %c0_136, %c0_137] : memref<3x3x8x128xf32, #tpu.memory_space<vmem>>, vector<1x1x8x128xf32>
    %120 = vector.shape_cast %119 : vector<1x1x8x128xf32> to vector<8x128xf32>
    %c2_138 = arith.constant 2 : index
    %c2_139 = arith.constant 2 : index
    %c0_140 = arith.constant 0 : index
    %c0_141 = arith.constant 0 : index
    %121 = vector.load %arg13[%c2_138, %c2_139, %c0_140, %c0_141] : memref<3x3x8x128xf32, #tpu.memory_space<vmem>>, vector<1x1x8x128xf32>
    %122 = vector.shape_cast %121 : vector<1x1x8x128xf32> to vector<8x128xf32>
    %cst_142 = arith.constant 0.000000e+00 : f32
    %123 = vector.broadcast %cst_142 : f32 to vector<8x128xf32>
    %c0_i32_143 = arith.constant 0 : i32
    %c2_i32_144 = arith.constant 2 : i32
    %124 = arith.addi %c0_i32_143, %c2_i32_144 : i32
    %c1_i32_145 = arith.constant 1 : i32
    %125:4 = scf.for %arg14 = %c0_i32_143 to %124 step %c1_i32_145 iter_args(%arg15 = %118, %arg16 = %120, %arg17 = %122, %arg18 = %123) -> (vector<8x128xf32>, vector<8x128xf32>, vector<8x128xf32>, vector<8x128xf32>)  : i32 {
      %c8_i32 = arith.constant 8 : i32
      %145 = arith.muli %arg14, %c8_i32 : i32
      %146 = tpu.assume_multiple %145, 8 : i32
      %c0_i32_170 = arith.constant 0 : i32
      %147 = arith.addi %146, %c0_i32_170 : i32
      %148 = arith.truncf %arg17 : vector<8x128xf32> to vector<8x128xbf16>
      %149 = arith.index_cast %147 : i32 to index
      %c0_171 = arith.constant 0 : index
      %c0_172 = arith.constant 0 : index
      %150 = vector.load %arg8[%149, %c0_171, %c0_172] : memref<16x8x128xbf16, #tpu.memory_space<vmem>>, vector<1x8x128xbf16>
      %151 = vector.shape_cast %150 : vector<1x8x128xbf16> to vector<8x128xbf16>
      %152 = vector.shape_cast %148 : vector<8x128xbf16> to vector<1x8x128xbf16>
      tpu.vector_store %arg8[%149, %c0_171, %c0_172], %152 {strides = array<i32>} : memref<16x8x128xbf16, #tpu.memory_space<vmem>>, vector<1x8x128xbf16>,
      %153 = arith.addf %arg18, %arg17 : vector<8x128xf32>
      %154 = arith.index_cast %147 : i32 to index
      %c0_173 = arith.constant 0 : index
      %c0_174 = arith.constant 0 : index
      %155 = vector.load %arg10[%154, %c0_173, %c0_174] : memref<16x8x128xf32, #tpu.memory_space<vmem>>, vector<1x8x128xf32>
      %156 = vector.shape_cast %155 : vector<1x8x128xf32> to vector<8x128xf32>
      %cst_175 = arith.constant 7.500000e-01 : f32
      %157 = vector.broadcast %cst_175 : f32 to vector<8x128xf32>
      %158 = arith.mulf %157, %arg15 : vector<8x128xf32>
      %159 = arith.addf %158, %156 : vector<8x128xf32>
      %cst_176 = arith.constant 9.687500e-01 : f32
      %160 = vector.broadcast %cst_176 : f32 to vector<8x128xf32>
      %161 = arith.mulf %160, %arg16 : vector<8x128xf32>
      %162 = arith.addf %161, %159 : vector<8x128xf32>
      %cst_177 = arith.constant 5.120000e+03 : f32
      %163 = vector.broadcast %cst_177 : f32 to vector<8x128xf32>
      %164 = arith.cmpf oge, %162, %163 : vector<8x128xf32>
      %165 = arith.extui %164 : vector<8x128xi1> to vector<8x128xi32>
      %166 = arith.sitofp %165 : vector<8x128xi32> to vector<8x128xf32>
      %cst_178 = arith.constant 0.000000e+00 : f32
      %167 = vector.broadcast %cst_178 : f32 to vector<8x128xf32>
      %168 = arith.select %164, %167, %162 : vector<8x128xi1>, vector<8x128xf32>
      %c1_i32_179 = arith.constant 1 : i32
      %169 = arith.addi %146, %c1_i32_179 : i32
      %170 = arith.truncf %166 : vector<8x128xf32> to vector<8x128xbf16>
      %171 = arith.index_cast %169 : i32 to index
      %c0_180 = arith.constant 0 : index
      %c0_181 = arith.constant 0 : index
      %172 = vector.load %arg8[%171, %c0_180, %c0_181] : memref<16x8x128xbf16, #tpu.memory_space<vmem>>, vector<1x8x128xbf16>
      %173 = vector.shape_cast %172 : vector<1x8x128xbf16> to vector<8x128xbf16>
      %174 = vector.shape_cast %170 : vector<8x128xbf16> to vector<1x8x128xbf16>
      tpu.vector_store %arg8[%171, %c0_180, %c0_181], %174 {strides = array<i32>} : memref<16x8x128xbf16, #tpu.memory_space<vmem>>, vector<1x8x128xbf16>,
      %175 = arith.addf %153, %166 : vector<8x128xf32>
      %176 = arith.index_cast %169 : i32 to index
      %c0_182 = arith.constant 0 : index
      %c0_183 = arith.constant 0 : index
      %177 = vector.load %arg10[%176, %c0_182, %c0_183] : memref<16x8x128xf32, #tpu.memory_space<vmem>>, vector<1x8x128xf32>
      %178 = vector.shape_cast %177 : vector<1x8x128xf32> to vector<8x128xf32>
      %cst_184 = arith.constant 7.500000e-01 : f32
      %179 = vector.broadcast %cst_184 : f32 to vector<8x128xf32>
      %180 = arith.mulf %179, %159 : vector<8x128xf32>
      %181 = arith.addf %180, %178 : vector<8x128xf32>
      %cst_185 = arith.constant 9.687500e-01 : f32
      %182 = vector.broadcast %cst_185 : f32 to vector<8x128xf32>
      %183 = arith.mulf %182, %168 : vector<8x128xf32>
      %184 = arith.addf %183, %181 : vector<8x128xf32>
      %cst_186 = arith.constant 5.120000e+03 : f32
      %185 = vector.broadcast %cst_186 : f32 to vector<8x128xf32>
      %186 = arith.cmpf oge, %184, %185 : vector<8x128xf32>
      %187 = arith.extui %186 : vector<8x128xi1> to vector<8x128xi32>
      %188 = arith.sitofp %187 : vector<8x128xi32> to vector<8x128xf32>
      %cst_187 = arith.constant 0.000000e+00 : f32
      %189 = vector.broadcast %cst_187 : f32 to vector<8x128xf32>
      %190 = arith.select %186, %189, %184 : vector<8x128xi1>, vector<8x128xf32>
      %c2_i32_188 = arith.constant 2 : i32
      %191 = arith.addi %146, %c2_i32_188 : i32
      %192 = arith.truncf %188 : vector<8x128xf32> to vector<8x128xbf16>
      %193 = arith.index_cast %191 : i32 to index
      %c0_189 = arith.constant 0 : index
      %c0_190 = arith.constant 0 : index
      %194 = vector.load %arg8[%193, %c0_189, %c0_190] : memref<16x8x128xbf16, #tpu.memory_space<vmem>>, vector<1x8x128xbf16>
      %195 = vector.shape_cast %194 : vector<1x8x128xbf16> to vector<8x128xbf16>
      %196 = vector.shape_cast %192 : vector<8x128xbf16> to vector<1x8x128xbf16>
      tpu.vector_store %arg8[%193, %c0_189, %c0_190], %196 {strides = array<i32>} : memref<16x8x128xbf16, #tpu.memory_space<vmem>>, vector<1x8x128xbf16>,
      %197 = arith.addf %175, %188 : vector<8x128xf32>
      %198 = arith.index_cast %191 : i32 to index
      %c0_191 = arith.constant 0 : index
      %c0_192 = arith.constant 0 : index
      %199 = vector.load %arg10[%198, %c0_191, %c0_192] : memref<16x8x128xf32, #tpu.memory_space<vmem>>, vector<1x8x128xf32>
      %200 = vector.shape_cast %199 : vector<1x8x128xf32> to vector<8x128xf32>
      %cst_193 = arith.constant 7.500000e-01 : f32
      %201 = vector.broadcast %cst_193 : f32 to vector<8x128xf32>
      %202 = arith.mulf %201, %181 : vector<8x128xf32>
      %203 = arith.addf %202, %200 : vector<8x128xf32>
      %cst_194 = arith.constant 9.687500e-01 : f32
      %204 = vector.broadcast %cst_194 : f32 to vector<8x128xf32>
      %205 = arith.mulf %204, %190 : vector<8x128xf32>
      %206 = arith.addf %205, %203 : vector<8x128xf32>
      %cst_195 = arith.constant 5.120000e+03 : f32
      %207 = vector.broadcast %cst_195 : f32 to vector<8x128xf32>
      %208 = arith.cmpf oge, %206, %207 : vector<8x128xf32>
      %209 = arith.extui %208 : vector<8x128xi1> to vector<8x128xi32>
      %210 = arith.sitofp %209 : vector<8x128xi32> to vector<8x128xf32>
      %cst_196 = arith.constant 0.000000e+00 : f32
      %211 = vector.broadcast %cst_196 : f32 to vector<8x128xf32>
      %212 = arith.select %208, %211, %206 : vector<8x128xi1>, vector<8x128xf32>
      %c3_i32_197 = arith.constant 3 : i32
      %213 = arith.addi %146, %c3_i32_197 : i32
      %214 = arith.truncf %210 : vector<8x128xf32> to vector<8x128xbf16>
      %215 = arith.index_cast %213 : i32 to index
      %c0_198 = arith.constant 0 : index
      %c0_199 = arith.constant 0 : index
      %216 = vector.load %arg8[%215, %c0_198, %c0_199] : memref<16x8x128xbf16, #tpu.memory_space<vmem>>, vector<1x8x128xbf16>
      %217 = vector.shape_cast %216 : vector<1x8x128xbf16> to vector<8x128xbf16>
      %218 = vector.shape_cast %214 : vector<8x128xbf16> to vector<1x8x128xbf16>
      tpu.vector_store %arg8[%215, %c0_198, %c0_199], %218 {strides = array<i32>} : memref<16x8x128xbf16, #tpu.memory_space<vmem>>, vector<1x8x128xbf16>,
      %219 = arith.addf %197, %210 : vector<8x128xf32>
      %220 = arith.index_cast %213 : i32 to index
      %c0_200 = arith.constant 0 : index
      %c0_201 = arith.constant 0 : index
      %221 = vector.load %arg10[%220, %c0_200, %c0_201] : memref<16x8x128xf32, #tpu.memory_space<vmem>>, vector<1x8x128xf32>
      %222 = vector.shape_cast %221 : vector<1x8x128xf32> to vector<8x128xf32>
      %cst_202 = arith.constant 7.500000e-01 : f32
      %223 = vector.broadcast %cst_202 : f32 to vector<8x128xf32>
      %224 = arith.mulf %223, %203 : vector<8x128xf32>
      %225 = arith.addf %224, %222 : vector<8x128xf32>
      %cst_203 = arith.constant 9.687500e-01 : f32
      %226 = vector.broadcast %cst_203 : f32 to vector<8x128xf32>
      %227 = arith.mulf %226, %212 : vector<8x128xf32>
      %228 = arith.addf %227, %225 : vector<8x128xf32>
      %cst_204 = arith.constant 5.120000e+03 : f32
      %229 = vector.broadcast %cst_204 : f32 to vector<8x128xf32>
      %230 = arith.cmpf oge, %228, %229 : vector<8x128xf32>
      %231 = arith.extui %230 : vector<8x128xi1> to vector<8x128xi32>
      %232 = arith.sitofp %231 : vector<8x128xi32> to vector<8x128xf32>
      %cst_205 = arith.constant 0.000000e+00 : f32
      %233 = vector.broadcast %cst_205 : f32 to vector<8x128xf32>
      %234 = arith.select %230, %233, %228 : vector<8x128xi1>, vector<8x128xf32>
      %c4_i32 = arith.constant 4 : i32
      %235 = arith.addi %146, %c4_i32 : i32
      %236 = arith.truncf %232 : vector<8x128xf32> to vector<8x128xbf16>
      %237 = arith.index_cast %235 : i32 to index
      %c0_206 = arith.constant 0 : index
      %c0_207 = arith.constant 0 : index
      %238 = vector.load %arg8[%237, %c0_206, %c0_207] : memref<16x8x128xbf16, #tpu.memory_space<vmem>>, vector<1x8x128xbf16>
      %239 = vector.shape_cast %238 : vector<1x8x128xbf16> to vector<8x128xbf16>
      %240 = vector.shape_cast %236 : vector<8x128xbf16> to vector<1x8x128xbf16>
      tpu.vector_store %arg8[%237, %c0_206, %c0_207], %240 {strides = array<i32>} : memref<16x8x128xbf16, #tpu.memory_space<vmem>>, vector<1x8x128xbf16>,
      %241 = arith.addf %219, %232 : vector<8x128xf32>
      %242 = arith.index_cast %235 : i32 to index
      %c0_208 = arith.constant 0 : index
      %c0_209 = arith.constant 0 : index
      %243 = vector.load %arg10[%242, %c0_208, %c0_209] : memref<16x8x128xf32, #tpu.memory_space<vmem>>, vector<1x8x128xf32>
      %244 = vector.shape_cast %243 : vector<1x8x128xf32> to vector<8x128xf32>
      %cst_210 = arith.constant 7.500000e-01 : f32
      %245 = vector.broadcast %cst_210 : f32 to vector<8x128xf32>
      %246 = arith.mulf %245, %225 : vector<8x128xf32>
      %247 = arith.addf %246, %244 : vector<8x128xf32>
      %cst_211 = arith.constant 9.687500e-01 : f32
      %248 = vector.broadcast %cst_211 : f32 to vector<8x128xf32>
      %249 = arith.mulf %248, %234 : vector<8x128xf32>
      %250 = arith.addf %249, %247 : vector<8x128xf32>
      %cst_212 = arith.constant 5.120000e+03 : f32
      %251 = vector.broadcast %cst_212 : f32 to vector<8x128xf32>
      %252 = arith.cmpf oge, %250, %251 : vector<8x128xf32>
      %253 = arith.extui %252 : vector<8x128xi1> to vector<8x128xi32>
      %254 = arith.sitofp %253 : vector<8x128xi32> to vector<8x128xf32>
      %cst_213 = arith.constant 0.000000e+00 : f32
      %255 = vector.broadcast %cst_213 : f32 to vector<8x128xf32>
      %256 = arith.select %252, %255, %250 : vector<8x128xi1>, vector<8x128xf32>
      %c5_i32 = arith.constant 5 : i32
      %257 = arith.addi %146, %c5_i32 : i32
      %258 = arith.truncf %254 : vector<8x128xf32> to vector<8x128xbf16>
      %259 = arith.index_cast %257 : i32 to index
      %c0_214 = arith.constant 0 : index
      %c0_215 = arith.constant 0 : index
      %260 = vector.load %arg8[%259, %c0_214, %c0_215] : memref<16x8x128xbf16, #tpu.memory_space<vmem>>, vector<1x8x128xbf16>
      %261 = vector.shape_cast %260 : vector<1x8x128xbf16> to vector<8x128xbf16>
      %262 = vector.shape_cast %258 : vector<8x128xbf16> to vector<1x8x128xbf16>
      tpu.vector_store %arg8[%259, %c0_214, %c0_215], %262 {strides = array<i32>} : memref<16x8x128xbf16, #tpu.memory_space<vmem>>, vector<1x8x128xbf16>,
      %263 = arith.addf %241, %254 : vector<8x128xf32>
      %264 = arith.index_cast %257 : i32 to index
      %c0_216 = arith.constant 0 : index
      %c0_217 = arith.constant 0 : index
      %265 = vector.load %arg10[%264, %c0_216, %c0_217] : memref<16x8x128xf32, #tpu.memory_space<vmem>>, vector<1x8x128xf32>
      %266 = vector.shape_cast %265 : vector<1x8x128xf32> to vector<8x128xf32>
      %cst_218 = arith.constant 7.500000e-01 : f32
      %267 = vector.broadcast %cst_218 : f32 to vector<8x128xf32>
      %268 = arith.mulf %267, %247 : vector<8x128xf32>
      %269 = arith.addf %268, %266 : vector<8x128xf32>
      %cst_219 = arith.constant 9.687500e-01 : f32
      %270 = vector.broadcast %cst_219 : f32 to vector<8x128xf32>
      %271 = arith.mulf %270, %256 : vector<8x128xf32>
      %272 = arith.addf %271, %269 : vector<8x128xf32>
      %cst_220 = arith.constant 5.120000e+03 : f32
      %273 = vector.broadcast %cst_220 : f32 to vector<8x128xf32>
      %274 = arith.cmpf oge, %272, %273 : vector<8x128xf32>
      %275 = arith.extui %274 : vector<8x128xi1> to vector<8x128xi32>
      %276 = arith.sitofp %275 : vector<8x128xi32> to vector<8x128xf32>
      %cst_221 = arith.constant 0.000000e+00 : f32
      %277 = vector.broadcast %cst_221 : f32 to vector<8x128xf32>
      %278 = arith.select %274, %277, %272 : vector<8x128xi1>, vector<8x128xf32>
      %c6_i32 = arith.constant 6 : i32
      %279 = arith.addi %146, %c6_i32 : i32
      %280 = arith.truncf %276 : vector<8x128xf32> to vector<8x128xbf16>
      %281 = arith.index_cast %279 : i32 to index
      %c0_222 = arith.constant 0 : index
      %c0_223 = arith.constant 0 : index
      %282 = vector.load %arg8[%281, %c0_222, %c0_223] : memref<16x8x128xbf16, #tpu.memory_space<vmem>>, vector<1x8x128xbf16>
      %283 = vector.shape_cast %282 : vector<1x8x128xbf16> to vector<8x128xbf16>
      %284 = vector.shape_cast %280 : vector<8x128xbf16> to vector<1x8x128xbf16>
      tpu.vector_store %arg8[%281, %c0_222, %c0_223], %284 {strides = array<i32>} : memref<16x8x128xbf16, #tpu.memory_space<vmem>>, vector<1x8x128xbf16>,
      %285 = arith.addf %263, %276 : vector<8x128xf32>
      %286 = arith.index_cast %279 : i32 to index
      %c0_224 = arith.constant 0 : index
      %c0_225 = arith.constant 0 : index
      %287 = vector.load %arg10[%286, %c0_224, %c0_225] : memref<16x8x128xf32, #tpu.memory_space<vmem>>, vector<1x8x128xf32>
      %288 = vector.shape_cast %287 : vector<1x8x128xf32> to vector<8x128xf32>
      %cst_226 = arith.constant 7.500000e-01 : f32
      %289 = vector.broadcast %cst_226 : f32 to vector<8x128xf32>
      %290 = arith.mulf %289, %269 : vector<8x128xf32>
      %291 = arith.addf %290, %288 : vector<8x128xf32>
      %cst_227 = arith.constant 9.687500e-01 : f32
      %292 = vector.broadcast %cst_227 : f32 to vector<8x128xf32>
      %293 = arith.mulf %292, %278 : vector<8x128xf32>
      %294 = arith.addf %293, %291 : vector<8x128xf32>
      %cst_228 = arith.constant 5.120000e+03 : f32
      %295 = vector.broadcast %cst_228 : f32 to vector<8x128xf32>
      %296 = arith.cmpf oge, %294, %295 : vector<8x128xf32>
      %297 = arith.extui %296 : vector<8x128xi1> to vector<8x128xi32>
      %298 = arith.sitofp %297 : vector<8x128xi32> to vector<8x128xf32>
      %cst_229 = arith.constant 0.000000e+00 : f32
      %299 = vector.broadcast %cst_229 : f32 to vector<8x128xf32>
      %300 = arith.select %296, %299, %294 : vector<8x128xi1>, vector<8x128xf32>
      %c7_i32 = arith.constant 7 : i32
      %301 = arith.addi %146, %c7_i32 : i32
      %302 = arith.truncf %298 : vector<8x128xf32> to vector<8x128xbf16>
      %303 = arith.index_cast %301 : i32 to index
      %c0_230 = arith.constant 0 : index
      %c0_231 = arith.constant 0 : index
      %304 = vector.load %arg8[%303, %c0_230, %c0_231] : memref<16x8x128xbf16, #tpu.memory_space<vmem>>, vector<1x8x128xbf16>
      %305 = vector.shape_cast %304 : vector<1x8x128xbf16> to vector<8x128xbf16>
      %306 = vector.shape_cast %302 : vector<8x128xbf16> to vector<1x8x128xbf16>
      tpu.vector_store %arg8[%303, %c0_230, %c0_231], %306 {strides = array<i32>} : memref<16x8x128xbf16, #tpu.memory_space<vmem>>, vector<1x8x128xbf16>,
      %307 = arith.addf %285, %298 : vector<8x128xf32>
      %308 = arith.index_cast %301 : i32 to index
      %c0_232 = arith.constant 0 : index
      %c0_233 = arith.constant 0 : index
      %309 = vector.load %arg10[%308, %c0_232, %c0_233] : memref<16x8x128xf32, #tpu.memory_space<vmem>>, vector<1x8x128xf32>
      %310 = vector.shape_cast %309 : vector<1x8x128xf32> to vector<8x128xf32>
      %cst_234 = arith.constant 7.500000e-01 : f32
      %311 = vector.broadcast %cst_234 : f32 to vector<8x128xf32>
      %312 = arith.mulf %311, %291 : vector<8x128xf32>
      %313 = arith.addf %312, %310 : vector<8x128xf32>
      %cst_235 = arith.constant 9.687500e-01 : f32
      %314 = vector.broadcast %cst_235 : f32 to vector<8x128xf32>
      %315 = arith.mulf %314, %300 : vector<8x128xf32>
      %316 = arith.addf %315, %313 : vector<8x128xf32>
      %cst_236 = arith.constant 5.120000e+03 : f32
      %317 = vector.broadcast %cst_236 : f32 to vector<8x128xf32>
      %318 = arith.cmpf oge, %316, %317 : vector<8x128xf32>
      %319 = arith.extui %318 : vector<8x128xi1> to vector<8x128xi32>
      %320 = arith.sitofp %319 : vector<8x128xi32> to vector<8x128xf32>
      %cst_237 = arith.constant 0.000000e+00 : f32
      %321 = vector.broadcast %cst_237 : f32 to vector<8x128xf32>
      %322 = arith.select %318, %321, %316 : vector<8x128xi1>, vector<8x128xf32>
      scf.yield %313, %322, %320, %307 : vector<8x128xf32>, vector<8x128xf32>, vector<8x128xf32>, vector<8x128xf32>
    }
    %c2_i32_146 = arith.constant 2 : i32
    %c2_147 = arith.constant 2 : index
    %c0_148 = arith.constant 0 : index
    %c0_149 = arith.constant 0 : index
    %c0_150 = arith.constant 0 : index
    %126 = vector.load %arg13[%c2_147, %c0_148, %c0_149, %c0_150] : memref<3x3x8x128xf32, #tpu.memory_space<vmem>>, vector<1x1x8x128xf32>
    %127 = vector.shape_cast %126 : vector<1x1x8x128xf32> to vector<8x128xf32>
    %128 = vector.shape_cast %125#0 : vector<8x128xf32> to vector<1x1x8x128xf32>
    tpu.vector_store %arg13[%c2_147, %c0_148, %c0_149, %c0_150], %128 {strides = array<i32>} : memref<3x3x8x128xf32, #tpu.memory_space<vmem>>, vector<1x1x8x128xf32>,
    %c2_151 = arith.constant 2 : index
    %c1_152 = arith.constant 1 : index
    %c0_153 = arith.constant 0 : index
    %c0_154 = arith.constant 0 : index
    %129 = vector.load %arg13[%c2_151, %c1_152, %c0_153, %c0_154] : memref<3x3x8x128xf32, #tpu.memory_space<vmem>>, vector<1x1x8x128xf32>
    %130 = vector.shape_cast %129 : vector<1x1x8x128xf32> to vector<8x128xf32>
    %131 = vector.shape_cast %125#1 : vector<8x128xf32> to vector<1x1x8x128xf32>
    tpu.vector_store %arg13[%c2_151, %c1_152, %c0_153, %c0_154], %131 {strides = array<i32>} : memref<3x3x8x128xf32, #tpu.memory_space<vmem>>, vector<1x1x8x128xf32>,
    %c2_155 = arith.constant 2 : index
    %c2_156 = arith.constant 2 : index
    %c0_157 = arith.constant 0 : index
    %c0_158 = arith.constant 0 : index
    %132 = vector.load %arg13[%c2_155, %c2_156, %c0_157, %c0_158] : memref<3x3x8x128xf32, #tpu.memory_space<vmem>>, vector<1x1x8x128xf32>
    %133 = vector.shape_cast %132 : vector<1x1x8x128xf32> to vector<8x128xf32>
    %134 = vector.shape_cast %125#2 : vector<8x128xf32> to vector<1x1x8x128xf32>
    tpu.vector_store %arg13[%c2_155, %c2_156, %c0_157, %c0_158], %134 {strides = array<i32>} : memref<3x3x8x128xf32, #tpu.memory_space<vmem>>, vector<1x1x8x128xf32>,
    %c0_159 = arith.constant 0 : index
    %c2_160 = arith.constant 2 : index
    %c0_161 = arith.constant 0 : index
    %c0_162 = arith.constant 0 : index
    %135 = vector.load %arg9[%c0_159, %c2_160, %c0_161, %c0_162] : memref<1x3x8x128xf32, #tpu.memory_space<vmem>>, vector<1x1x8x128xf32>
    %136 = vector.shape_cast %135 : vector<1x1x8x128xf32> to vector<8x128xf32>
    %137 = arith.addf %136, %125#3 : vector<8x128xf32>
    %c0_163 = arith.constant 0 : index
    %c2_164 = arith.constant 2 : index
    %c0_165 = arith.constant 0 : index
    %c0_166 = arith.constant 0 : index
    %138 = vector.load %arg9[%c0_163, %c2_164, %c0_165, %c0_166] : memref<1x3x8x128xf32, #tpu.memory_space<vmem>>, vector<1x1x8x128xf32>
    %139 = vector.shape_cast %138 : vector<1x1x8x128xf32> to vector<8x128xf32>
    %140 = vector.shape_cast %137 : vector<8x128xf32> to vector<1x1x8x128xf32>
    tpu.vector_store %arg9[%c0_163, %c2_164, %c0_165, %c0_166], %140 {strides = array<i32>} : memref<1x3x8x128xf32, #tpu.memory_space<vmem>>, vector<1x1x8x128xf32>,
    %c1_i32_167 = arith.constant 1 : i32
    %141 = arith.addi %arg1, %c1_i32_167 : i32
    %c1_i32_168 = arith.constant 1 : i32
    %142 = arith.cmpi slt, %141, %c1_i32_168 : i32
    %143 = arith.extui %142 : i1 to i32
    %c0_i32_169 = arith.constant 0 : i32
    %144 = arith.cmpi ne, %143, %c0_i32_169 : i32
    scf.if %144 {
      %c16 = arith.constant 16 : index
      %c0_170 = arith.constant 0 : index
      %c0_171 = arith.constant 0 : index
      %145 = vector.load %arg11[%c16, %c0_170, %c0_171] : memref<19x8x128xbf16, #tpu.memory_space<vmem>>, vector<3x8x128xbf16>
      %c0_172 = arith.constant 0 : index
      %c0_173 = arith.constant 0 : index
      %c0_174 = arith.constant 0 : index
      %146 = vector.load %arg11[%c0_172, %c0_173, %c0_174] : memref<19x8x128xbf16, #tpu.memory_space<vmem>>, vector<3x8x128xbf16>
      tpu.vector_store %arg11[%c0_172, %c0_173, %c0_174], %145 {strides = array<i32>} : memref<19x8x128xbf16, #tpu.memory_space<vmem>>, vector<3x8x128xbf16>,
      %c16_175 = arith.constant 16 : index
      %c0_176 = arith.constant 0 : index
      %c0_177 = arith.constant 0 : index
      %147 = vector.load %arg12[%c16_175, %c0_176, %c0_177] : memref<19x8x128xbf16, #tpu.memory_space<vmem>>, vector<3x8x128xbf16>
      %c0_178 = arith.constant 0 : index
      %c0_179 = arith.constant 0 : index
      %c0_180 = arith.constant 0 : index
      %148 = vector.load %arg12[%c0_178, %c0_179, %c0_180] : memref<19x8x128xbf16, #tpu.memory_space<vmem>>, vector<3x8x128xbf16>
      tpu.vector_store %arg12[%c0_178, %c0_179, %c0_180], %147 {strides = array<i32>} : memref<19x8x128xbf16, #tpu.memory_space<vmem>>, vector<3x8x128xbf16>,
    } else {
    }
    return
  }
  func.func @transform_0(%arg0: i32, %arg1: i32) -> (i32, i32, i32) {
    %c0_i32 = arith.constant 0 : i32
    %c0_i32_0 = arith.constant 0 : i32
    return %arg1, %arg0, %c0_i32 : i32, i32, i32
  }
  func.func @transform_1(%arg0: i32, %arg1: i32) -> (i32, i32) {
    %c0_i32 = arith.constant 0 : i32
    %c0_i32_0 = arith.constant 0 : i32
    %c0_i32_1 = arith.constant 0 : i32
    return %c0_i32, %c0_i32_0 : i32, i32
  }
  func.func @transform_2(%arg0: i32, %arg1: i32) -> (i32, i32) {
    %c0_i32 = arith.constant 0 : i32
    %c0_i32_0 = arith.constant 0 : i32
    %c0_i32_1 = arith.constant 0 : i32
    return %c0_i32, %c0_i32_0 : i32, i32
  }
  func.func @transform_3(%arg0: i32, %arg1: i32) -> (i32, i32) {
    %c0_i32 = arith.constant 0 : i32
    %c0_i32_0 = arith.constant 0 : i32
    %c0_i32_1 = arith.constant 0 : i32
    return %c0_i32, %c0_i32_0 : i32, i32
  }
  func.func @transform_4(%arg0: i32, %arg1: i32) -> (i32, i32) {
    %c0_i32 = arith.constant 0 : i32
    %c0_i32_0 = arith.constant 0 : i32
    %c0_i32_1 = arith.constant 0 : i32
    return %c0_i32, %c0_i32_0 : i32, i32
  }
  func.func @transform_5(%arg0: i32, %arg1: i32) -> (i32, i32) {
    %c0_i32 = arith.constant 0 : i32
    %c0_i32_0 = arith.constant 0 : i32
    %c0_i32_1 = arith.constant 0 : i32
    return %c0_i32, %c0_i32_0 : i32, i32
  }
  func.func @transform_6(%arg0: i32, %arg1: i32) -> (i32, i32, i32) {
    %c0_i32 = arith.constant 0 : i32
    %c0_i32_0 = arith.constant 0 : i32
    return %arg1, %arg0, %c0_i32 : i32, i32, i32
  }
  func.func @transform_7(%arg0: i32, %arg1: i32) -> (i32, i32, i32, i32) {
    %c0_i32 = arith.constant 0 : i32
    %c0_i32_0 = arith.constant 0 : i32
    %c0_i32_1 = arith.constant 0 : i32
    %c0_i32_2 = arith.constant 0 : i32
    return %arg0, %c0_i32, %c0_i32_0, %c0_i32_1 : i32, i32, i32, i32
  }
}

</mosaic_0001>

<llo_original>
// kernel: network_forward.1
$region0: #{network_forward.1}
  #allocation0 [shape = 'u32[]', space=smem, size = 0x4, offset = 0x4, fixed_abs, tag = 'smem constant byte address 0x4 - core index']
  #allocation1 [shape = 'u32[144,128]{1,0:T(1,128)}', space=vmem, size = 0x12000, scoped, tag = 'internal scratch']
  #allocation2 [shape = 'f32[16,8,128]{2,1,0:T(8,128)}', space=vmem, size = 0x10000, scoped, tag = 'scratch operand']
  #allocation3 [shape = 'bf16[19,8,128]{2,1,0:T(8,128)(2,1)}', space=vmem, size = 0x9800, scoped, tag = 'scratch operand']
  #allocation4 [shape = 'bf16[19,8,128]{2,1,0:T(8,128)(2,1)}', space=vmem, size = 0x9800, scoped, tag = 'scratch operand']
  #allocation5 [shape = 'f32[3,3,8,128]{3,2,1,0:T(8,128)}', space=vmem, size = 0x9000, scoped, tag = 'scratch operand']
  %s0 = inlined_call_operand.vmem [shape: bf16[16,8,128], index: 0, kind: input, shape index: {}]
  %s1 = inlined_call_operand.vmem [shape: bf16[128,128], index: 1, kind: input, shape index: {}]
  %s2 = inlined_call_operand.vmem [shape: bf16[128,128], index: 2, kind: input, shape index: {}]
  %s3 = inlined_call_operand.vmem [shape: bf16[128,128], index: 3, kind: input, shape index: {}]
  %s4 = inlined_call_operand.vmem [shape: s32[1,128], index: 4, kind: input, shape index: {}]
  %s5 = inlined_call_operand.vmem [shape: s32[1,128], index: 5, kind: input, shape index: {}]
  %s6 = inlined_call_operand.vmem [shape: bf16[16,8,128], index: 6, kind: output, shape index: {0}]
  %s7 = inlined_call_operand.vmem [shape: f32[1,3,8,128], index: 7, kind: output, shape index: {1}]
  %8 = xla_tuple %s6, %s7
  %s9 = sld [smem:[#allocation0]]
  $region71: #{network_forward.1} parent=0
    _
  %s11 = ssub.s32 1, %s9
  %s12 = scalar_select 0, %s11, %s9
  // Predicated region
  $region2: #{network_forward.1} parent=0 // pred_check
    _
  $region3: #{network_forward.1} parent=0 // pred_check_branch
    %14 = sbr.rel (0) target = $region5
  $region4: #{network_forward.1} parent=0 // pred_region
    _
  $region5: #{network_forward.1} parent=0 // pred_fallthru
    _
  // Predicated region
  $region6: #{network_forward.1} parent=0 // pred_check
    _
  $region7: #{network_forward.1} parent=0 // pred_check_branch
    %16 = sbr.rel (0) target = $region9
  $region8: #{network_forward.1} parent=0 // pred_region
    _
  $region9: #{network_forward.1} parent=0 // pred_fallthru
    _
  // Predicated region
  $region10: #{network_forward.1} parent=0 // pred_check
    _
  $region11: #{network_forward.1} parent=0 // pred_check_branch
    %18 = sbr.rel (0) target = $region13
  $region12: #{network_forward.1} parent=0 // pred_region
    _
  $region13: #{network_forward.1} parent=0 // pred_fallthru
    _
  // Predicated region
  $region14: #{network_forward.1} parent=0 // pred_check
    _
  $region15: #{network_forward.1} parent=0 // pred_check_branch
    %20 = sbr.rel (0) target = $region17
  $region16: #{network_forward.1} parent=0 // pred_region
    _
  $region17: #{network_forward.1} parent=0 // pred_fallthru
    _
  // Predicated region
  $region18: #{network_forward.1} parent=0 // pred_check
    _
  $region19: #{network_forward.1} parent=0 // pred_check_branch
    %22 = sbr.rel (0) target = $region21
  $region20: #{network_forward.1} parent=0 // pred_region
    _
  $region21: #{network_forward.1} parent=0 // pred_fallthru
    _
  // Predicated region
  $region22: #{network_forward.1} parent=0 // pred_check
    _
  $region23: #{network_forward.1} parent=0 // pred_check_branch
    %24 = sbr.rel (0) target = $region25
  $region24: #{network_forward.1} parent=0 // pred_region
    _
  $region25: #{network_forward.1} parent=0 // pred_fallthru
    _
  %p26 = scmp.eq.s32.totalorder 0, 0
  // Predicated region
  $region26: #{network_forward.1} parent=0 // pred_check
    %p27 = pneg %p26
  $region27: #{network_forward.1} parent=0 // pred_check_branch
    %29 = sbr.rel (%p27) target = $region29
  $region28: #{network_forward.1} parent=0 // pred_region
    %30 = vst [vmem:[%s7] sm:$0xff] 0.0
    %31 = vst [vmem:[%s7 + $0x8] sm:$0xff] 0.0
    %32 = vst [vmem:[%s7 + $0x10] sm:$0xff] 0.0
    %33 = vst [vmem:[#allocation5] sm:$0xff] 0.0
    %34 = vst [vmem:[#allocation5 + $0x8] sm:$0xff] 0.0
    %35 = vst [vmem:[#allocation5 + $0x10] sm:$0xff] 0.0
    %36 = vst [vmem:[#allocation5 + $0x18] sm:$0xff] 0.0
    %37 = vst [vmem:[#allocation5 + $0x20] sm:$0xff] 0.0
    %38 = vst [vmem:[#allocation5 + $0x28] sm:$0xff] 0.0
    %39 = vst [vmem:[#allocation5 + $0x30] sm:$0xff] 0.0
    %40 = vst [vmem:[#allocation5 + $0x38] sm:$0xff] 0.0
    %41 = vst [vmem:[#allocation5 + $0x40] sm:$0xff] 0.0
    %42 = vst [vmem:[#allocation3] sm:$0xf] 0
    %43 = vst [vmem:[#allocation3 + $0x4] sm:$0xf] 0
    %44 = vst [vmem:[#allocation3 + $0x8] sm:$0xf] 0
    %45 = vst [vmem:[#allocation4] sm:$0xf] 0
    %46 = vst [vmem:[#allocation4 + $0x4] sm:$0xf] 0
    %47 = vst [vmem:[#allocation4 + $0x8] sm:$0xf] 0
  $region29: #{network_forward.1} parent=0 // pred_fallthru
    _
  %v48 = vld [vmem:[%s0] sm:$0xf]
  %v49 = vld [vmem:[%s0 + $0x4] sm:$0xf]
  %v50 = vld [vmem:[%s0 + $0x8] sm:$0xf]
  %v51 = vld [vmem:[%s0 + $0xc] sm:$0xf]
  %v52 = vld [vmem:[%s0 + $0x10] sm:$0xf]
  %v53 = vld [vmem:[%s0 + $0x14] sm:$0xf]
  %v54 = vld [vmem:[%s0 + $0x18] sm:$0xf]
  %v55 = vld [vmem:[%s0 + $0x1c] sm:$0xf]
  %v56 = vld [vmem:[%s0 + $0x20] sm:$0xf]
  %v57 = vld [vmem:[%s0 + $0x24] sm:$0xf]
  %v58 = vld [vmem:[%s0 + $0x28] sm:$0xf]
  %v59 = vld [vmem:[%s0 + $0x2c] sm:$0xf]
  %v60 = vld [vmem:[%s0 + $0x30] sm:$0xf]
  %v61 = vld [vmem:[%s0 + $0x34] sm:$0xf]
  %v62 = vld [vmem:[%s0 + $0x38] sm:$0xf]
  %v63 = vld [vmem:[%s0 + $0x3c] sm:$0xf]
  %v64 = vld [vmem:[%s1] sm:$0xf]
  %v65 = vld [vmem:[%s1 + $0x4] sm:$0xf]
  %v66 = vld [vmem:[%s1 + $0x8] sm:$0xf]
  %v67 = vld [vmem:[%s1 + $0xc] sm:$0xf]
  %v68 = vld [vmem:[%s1 + $0x10] sm:$0xf]
  %v69 = vld [vmem:[%s1 + $0x14] sm:$0xf]
  %v70 = vld [vmem:[%s1 + $0x18] sm:$0xf]
  %v71 = vld [vmem:[%s1 + $0x1c] sm:$0xf]
  %v72 = vld [vmem:[%s1 + $0x20] sm:$0xf]
  %v73 = vld [vmem:[%s1 + $0x24] sm:$0xf]
  %v74 = vld [vmem:[%s1 + $0x28] sm:$0xf]
  %v75 = vld [vmem:[%s1 + $0x2c] sm:$0xf]
  %v76 = vld [vmem:[%s1 + $0x30] sm:$0xf]
  %v77 = vld [vmem:[%s1 + $0x34] sm:$0xf]
  %v78 = vld [vmem:[%s1 + $0x38] sm:$0xf]
  %v79 = vld [vmem:[%s1 + $0x3c] sm:$0xf]
  %v96 = vunpack.c.l.b16 %v48
  %v97 = vunpack.c.l.b16 %v49
  %v98 = vunpack.c.l.b16 %v50
  %v99 = vunpack.c.l.b16 %v51
  %v100 = vunpack.c.l.b16 %v52
  %v101 = vunpack.c.l.b16 %v53
  %v102 = vunpack.c.l.b16 %v54
  %v103 = vunpack.c.l.b16 %v55
  %v104 = vunpack.c.l.b16 %v56
  %v105 = vunpack.c.l.b16 %v57
  %v106 = vunpack.c.l.b16 %v58
  %v107 = vunpack.c.l.b16 %v59
  %v108 = vunpack.c.l.b16 %v60
  %v109 = vunpack.c.l.b16 %v61
  %v110 = vunpack.c.l.b16 %v62
  %v111 = vunpack.c.l.b16 %v63
  %v112 = vpack.c.b16 %v97, %v96
  %v113 = vpack.c.b16 %v99, %v98
  %v114 = vpack.c.b16 %v101, %v100
  %v115 = vpack.c.b16 %v103, %v102
  %v116 = vpack.c.b16 %v105, %v104
  %v117 = vpack.c.b16 %v107, %v106
  %v118 = vpack.c.b16 %v109, %v108
  %v119 = vpack.c.b16 %v111, %v110
  %v144 = vunpack.c.l.b16 %v64
  %v145 = vunpack.c.l.b16 %v65
  %v146 = vunpack.c.l.b16 %v66
  %v147 = vunpack.c.l.b16 %v67
  %v148 = vunpack.c.l.b16 %v68
  %v149 = vunpack.c.l.b16 %v69
  %v150 = vunpack.c.l.b16 %v70
  %v151 = vunpack.c.l.b16 %v71
  %v152 = vunpack.c.l.b16 %v72
  %v153 = vunpack.c.l.b16 %v73
  %v154 = vunpack.c.l.b16 %v74
  %v155 = vunpack.c.l.b16 %v75
  %v156 = vunpack.c.l.b16 %v76
  %v157 = vunpack.c.l.b16 %v77
  %v158 = vunpack.c.l.b16 %v78
  %v159 = vunpack.c.l.b16 %v79
  %v160 = vpack.c.b16 %v145, %v144
  %v161 = vpack.c.b16 %v147, %v146
  %v162 = vpack.c.b16 %v149, %v148
  %v163 = vpack.c.b16 %v151, %v150
  %v164 = vpack.c.b16 %v153, %v152
  %v165 = vpack.c.b16 %v155, %v154
  %v166 = vpack.c.b16 %v157, %v156
  %v167 = vpack.c.b16 %v159, %v158
  %176 = vmatprep.subr.bf16.mxu0 0
  %177 = vmatpush1.bf16.msra.mxu0 %v160
  %178 = vmatprep.subr.bf16.mxu0 0
  %179 = vmatpush1.bf16.msra.mxu0 %v161
  %180 = vmatprep.subr.bf16.mxu0 0
  %181 = vmatpush1.bf16.msra.mxu0 %v162
  %182 = vmatprep.subr.bf16.mxu0 0
  %183 = vmatpush1.bf16.msra.mxu0 %v163
  %184 = vmatprep.subr.bf16.mxu0 0
  %185 = vmatpush1.bf16.msra.mxu0 %v164
  %186 = vmatprep.subr.bf16.mxu0 0
  %187 = vmatpush1.bf16.msra.mxu0 %v165
  %188 = vmatprep.subr.bf16.mxu0 0
  %189 = vmatpush1.bf16.msra.mxu0 %v166
  %190 = vmatprep.subr.bf16.mxu0 0
  %191 = vmatpush1.bf16.msra.mxu0 %v167
  %192 = vmatprep.subr.bf16.mxu0 0
  %193 = vmatpush1.bf16.msra.mxu0 0
  %194 = vmatprep.subr.bf16.mxu0 0
  %195 = vmatpush1.bf16.msra.mxu0 0
  %196 = vmatprep.subr.bf16.mxu0 0
  %197 = vmatpush1.bf16.msra.mxu0 0
  %198 = vmatprep.subr.bf16.mxu0 0
  %199 = vmatpush1.bf16.msra.mxu0 0
  %200 = vmatprep.subr.bf16.mxu0 0
  %201 = vmatpush1.bf16.msra.mxu0 0
  %202 = vmatprep.subr.bf16.mxu0 0
  %203 = vmatpush1.bf16.msra.mxu0 0
  %204 = vmatprep.subr.bf16.mxu0 0
  %205 = vmatpush1.bf16.msra.mxu0 0
  %206 = vmatprep.subr.bf16.mxu0 0
  %207 = vmatpush1.bf16.msra.mxu0 0
  %208 = vmatprep.mubr.bf16.mxu0 0
  %209 = vmatmul.mubr.bf16.gmra.mrb[0].mxu0 %v112
  %v210 = vpop.f32.mrb[0].mxu0
  %v211 = vadd.f32 0.0, %v210
  %v212 = vpop.f32.mrb[0].mxu0
  %v213 = vpop.f32.mrb[0].mxu0
  %v214 = vadd.f32 0.0, %v213
  %v215 = vpop.f32.mrb[0].mxu0
  %216 = vmatprep.mubr.bf16.mxu0 0
  %217 = vmatmul.mubr.bf16.gmra.mrb[0].mxu0 %v113
  %v218 = vpop.f32.mrb[0].mxu0
  %v219 = vadd.f32 0.0, %v218
  %v220 = vpop.f32.mrb[0].mxu0
  %v221 = vpop.f32.mrb[0].mxu0
  %v222 = vadd.f32 0.0, %v221
  %v223 = vpop.f32.mrb[0].mxu0
  %224 = vmatprep.mubr.bf16.mxu0 0
  %225 = vmatmul.mubr.bf16.gmra.mrb[0].mxu0 %v114
  %v226 = vpop.f32.mrb[0].mxu0
  %v227 = vadd.f32 0.0, %v226
  %v228 = vpop.f32.mrb[0].mxu0
  %v229 = vpop.f32.mrb[0].mxu0
  %v230 = vadd.f32 0.0, %v229
  %v231 = vpop.f32.mrb[0].mxu0
  %232 = vmatprep.mubr.bf16.mxu0 0
  %233 = vmatmul.mubr.bf16.gmra.mrb[0].mxu0 %v115
  %v234 = vpop.f32.mrb[0].mxu0
  %v235 = vadd.f32 0.0, %v234
  %v236 = vpop.f32.mrb[0].mxu0
  %v237 = vpop.f32.mrb[0].mxu0
  %v238 = vadd.f32 0.0, %v237
  %v239 = vpop.f32.mrb[0].mxu0
  %240 = vmatprep.mubr.bf16.mxu0 0
  %241 = vmatmul.mubr.bf16.gmra.mrb[0].mxu0 %v116
  %v242 = vpop.f32.mrb[0].mxu0
  %v243 = vadd.f32 0.0, %v242
  %v244 = vpop.f32.mrb[0].mxu0
  %v245 = vpop.f32.mrb[0].mxu0
  %v246 = vadd.f32 0.0, %v245
  %v247 = vpop.f32.mrb[0].mxu0
  %248 = vmatprep.mubr.bf16.mxu0 0
  %249 = vmatmul.mubr.bf16.gmra.mrb[0].mxu0 %v117
  %v250 = vpop.f32.mrb[0].mxu0
  %v251 = vadd.f32 0.0, %v250
  %v252 = vpop.f32.mrb[0].mxu0
  %v253 = vpop.f32.mrb[0].mxu0
  %v254 = vadd.f32 0.0, %v253
  %v255 = vpop.f32.mrb[0].mxu0
  %256 = vmatprep.mubr.bf16.mxu0 0
  %257 = vmatmul.mubr.bf16.gmra.mrb[0].mxu0 %v118
  %v258 = vpop.f32.mrb[0].mxu0
  %v259 = vadd.f32 0.0, %v258
  %v260 = vpop.f32.mrb[0].mxu0
  %v261 = vpop.f32.mrb[0].mxu0
  %v262 = vadd.f32 0.0, %v261
  %v263 = vpop.f32.mrb[0].mxu0
  %264 = vmatprep.mubr.bf16.mxu0 0
  %265 = vmatmul.mubr.bf16.gmra.mrb[0].mxu0 %v119
  %v266 = vpop.f32.mrb[0].mxu0
  %v267 = vadd.f32 0.0, %v266
  %v268 = vpop.f32.mrb[0].mxu0
  %v269 = vpop.f32.mrb[0].mxu0
  %v270 = vadd.f32 0.0, %v269
  %v271 = vpop.f32.mrb[0].mxu0
  %272 = vdwg.mxu0
  %273 = vst [vmem:[#allocation2] sm:$0xff] %v211
  %274 = vst [vmem:[#allocation2 + $0x8] sm:$0xff] %v214
  %275 = vst [vmem:[#allocation2 + $0x10] sm:$0xff] %v219
  %276 = vst [vmem:[#allocation2 + $0x18] sm:$0xff] %v222
  %277 = vst [vmem:[#allocation2 + $0x20] sm:$0xff] %v227
  %278 = vst [vmem:[#allocation2 + $0x28] sm:$0xff] %v230
  %279 = vst [vmem:[#allocation2 + $0x30] sm:$0xff] %v235
  %280 = vst [vmem:[#allocation2 + $0x38] sm:$0xff] %v238
  %281 = vst [vmem:[#allocation2 + $0x40] sm:$0xff] %v243
  %282 = vst [vmem:[#allocation2 + $0x48] sm:$0xff] %v246
  %283 = vst [vmem:[#allocation2 + $0x50] sm:$0xff] %v251
  %284 = vst [vmem:[#allocation2 + $0x58] sm:$0xff] %v254
  %285 = vst [vmem:[#allocation2 + $0x60] sm:$0xff] %v259
  %286 = vst [vmem:[#allocation2 + $0x68] sm:$0xff] %v262
  %287 = vst [vmem:[#allocation2 + $0x70] sm:$0xff] %v267
  %288 = vst [vmem:[#allocation2 + $0x78] sm:$0xff] %v270
  %v289 = vld [vmem:[#allocation5] sm:$0xff]
  %s290 = scalar_lea.vmem [#allocation5], 8
  %v291 = vld [vmem:[%s290] sm:$0xff]
  %s292 = scalar_lea.vmem [#allocation5], 16
  %v293 = vld [vmem:[%s292] sm:$0xff]
  loop: start=0, step=1, limit=2
  $region30: #{network_forward.1} parent=0 // loop_pre_header
    _
  $region31: #{network_forward.1} parent=0 // loop_header
    %s295 = sphi 0, %s299
    %p296 = scmp.ge.s32.totalorder %s295, 2
    %v300 = vphi %v289, %v436
    %v301 = vphi %v291, %v442
    %v302 = vphi %v293, %v441
    %v303 = vphi 0.0, %v431
  $region32: #{network_forward.1} parent=0 // loop_header_branch
    %298 = sbr.rel (%p296) target = $region36
  $region33: #{network_forward.1} parent=0 // loop_body
    %s304 = smul.u32 %s295, 8
    %v305 = vpack.c.bf16 %v302, %v302
    %s306 = sadd.s32 %s304, 3
    %s307 = smul.addr %s306, 4
    %s308 = scalar_lea.vmem [#allocation3], %s307
    %309 = vst [vmem:[%s308] sm:$0xf] %v305
    %v310 = vadd.f32 %v303, %v302
    %s311 = smul.u32 %s304, 8
    %s312 = scalar_lea.vmem [#allocation2], %s311
    %v313 = vld [vmem:[%s312] sm:$0xff]
    %v314 = vmul.f32 %v300, 0.75
    %v315 = vadd.f32 %v314, %v313
    %v316 = vmul.f32 %v301, 0.96875
    %v317 = vadd.f32 %v316, %v315
    %vm318 = vcmp.ge.f32.partialorder %v317, 5120.0
    %v319 = vsel %vm318, 1, 0
    %v320 = vcvt.s32.f32 %v319
    %v321 = vsel %vm318, 0.0, %v317
    %s322 = sadd.s32 %s304, 1
    %v323 = vpack.c.bf16 %v320, %v320
    %s324 = sadd.s32 %s304, 4
    %s325 = smul.addr %s324, 4
    %s326 = scalar_lea.vmem [#allocation3], %s325
    %327 = vst [vmem:[%s326] sm:$0xf] %v323
    %v328 = vadd.f32 %v310, %v320
    %s329 = smul.u32 %s322, 8
    %s330 = scalar_lea.vmem [#allocation2], %s329
    %v331 = vld [vmem:[%s330] sm:$0xff]
    %v332 = vmul.f32 %v315, 0.75
    %v333 = vadd.f32 %v332, %v331
    %v334 = vmul.f32 %v321, 0.96875
    %v335 = vadd.f32 %v334, %v333
    %vm336 = vcmp.ge.f32.partialorder %v335, 5120.0
    %v337 = vsel %vm336, 1, 0
    %v338 = vcvt.s32.f32 %v337
    %v339 = vsel %vm336, 0.0, %v335
    %s340 = sadd.s32 %s304, 2
    %v341 = vpack.c.bf16 %v338, %v338
    %s342 = sadd.s32 %s304, 5
    %s343 = smul.addr %s342, 4
    %s344 = scalar_lea.vmem [#allocation3], %s343
    %345 = vst [vmem:[%s344] sm:$0xf] %v341
    %v346 = vadd.f32 %v328, %v338
    %s347 = smul.u32 %s340, 8
    %s348 = scalar_lea.vmem [#allocation2], %s347
    %v349 = vld [vmem:[%s348] sm:$0xff]
    %v350 = vmul.f32 %v333, 0.75
    %v351 = vadd.f32 %v350, %v349
    %v352 = vmul.f32 %v339, 0.96875
    %v353 = vadd.f32 %v352, %v351
    %vm354 = vcmp.ge.f32.partialorder %v353, 5120.0
    %v355 = vsel %vm354, 1, 0
    %v356 = vcvt.s32.f32 %v355
    %v357 = vsel %vm354, 0.0, %v353
    %v358 = vpack.c.bf16 %v356, %v356
    %s359 = sadd.s32 %s304, 6
    %s360 = smul.addr %s359, 4
    %s361 = scalar_lea.vmem [#allocation3], %s360
    %362 = vst [vmem:[%s361] sm:$0xf] %v358
    %v363 = vadd.f32 %v346, %v356
    %s364 = smul.u32 %s306, 8
    %s365 = scalar_lea.vmem [#allocation2], %s364
    %v366 = vld [vmem:[%s365] sm:$0xff]
    %v367 = vmul.f32 %v351, 0.75
    %v368 = vadd.f32 %v367, %v366
    %v369 = vmul.f32 %v357, 0.96875
    %v370 = vadd.f32 %v369, %v368
    %vm371 = vcmp.ge.f32.partialorder %v370, 5120.0
    %v372 = vsel %vm371, 1, 0
    %v373 = vcvt.s32.f32 %v372
    %v374 = vsel %vm371, 0.0, %v370
    %v375 = vpack.c.bf16 %v373, %v373
    %s376 = sadd.s32 %s304, 7
    %s377 = smul.addr %s376, 4
    %s378 = scalar_lea.vmem [#allocation3], %s377
    %379 = vst [vmem:[%s378] sm:$0xf] %v375
    %v380 = vadd.f32 %v363, %v373
    %s381 = smul.u32 %s324, 8
    %s382 = scalar_lea.vmem [#allocation2], %s381
    %v383 = vld [vmem:[%s382] sm:$0xff]
    %v384 = vmul.f32 %v368, 0.75
    %v385 = vadd.f32 %v384, %v383
    %v386 = vmul.f32 %v374, 0.96875
    %v387 = vadd.f32 %v386, %v385
    %vm388 = vcmp.ge.f32.partialorder %v387, 5120.0
    %v389 = vsel %vm388, 1, 0
    %v390 = vcvt.s32.f32 %v389
    %v391 = vsel %vm388, 0.0, %v387
    %v392 = vpack.c.bf16 %v390, %v390
    %s393 = sadd.s32 %s304, 8
    %s394 = smul.addr %s393, 4
    %s395 = scalar_lea.vmem [#allocation3], %s394
    %396 = vst [vmem:[%s395] sm:$0xf] %v392
    %v397 = vadd.f32 %v380, %v390
    %s398 = smul.u32 %s342, 8
    %s399 = scalar_lea.vmem [#allocation2], %s398
    %v400 = vld [vmem:[%s399] sm:$0xff]
    %v401 = vmul.f32 %v385, 0.75
    %v402 = vadd.f32 %v401, %v400
    %v403 = vmul.f32 %v391, 0.96875
    %v404 = vadd.f32 %v403, %v402
    %vm405 = vcmp.ge.f32.partialorder %v404, 5120.0
    %v406 = vsel %vm405, 1, 0
    %v407 = vcvt.s32.f32 %v406
    %v408 = vsel %vm405, 0.0, %v404
    %v409 = vpack.c.bf16 %v407, %v407
    %s410 = sadd.s32 %s304, 9
    %s411 = smul.addr %s410, 4
    %s412 = scalar_lea.vmem [#allocation3], %s411
    %413 = vst [vmem:[%s412] sm:$0xf] %v409
    %v414 = vadd.f32 %v397, %v407
    %s415 = smul.u32 %s359, 8
    %s416 = scalar_lea.vmem [#allocation2], %s415
    %v417 = vld [vmem:[%s416] sm:$0xff]
    %v418 = vmul.f32 %v402, 0.75
    %v419 = vadd.f32 %v418, %v417
    %v420 = vmul.f32 %v408, 0.96875
    %v421 = vadd.f32 %v420, %v419
    %vm422 = vcmp.ge.f32.partialorder %v421, 5120.0
    %v423 = vsel %vm422, 1, 0
    %v424 = vcvt.s32.f32 %v423
    %v425 = vsel %vm422, 0.0, %v421
    %v426 = vpack.c.bf16 %v424, %v424
    %s427 = sadd.s32 %s304, 10
    %s428 = smul.addr %s427, 4
    %s429 = scalar_lea.vmem [#allocation3], %s428
    %430 = vst [vmem:[%s429] sm:$0xf] %v426
    %v431 = vadd.f32 %v414, %v424
    %s432 = smul.u32 %s376, 8
    %s433 = scalar_lea.vmem [#allocation2], %s432
    %v434 = vld [vmem:[%s433] sm:$0xff]
    %v435 = vmul.f32 %v419, 0.75
    %v436 = vadd.f32 %v435, %v434
    %v437 = vmul.f32 %v425, 0.96875
    %v438 = vadd.f32 %v437, %v436
    %vm439 = vcmp.ge.f32.partialorder %v438, 5120.0
    %v440 = vsel %vm439, 1, 0
    %v441 = vcvt.s32.f32 %v440
    %v442 = vsel %vm439, 0.0, %v438
  $region34: #{network_forward.1} parent=0 // loop_footer
    %s299 = sadd.s32 1, %s295
  $region35: #{network_forward.1} parent=0 // loop_footer_branch
    %294 = sbr.rel target = $region31
  $region36: #{network_forward.1} parent=0 // loop_exit
    _
  %443 = vst [vmem:[#allocation5] sm:$0xff] %v300
  %444 = vst [vmem:[%s290] sm:$0xff] %v301
  %445 = vst [vmem:[%s292] sm:$0xff] %v302
  %v446 = vld [vmem:[%s7] sm:$0xff]
  %v447 = vadd.f32 %v446, %v303
  %448 = vst [vmem:[%s7] sm:$0xff] %v447
  %s449 = scalar_lea.vmem [#allocation3], 12
  %v450 = vld [vmem:[%s449] sm:$0xf]
  %v451 = vld [vmem:[%s449 + $0x4] sm:$0xf]
  %v452 = vld [vmem:[%s449 + $0x8] sm:$0xf]
  %v453 = vld [vmem:[%s449 + $0xc] sm:$0xf]
  %v454 = vld [vmem:[%s449 + $0x10] sm:$0xf]
  %v455 = vld [vmem:[%s449 + $0x14] sm:$0xf]
  %v456 = vld [vmem:[%s449 + $0x18] sm:$0xf]
  %v457 = vld [vmem:[%s449 + $0x1c] sm:$0xf]
  %v458 = vld [vmem:[%s449 + $0x20] sm:$0xf]
  %v459 = vld [vmem:[%s449 + $0x24] sm:$0xf]
  %v460 = vld [vmem:[%s449 + $0x28] sm:$0xf]
  %v461 = vld [vmem:[%s449 + $0x2c] sm:$0xf]
  %v462 = vld [vmem:[%s449 + $0x30] sm:$0xf]
  %v463 = vld [vmem:[%s449 + $0x34] sm:$0xf]
  %v464 = vld [vmem:[%s449 + $0x38] sm:$0xf]
  %v465 = vld [vmem:[%s449 + $0x3c] sm:$0xf]
  %s466 = scalar_lea.vmem [#allocation3], 8
  %v467 = vld [vmem:[%s466] sm:$0xf]
  %v468 = vld [vmem:[%s466 + $0x4] sm:$0xf]
  %v469 = vld [vmem:[%s466 + $0x8] sm:$0xf]
  %v470 = vld [vmem:[%s466 + $0xc] sm:$0xf]
  %v471 = vld [vmem:[%s466 + $0x10] sm:$0xf]
  %v472 = vld [vmem:[%s466 + $0x14] sm:$0xf]
  %v473 = vld [vmem:[%s466 + $0x18] sm:$0xf]
  %v474 = vld [vmem:[%s466 + $0x1c] sm:$0xf]
  %v475 = vld [vmem:[%s466 + $0x20] sm:$0xf]
  %v476 = vld [vmem:[%s466 + $0x24] sm:$0xf]
  %v477 = vld [vmem:[%s466 + $0x28] sm:$0xf]
  %v478 = vld [vmem:[%s466 + $0x2c] sm:$0xf]
  %v479 = vld [vmem:[%s466 + $0x30] sm:$0xf]
  %v480 = vld [vmem:[%s466 + $0x34] sm:$0xf]
  %v481 = vld [vmem:[%s466 + $0x38] sm:$0xf]
  %v482 = vld [vmem:[%s466 + $0x3c] sm:$0xf]
  %v483 = vld [vmem:[%s4] sm:$0x1]
  %vm484 = vcmp.eq.s32.totalorder %v483, 1
  %v485 = vsel %vm484, 1, 0
  %v486 = vlaneseq
  %v487 = vshrl.u32 %v486, 7
  %v488 = vsub.s32 0, %v487
  %v489 = vrot.slane %v485, %v488
  %vm490 = vcmp.eq.s32.totalorder %v489, 1
  %vm491 = vmpackc.low %vm490, %vm490
  %v492 = vsel %vm491, %v467, %v450
  %v493 = vsel %vm491, %v468, %v451
  %v494 = vsel %vm491, %v469, %v452
  %v495 = vsel %vm491, %v470, %v453
  %v496 = vsel %vm491, %v471, %v454
  %v497 = vsel %vm491, %v472, %v455
  %v498 = vsel %vm491, %v473, %v456
  %v499 = vsel %vm491, %v474, %v457
  %v500 = vsel %vm491, %v475, %v458
  %v501 = vsel %vm491, %v476, %v459
  %v502 = vsel %vm491, %v477, %v460
  %v503 = vsel %vm491, %v478, %v461
  %v504 = vsel %vm491, %v479, %v462
  %v505 = vsel %vm491, %v480, %v463
  %v506 = vsel %vm491, %v481, %v464
  %v507 = vsel %vm491, %v482, %v465
  %s508 = scalar_lea.vmem [#allocation3], 4
  %v509 = vld [vmem:[%s508] sm:$0xf]
  %v510 = vld [vmem:[%s508 + $0x4] sm:$0xf]
  %v511 = vld [vmem:[%s508 + $0x8] sm:$0xf]
  %v512 = vld [vmem:[%s508 + $0xc] sm:$0xf]
  %v513 = vld [vmem:[%s508 + $0x10] sm:$0xf]
  %v514 = vld [vmem:[%s508 + $0x14] sm:$0xf]
  %v515 = vld [vmem:[%s508 + $0x18] sm:$0xf]
  %v516 = vld [vmem:[%s508 + $0x1c] sm:$0xf]
  %v517 = vld [vmem:[%s508 + $0x20] sm:$0xf]
  %v518 = vld [vmem:[%s508 + $0x24] sm:$0xf]
  %v519 = vld [vmem:[%s508 + $0x28] sm:$0xf]
  %v520 = vld [vmem:[%s508 + $0x2c] sm:$0xf]
  %v521 = vld [vmem:[%s508 + $0x30] sm:$0xf]
  %v522 = vld [vmem:[%s508 + $0x34] sm:$0xf]
  %v523 = vld [vmem:[%s508 + $0x38] sm:$0xf]
  %v524 = vld [vmem:[%s508 + $0x3c] sm:$0xf]
  %vm525 = vcmp.eq.s32.totalorder %v483, 2
  %v526 = vsel %vm525, 1, 0
  %v527 = vlaneseq
  %v528 = vshrl.u32 %v527, 7
  %v529 = vsub.s32 0, %v528
  %v530 = vrot.slane %v526, %v529
  %vm531 = vcmp.eq.s32.totalorder %v530, 1
  %vm532 = vmpackc.low %vm531, %vm531
  %v533 = vsel %vm532, %v509, %v492
  %v534 = vsel %vm532, %v510, %v493
  %v535 = vsel %vm532, %v511, %v494
  %v536 = vsel %vm532, %v512, %v495
  %v537 = vsel %vm532, %v513, %v496
  %v538 = vsel %vm532, %v514, %v497
  %v539 = vsel %vm532, %v515, %v498
  %v540 = vsel %vm532, %v516, %v499
  %v541 = vsel %vm532, %v517, %v500
  %v542 = vsel %vm532, %v518, %v501
  %v543 = vsel %vm532, %v519, %v502
  %v544 = vsel %vm532, %v520, %v503
  %v545 = vsel %vm532, %v521, %v504
  %v546 = vsel %vm532, %v522, %v505
  %v547 = vsel %vm532, %v523, %v506
  %v548 = vsel %vm532, %v524, %v507
  %v549 = vld [vmem:[#allocation3] sm:$0xf]
  %v550 = vld [vmem:[#allocation3 + $0x4] sm:$0xf]
  %v551 = vld [vmem:[#allocation3 + $0x8] sm:$0xf]
  %v552 = vld [vmem:[#allocation3 + $0xc] sm:$0xf]
  %v553 = vld [vmem:[#allocation3 + $0x10] sm:$0xf]
  %v554 = vld [vmem:[#allocation3 + $0x14] sm:$0xf]
  %v555 = vld [vmem:[#allocation3 + $0x18] sm:$0xf]
  %v556 = vld [vmem:[#allocation3 + $0x1c] sm:$0xf]
  %v557 = vld [vmem:[#allocation3 + $0x20] sm:$0xf]
  %v558 = vld [vmem:[#allocation3 + $0x24] sm:$0xf]
  %v559 = vld [vmem:[#allocation3 + $0x28] sm:$0xf]
  %v560 = vld [vmem:[#allocation3 + $0x2c] sm:$0xf]
  %v561 = vld [vmem:[#allocation3 + $0x30] sm:$0xf]
  %v562 = vld [vmem:[#allocation3 + $0x34] sm:$0xf]
  %v563 = vld [vmem:[#allocation3 + $0x38] sm:$0xf]
  %v564 = vld [vmem:[#allocation3 + $0x3c] sm:$0xf]
  %vm565 = vcmp.eq.s32.totalorder %v483, 3
  %v566 = vsel %vm565, 1, 0
  %v567 = vlaneseq
  %v568 = vshrl.u32 %v567, 7
  %v569 = vsub.s32 0, %v568
  %v570 = vrot.slane %v566, %v569
  %vm571 = vcmp.eq.s32.totalorder %v570, 1
  %vm572 = vmpackc.low %vm571, %vm571
  %v573 = vsel %vm572, %v549, %v533
  %v574 = vsel %vm572, %v550, %v534
  %v575 = vsel %vm572, %v551, %v535
  %v576 = vsel %vm572, %v552, %v536
  %v577 = vsel %vm572, %v553, %v537
  %v578 = vsel %vm572, %v554, %v538
  %v579 = vsel %vm572, %v555, %v539
  %v580 = vsel %vm572, %v556, %v540
  %v581 = vsel %vm572, %v557, %v541
  %v582 = vsel %vm572, %v558, %v542
  %v583 = vsel %vm572, %v559, %v543
  %v584 = vsel %vm572, %v560, %v544
  %v585 = vsel %vm572, %v561, %v545
  %v586 = vsel %vm572, %v562, %v546
  %v587 = vsel %vm572, %v563, %v547
  %v588 = vsel %vm572, %v564, %v548
  %v589 = vld [vmem:[%s2] sm:$0xf]
  %v590 = vld [vmem:[%s2 + $0x4] sm:$0xf]
  %v591 = vld [vmem:[%s2 + $0x8] sm:$0xf]
  %v592 = vld [vmem:[%s2 + $0xc] sm:$0xf]
  %v593 = vld [vmem:[%s2 + $0x10] sm:$0xf]
  %v594 = vld [vmem:[%s2 + $0x14] sm:$0xf]
  %v595 = vld [vmem:[%s2 + $0x18] sm:$0xf]
  %v596 = vld [vmem:[%s2 + $0x1c] sm:$0xf]
  %v597 = vld [vmem:[%s2 + $0x20] sm:$0xf]
  %v598 = vld [vmem:[%s2 + $0x24] sm:$0xf]
  %v599 = vld [vmem:[%s2 + $0x28] sm:$0xf]
  %v600 = vld [vmem:[%s2 + $0x2c] sm:$0xf]
  %v601 = vld [vmem:[%s2 + $0x30] sm:$0xf]
  %v602 = vld [vmem:[%s2 + $0x34] sm:$0xf]
  %v603 = vld [vmem:[%s2 + $0x38] sm:$0xf]
  %v604 = vld [vmem:[%s2 + $0x3c] sm:$0xf]
  %v621 = vunpack.c.l.b16 %v573
  %v622 = vunpack.c.l.b16 %v574
  %v623 = vunpack.c.l.b16 %v575
  %v624 = vunpack.c.l.b16 %v576
  %v625 = vunpack.c.l.b16 %v577
  %v626 = vunpack.c.l.b16 %v578
  %v627 = vunpack.c.l.b16 %v579
  %v628 = vunpack.c.l.b16 %v580
  %v629 = vunpack.c.l.b16 %v581
  %v630 = vunpack.c.l.b16 %v582
  %v631 = vunpack.c.l.b16 %v583
  %v632 = vunpack.c.l.b16 %v584
  %v633 = vunpack.c.l.b16 %v585
  %v634 = vunpack.c.l.b16 %v586
  %v635 = vunpack.c.l.b16 %v587
  %v636 = vunpack.c.l.b16 %v588
  %v637 = vpack.c.b16 %v622, %v621
  %v638 = vpack.c.b16 %v624, %v623
  %v639 = vpack.c.b16 %v626, %v625
  %v640 = vpack.c.b16 %v628, %v627
  %v641 = vpack.c.b16 %v630, %v629
  %v642 = vpack.c.b16 %v632, %v631
  %v643 = vpack.c.b16 %v634, %v633
  %v644 = vpack.c.b16 %v636, %v635
  %v669 = vunpack.c.l.b16 %v589
  %v670 = vunpack.c.l.b16 %v590
  %v671 = vunpack.c.l.b16 %v591
  %v672 = vunpack.c.l.b16 %v592
  %v673 = vunpack.c.l.b16 %v593
  %v674 = vunpack.c.l.b16 %v594
  %v675 = vunpack.c.l.b16 %v595
  %v676 = vunpack.c.l.b16 %v596
  %v677 = vunpack.c.l.b16 %v597
  %v678 = vunpack.c.l.b16 %v598
  %v679 = vunpack.c.l.b16 %v599
  %v680 = vunpack.c.l.b16 %v600
  %v681 = vunpack.c.l.b16 %v601
  %v682 = vunpack.c.l.b16 %v602
  %v683 = vunpack.c.l.b16 %v603
  %v684 = vunpack.c.l.b16 %v604
  %v685 = vpack.c.b16 %v670, %v669
  %v686 = vpack.c.b16 %v672, %v671
  %v687 = vpack.c.b16 %v674, %v673
  %v688 = vpack.c.b16 %v676, %v675
  %v689 = vpack.c.b16 %v678, %v677
  %v690 = vpack.c.b16 %v680, %v679
  %v691 = vpack.c.b16 %v682, %v681
  %v692 = vpack.c.b16 %v684, %v683
  %701 = vmatprep.subr.bf16.mxu0 0
  %702 = vmatpush1.bf16.msra.mxu0 %v685
  %703 = vmatprep.subr.bf16.mxu0 0
  %704 = vmatpush1.bf16.msra.mxu0 %v686
  %705 = vmatprep.subr.bf16.mxu0 0
  %706 = vmatpush1.bf16.msra.mxu0 %v687
  %707 = vmatprep.subr.bf16.mxu0 0
  %708 = vmatpush1.bf16.msra.mxu0 %v688
  %709 = vmatprep.subr.bf16.mxu0 0
  %710 = vmatpush1.bf16.msra.mxu0 %v689
  %711 = vmatprep.subr.bf16.mxu0 0
  %712 = vmatpush1.bf16.msra.mxu0 %v690
  %713 = vmatprep.subr.bf16.mxu0 0
  %714 = vmatpush1.bf16.msra.mxu0 %v691
  %715 = vmatprep.subr.bf16.mxu0 0
  %716 = vmatpush1.bf16.msra.mxu0 %v692
  %717 = vmatprep.subr.bf16.mxu0 0
  %718 = vmatpush1.bf16.msra.mxu0 0
  %719 = vmatprep.subr.bf16.mxu0 0
  %720 = vmatpush1.bf16.msra.mxu0 0
  %721 = vmatprep.subr.bf16.mxu0 0
  %722 = vmatpush1.bf16.msra.mxu0 0
  %723 = vmatprep.subr.bf16.mxu0 0
  %724 = vmatpush1.bf16.msra.mxu0 0
  %725 = vmatprep.subr.bf16.mxu0 0
  %726 = vmatpush1.bf16.msra.mxu0 0
  %727 = vmatprep.subr.bf16.mxu0 0
  %728 = vmatpush1.bf16.msra.mxu0 0
  %729 = vmatprep.subr.bf16.mxu0 0
  %730 = vmatpush1.bf16.msra.mxu0 0
  %731 = vmatprep.subr.bf16.mxu0 0
  %732 = vmatpush1.bf16.msra.mxu0 0
  %733 = vmatprep.mubr.bf16.mxu0 0
  %734 = vmatmul.mubr.bf16.gmra.mrb[0].mxu0 %v637
  %v735 = vpop.f32.mrb[0].mxu0
  %v736 = vadd.f32 0.0, %v735
  %v737 = vpop.f32.mrb[0].mxu0
  %v738 = vpop.f32.mrb[0].mxu0
  %v739 = vadd.f32 0.0, %v738
  %v740 = vpop.f32.mrb[0].mxu0
  %741 = vmatprep.mubr.bf16.mxu0 0
  %742 = vmatmul.mubr.bf16.gmra.mrb[0].mxu0 %v638
  %v743 = vpop.f32.mrb[0].mxu0
  %v744 = vadd.f32 0.0, %v743
  %v745 = vpop.f32.mrb[0].mxu0
  %v746 = vpop.f32.mrb[0].mxu0
  %v747 = vadd.f32 0.0, %v746
  %v748 = vpop.f32.mrb[0].mxu0
  %749 = vmatprep.mubr.bf16.mxu0 0
  %750 = vmatmul.mubr.bf16.gmra.mrb[0].mxu0 %v639
  %v751 = vpop.f32.mrb[0].mxu0
  %v752 = vadd.f32 0.0, %v751
  %v753 = vpop.f32.mrb[0].mxu0
  %v754 = vpop.f32.mrb[0].mxu0
  %v755 = vadd.f32 0.0, %v754
  %v756 = vpop.f32.mrb[0].mxu0
  %757 = vmatprep.mubr.bf16.mxu0 0
  %758 = vmatmul.mubr.bf16.gmra.mrb[0].mxu0 %v640
  %v759 = vpop.f32.mrb[0].mxu0
  %v760 = vadd.f32 0.0, %v759
  %v761 = vpop.f32.mrb[0].mxu0
  %v762 = vpop.f32.mrb[0].mxu0
  %v763 = vadd.f32 0.0, %v762
  %v764 = vpop.f32.mrb[0].mxu0
  %765 = vmatprep.mubr.bf16.mxu0 0
  %766 = vmatmul.mubr.bf16.gmra.mrb[0].mxu0 %v641
  %v767 = vpop.f32.mrb[0].mxu0
  %v768 = vadd.f32 0.0, %v767
  %v769 = vpop.f32.mrb[0].mxu0
  %v770 = vpop.f32.mrb[0].mxu0
  %v771 = vadd.f32 0.0, %v770
  %v772 = vpop.f32.mrb[0].mxu0
  %773 = vmatprep.mubr.bf16.mxu0 0
  %774 = vmatmul.mubr.bf16.gmra.mrb[0].mxu0 %v642
  %v775 = vpop.f32.mrb[0].mxu0
  %v776 = vadd.f32 0.0, %v775
  %v777 = vpop.f32.mrb[0].mxu0
  %v778 = vpop.f32.mrb[0].mxu0
  %v779 = vadd.f32 0.0, %v778
  %v780 = vpop.f32.mrb[0].mxu0
  %781 = vmatprep.mubr.bf16.mxu0 0
  %782 = vmatmul.mubr.bf16.gmra.mrb[0].mxu0 %v643
  %v783 = vpop.f32.mrb[0].mxu0
  %v784 = vadd.f32 0.0, %v783
  %v785 = vpop.f32.mrb[0].mxu0
  %v786 = vpop.f32.mrb[0].mxu0
  %v787 = vadd.f32 0.0, %v786
  %v788 = vpop.f32.mrb[0].mxu0
  %789 = vmatprep.mubr.bf16.mxu0 0
  %790 = vmatmul.mubr.bf16.gmra.mrb[0].mxu0 %v644
  %v791 = vpop.f32.mrb[0].mxu0
  %v792 = vadd.f32 0.0, %v791
  %v793 = vpop.f32.mrb[0].mxu0
  %v794 = vpop.f32.mrb[0].mxu0
  %v795 = vadd.f32 0.0, %v794
  %v796 = vpop.f32.mrb[0].mxu0
  %797 = vdwg.mxu0
  %798 = vst [vmem:[#allocation2] sm:$0xff] %v736
  %799 = vst [vmem:[#allocation2 + $0x8] sm:$0xff] %v739
  %800 = vst [vmem:[#allocation2 + $0x10] sm:$0xff] %v744
  %801 = vst [vmem:[#allocation2 + $0x18] sm:$0xff] %v747
  %802 = vst [vmem:[#allocation2 + $0x20] sm:$0xff] %v752
  %803 = vst [vmem:[#allocation2 + $0x28] sm:$0xff] %v755
  %804 = vst [vmem:[#allocation2 + $0x30] sm:$0xff] %v760
  %805 = vst [vmem:[#allocation2 + $0x38] sm:$0xff] %v763
  %806 = vst [vmem:[#allocation2 + $0x40] sm:$0xff] %v768
  %807 = vst [vmem:[#allocation2 + $0x48] sm:$0xff] %v771
  %808 = vst [vmem:[#allocation2 + $0x50] sm:$0xff] %v776
  %809 = vst [vmem:[#allocation2 + $0x58] sm:$0xff] %v779
  %810 = vst [vmem:[#allocation2 + $0x60] sm:$0xff] %v784
  %811 = vst [vmem:[#allocation2 + $0x68] sm:$0xff] %v787
  %812 = vst [vmem:[#allocation2 + $0x70] sm:$0xff] %v792
  %813 = vst [vmem:[#allocation2 + $0x78] sm:$0xff] %v795
  %s814 = scalar_lea.vmem [#allocation5], 24
  %v815 = vld [vmem:[%s814] sm:$0xff]
  %s816 = scalar_lea.vmem [#allocation5], 32
  %v817 = vld [vmem:[%s816] sm:$0xff]
  %s818 = scalar_lea.vmem [#allocation5], 40
  %v819 = vld [vmem:[%s818] sm:$0xff]
  loop: start=0, step=1, limit=2
  $region37: #{network_forward.1} parent=0 // loop_pre_header
    _
  $region38: #{network_forward.1} parent=0 // loop_header
    %s821 = sphi 0, %s825
    %p822 = scmp.ge.s32.totalorder %s821, 2
    %v826 = vphi %v815, %v962
    %v827 = vphi %v817, %v968
    %v828 = vphi %v819, %v967
    %v829 = vphi 0.0, %v957
  $region39: #{network_forward.1} parent=0 // loop_header_branch
    %824 = sbr.rel (%p822) target = $region43
  $region40: #{network_forward.1} parent=0 // loop_body
    %s830 = smul.u32 %s821, 8
    %v831 = vpack.c.bf16 %v828, %v828
    %s832 = sadd.s32 %s830, 3
    %s833 = smul.addr %s832, 4
    %s834 = scalar_lea.vmem [#allocation4], %s833
    %835 = vst [vmem:[%s834] sm:$0xf] %v831
    %v836 = vadd.f32 %v829, %v828
    %s837 = smul.u32 %s830, 8
    %s838 = scalar_lea.vmem [#allocation2], %s837
    %v839 = vld [vmem:[%s838] sm:$0xff]
    %v840 = vmul.f32 %v826, 0.75
    %v841 = vadd.f32 %v840, %v839
    %v842 = vmul.f32 %v827, 0.96875
    %v843 = vadd.f32 %v842, %v841
    %vm844 = vcmp.ge.f32.partialorder %v843, 5120.0
    %v845 = vsel %vm844, 1, 0
    %v846 = vcvt.s32.f32 %v845
    %v847 = vsel %vm844, 0.0, %v843
    %s848 = sadd.s32 %s830, 1
    %v849 = vpack.c.bf16 %v846, %v846
    %s850 = sadd.s32 %s830, 4
    %s851 = smul.addr %s850, 4
    %s852 = scalar_lea.vmem [#allocation4], %s851
    %853 = vst [vmem:[%s852] sm:$0xf] %v849
    %v854 = vadd.f32 %v836, %v846
    %s855 = smul.u32 %s848, 8
    %s856 = scalar_lea.vmem [#allocation2], %s855
    %v857 = vld [vmem:[%s856] sm:$0xff]
    %v858 = vmul.f32 %v841, 0.75
    %v859 = vadd.f32 %v858, %v857
    %v860 = vmul.f32 %v847, 0.96875
    %v861 = vadd.f32 %v860, %v859
    %vm862 = vcmp.ge.f32.partialorder %v861, 5120.0
    %v863 = vsel %vm862, 1, 0
    %v864 = vcvt.s32.f32 %v863
    %v865 = vsel %vm862, 0.0, %v861
    %s866 = sadd.s32 %s830, 2
    %v867 = vpack.c.bf16 %v864, %v864
    %s868 = sadd.s32 %s830, 5
    %s869 = smul.addr %s868, 4
    %s870 = scalar_lea.vmem [#allocation4], %s869
    %871 = vst [vmem:[%s870] sm:$0xf] %v867
    %v872 = vadd.f32 %v854, %v864
    %s873 = smul.u32 %s866, 8
    %s874 = scalar_lea.vmem [#allocation2], %s873
    %v875 = vld [vmem:[%s874] sm:$0xff]
    %v876 = vmul.f32 %v859, 0.75
    %v877 = vadd.f32 %v876, %v875
    %v878 = vmul.f32 %v865, 0.96875
    %v879 = vadd.f32 %v878, %v877
    %vm880 = vcmp.ge.f32.partialorder %v879, 5120.0
    %v881 = vsel %vm880, 1, 0
    %v882 = vcvt.s32.f32 %v881
    %v883 = vsel %vm880, 0.0, %v879
    %v884 = vpack.c.bf16 %v882, %v882
    %s885 = sadd.s32 %s830, 6
    %s886 = smul.addr %s885, 4
    %s887 = scalar_lea.vmem [#allocation4], %s886
    %888 = vst [vmem:[%s887] sm:$0xf] %v884
    %v889 = vadd.f32 %v872, %v882
    %s890 = smul.u32 %s832, 8
    %s891 = scalar_lea.vmem [#allocation2], %s890
    %v892 = vld [vmem:[%s891] sm:$0xff]
    %v893 = vmul.f32 %v877, 0.75
    %v894 = vadd.f32 %v893, %v892
    %v895 = vmul.f32 %v883, 0.96875
    %v896 = vadd.f32 %v895, %v894
    %vm897 = vcmp.ge.f32.partialorder %v896, 5120.0
    %v898 = vsel %vm897, 1, 0
    %v899 = vcvt.s32.f32 %v898
    %v900 = vsel %vm897, 0.0, %v896
    %v901 = vpack.c.bf16 %v899, %v899
    %s902 = sadd.s32 %s830, 7
    %s903 = smul.addr %s902, 4
    %s904 = scalar_lea.vmem [#allocation4], %s903
    %905 = vst [vmem:[%s904] sm:$0xf] %v901
    %v906 = vadd.f32 %v889, %v899
    %s907 = smul.u32 %s850, 8
    %s908 = scalar_lea.vmem [#allocation2], %s907
    %v909 = vld [vmem:[%s908] sm:$0xff]
    %v910 = vmul.f32 %v894, 0.75
    %v911 = vadd.f32 %v910, %v909
    %v912 = vmul.f32 %v900, 0.96875
    %v913 = vadd.f32 %v912, %v911
    %vm914 = vcmp.ge.f32.partialorder %v913, 5120.0
    %v915 = vsel %vm914, 1, 0
    %v916 = vcvt.s32.f32 %v915
    %v917 = vsel %vm914, 0.0, %v913
    %v918 = vpack.c.bf16 %v916, %v916
    %s919 = sadd.s32 %s830, 8
    %s920 = smul.addr %s919, 4
    %s921 = scalar_lea.vmem [#allocation4], %s920
    %922 = vst [vmem:[%s921] sm:$0xf] %v918
    %v923 = vadd.f32 %v906, %v916
    %s924 = smul.u32 %s868, 8
    %s925 = scalar_lea.vmem [#allocation2], %s924
    %v926 = vld [vmem:[%s925] sm:$0xff]
    %v927 = vmul.f32 %v911, 0.75
    %v928 = vadd.f32 %v927, %v926
    %v929 = vmul.f32 %v917, 0.96875
    %v930 = vadd.f32 %v929, %v928
    %vm931 = vcmp.ge.f32.partialorder %v930, 5120.0
    %v932 = vsel %vm931, 1, 0
    %v933 = vcvt.s32.f32 %v932
    %v934 = vsel %vm931, 0.0, %v930
    %v935 = vpack.c.bf16 %v933, %v933
    %s936 = sadd.s32 %s830, 9
    %s937 = smul.addr %s936, 4
    %s938 = scalar_lea.vmem [#allocation4], %s937
    %939 = vst [vmem:[%s938] sm:$0xf] %v935
    %v940 = vadd.f32 %v923, %v933
    %s941 = smul.u32 %s885, 8
    %s942 = scalar_lea.vmem [#allocation2], %s941
    %v943 = vld [vmem:[%s942] sm:$0xff]
    %v944 = vmul.f32 %v928, 0.75
    %v945 = vadd.f32 %v944, %v943
    %v946 = vmul.f32 %v934, 0.96875
    %v947 = vadd.f32 %v946, %v945
    %vm948 = vcmp.ge.f32.partialorder %v947, 5120.0
    %v949 = vsel %vm948, 1, 0
    %v950 = vcvt.s32.f32 %v949
    %v951 = vsel %vm948, 0.0, %v947
    %v952 = vpack.c.bf16 %v950, %v950
    %s953 = sadd.s32 %s830, 10
    %s954 = smul.addr %s953, 4
    %s955 = scalar_lea.vmem [#allocation4], %s954
    %956 = vst [vmem:[%s955] sm:$0xf] %v952
    %v957 = vadd.f32 %v940, %v950
    %s958 = smul.u32 %s902, 8
    %s959 = scalar_lea.vmem [#allocation2], %s958
    %v960 = vld [vmem:[%s959] sm:$0xff]
    %v961 = vmul.f32 %v945, 0.75
    %v962 = vadd.f32 %v961, %v960
    %v963 = vmul.f32 %v951, 0.96875
    %v964 = vadd.f32 %v963, %v962
    %vm965 = vcmp.ge.f32.partialorder %v964, 5120.0
    %v966 = vsel %vm965, 1, 0
    %v967 = vcvt.s32.f32 %v966
    %v968 = vsel %vm965, 0.0, %v964
  $region41: #{network_forward.1} parent=0 // loop_footer
    %s825 = sadd.s32 1, %s821
  $region42: #{network_forward.1} parent=0 // loop_footer_branch
    %820 = sbr.rel target = $region38
  $region43: #{network_forward.1} parent=0 // loop_exit
    _
  %969 = vst [vmem:[%s814] sm:$0xff] %v826
  %970 = vst [vmem:[%s816] sm:$0xff] %v827
  %971 = vst [vmem:[%s818] sm:$0xff] %v828
  %s972 = scalar_lea.vmem %s7, 8
  %v973 = vld [vmem:[%s972] sm:$0xff]
  %v974 = vadd.f32 %v973, %v829
  %975 = vst [vmem:[%s972] sm:$0xff] %v974
  %s976 = scalar_lea.vmem [#allocation4], 12
  %v977 = vld [vmem:[%s976] sm:$0xf]
  %v978 = vld [vmem:[%s976 + $0x4] sm:$0xf]
  %v979 = vld [vmem:[%s976 + $0x8] sm:$0xf]
  %v980 = vld [vmem:[%s976 + $0xc] sm:$0xf]
  %v981 = vld [vmem:[%s976 + $0x10] sm:$0xf]
  %v982 = vld [vmem:[%s976 + $0x14] sm:$0xf]
  %v983 = vld [vmem:[%s976 + $0x18] sm:$0xf]
  %v984 = vld [vmem:[%s976 + $0x1c] sm:$0xf]
  %v985 = vld [vmem:[%s976 + $0x20] sm:$0xf]
  %v986 = vld [vmem:[%s976 + $0x24] sm:$0xf]
  %v987 = vld [vmem:[%s976 + $0x28] sm:$0xf]
  %v988 = vld [vmem:[%s976 + $0x2c] sm:$0xf]
  %v989 = vld [vmem:[%s976 + $0x30] sm:$0xf]
  %v990 = vld [vmem:[%s976 + $0x34] sm:$0xf]
  %v991 = vld [vmem:[%s976 + $0x38] sm:$0xf]
  %v992 = vld [vmem:[%s976 + $0x3c] sm:$0xf]
  %s993 = scalar_lea.vmem [#allocation4], 8
  %v994 = vld [vmem:[%s993] sm:$0xf]
  %v995 = vld [vmem:[%s993 + $0x4] sm:$0xf]
  %v996 = vld [vmem:[%s993 + $0x8] sm:$0xf]
  %v997 = vld [vmem:[%s993 + $0xc] sm:$0xf]
  %v998 = vld [vmem:[%s993 + $0x10] sm:$0xf]
  %v999 = vld [vmem:[%s993 + $0x14] sm:$0xf]
  %v1000 = vld [vmem:[%s993 + $0x18] sm:$0xf]
  %v1001 = vld [vmem:[%s993 + $0x1c] sm:$0xf]
  %v1002 = vld [vmem:[%s993 + $0x20] sm:$0xf]
  %v1003 = vld [vmem:[%s993 + $0x24] sm:$0xf]
  %v1004 = vld [vmem:[%s993 + $0x28] sm:$0xf]
  %v1005 = vld [vmem:[%s993 + $0x2c] sm:$0xf]
  %v1006 = vld [vmem:[%s993 + $0x30] sm:$0xf]
  %v1007 = vld [vmem:[%s993 + $0x34] sm:$0xf]
  %v1008 = vld [vmem:[%s993 + $0x38] sm:$0xf]
  %v1009 = vld [vmem:[%s993 + $0x3c] sm:$0xf]
  %v1010 = vld [vmem:[%s5] sm:$0x1]
  %vm1011 = vcmp.eq.s32.totalorder %v1010, 1
  %v1012 = vsel %vm1011, 1, 0
  %v1013 = vlaneseq
  %v1014 = vshrl.u32 %v1013, 7
  %v1015 = vsub.s32 0, %v1014
  %v1016 = vrot.slane %v1012, %v1015
  %vm1017 = vcmp.eq.s32.totalorder %v1016, 1
  %vm1018 = vmpackc.low %vm1017, %vm1017
  %v1019 = vsel %vm1018, %v994, %v977
  %v1020 = vsel %vm1018, %v995, %v978
  %v1021 = vsel %vm1018, %v996, %v979
  %v1022 = vsel %vm1018, %v997, %v980
  %v1023 = vsel %vm1018, %v998, %v981
  %v1024 = vsel %vm1018, %v999, %v982
  %v1025 = vsel %vm1018, %v1000, %v983
  %v1026 = vsel %vm1018, %v1001, %v984
  %v1027 = vsel %vm1018, %v1002, %v985
  %v1028 = vsel %vm1018, %v1003, %v986
  %v1029 = vsel %vm1018, %v1004, %v987
  %v1030 = vsel %vm1018, %v1005, %v988
  %v1031 = vsel %vm1018, %v1006, %v989
  %v1032 = vsel %vm1018, %v1007, %v990
  %v1033 = vsel %vm1018, %v1008, %v991
  %v1034 = vsel %vm1018, %v1009, %v992
  %s1035 = scalar_lea.vmem [#allocation4], 4
  %v1036 = vld [vmem:[%s1035] sm:$0xf]
  %v1037 = vld [vmem:[%s1035 + $0x4] sm:$0xf]
  %v1038 = vld [vmem:[%s1035 + $0x8] sm:$0xf]
  %v1039 = vld [vmem:[%s1035 + $0xc] sm:$0xf]
  %v1040 = vld [vmem:[%s1035 + $0x10] sm:$0xf]
  %v1041 = vld [vmem:[%s1035 + $0x14] sm:$0xf]
  %v1042 = vld [vmem:[%s1035 + $0x18] sm:$0xf]
  %v1043 = vld [vmem:[%s1035 + $0x1c] sm:$0xf]
  %v1044 = vld [vmem:[%s1035 + $0x20] sm:$0xf]
  %v1045 = vld [vmem:[%s1035 + $0x24] sm:$0xf]
  %v1046 = vld [vmem:[%s1035 + $0x28] sm:$0xf]
  %v1047 = vld [vmem:[%s1035 + $0x2c] sm:$0xf]
  %v1048 = vld [vmem:[%s1035 + $0x30] sm:$0xf]
  %v1049 = vld [vmem:[%s1035 + $0x34] sm:$0xf]
  %v1050 = vld [vmem:[%s1035 + $0x38] sm:$0xf]
  %v1051 = vld [vmem:[%s1035 + $0x3c] sm:$0xf]
  %vm1052 = vcmp.eq.s32.totalorder %v1010, 2
  %v1053 = vsel %vm1052, 1, 0
  %v1054 = vlaneseq
  %v1055 = vshrl.u32 %v1054, 7
  %v1056 = vsub.s32 0, %v1055
  %v1057 = vrot.slane %v1053, %v1056
  %vm1058 = vcmp.eq.s32.totalorder %v1057, 1
  %vm1059 = vmpackc.low %vm1058, %vm1058
  %v1060 = vsel %vm1059, %v1036, %v1019
  %v1061 = vsel %vm1059, %v1037, %v1020
  %v1062 = vsel %vm1059, %v1038, %v1021
  %v1063 = vsel %vm1059, %v1039, %v1022
  %v1064 = vsel %vm1059, %v1040, %v1023
  %v1065 = vsel %vm1059, %v1041, %v1024
  %v1066 = vsel %vm1059, %v1042, %v1025
  %v1067 = vsel %vm1059, %v1043, %v1026
  %v1068 = vsel %vm1059, %v1044, %v1027
  %v1069 = vsel %vm1059, %v1045, %v1028
  %v1070 = vsel %vm1059, %v1046, %v1029
  %v1071 = vsel %vm1059, %v1047, %v1030
  %v1072 = vsel %vm1059, %v1048, %v1031
  %v1073 = vsel %vm1059, %v1049, %v1032
  %v1074 = vsel %vm1059, %v1050, %v1033
  %v1075 = vsel %vm1059, %v1051, %v1034
  %v1076 = vld [vmem:[#allocation4] sm:$0xf]
  %v1077 = vld [vmem:[#allocation4 + $0x4] sm:$0xf]
  %v1078 = vld [vmem:[#allocation4 + $0x8] sm:$0xf]
  %v1079 = vld [vmem:[#allocation4 + $0xc] sm:$0xf]
  %v1080 = vld [vmem:[#allocation4 + $0x10] sm:$0xf]
  %v1081 = vld [vmem:[#allocation4 + $0x14] sm:$0xf]
  %v1082 = vld [vmem:[#allocation4 + $0x18] sm:$0xf]
  %v1083 = vld [vmem:[#allocation4 + $0x1c] sm:$0xf]
  %v1084 = vld [vmem:[#allocation4 + $0x20] sm:$0xf]
  %v1085 = vld [vmem:[#allocation4 + $0x24] sm:$0xf]
  %v1086 = vld [vmem:[#allocation4 + $0x28] sm:$0xf]
  %v1087 = vld [vmem:[#allocation4 + $0x2c] sm:$0xf]
  %v1088 = vld [vmem:[#allocation4 + $0x30] sm:$0xf]
  %v1089 = vld [vmem:[#allocation4 + $0x34] sm:$0xf]
  %v1090 = vld [vmem:[#allocation4 + $0x38] sm:$0xf]
  %v1091 = vld [vmem:[#allocation4 + $0x3c] sm:$0xf]
  %vm1092 = vcmp.eq.s32.totalorder %v1010, 3
  %v1093 = vsel %vm1092, 1, 0
  %v1094 = vlaneseq
  %v1095 = vshrl.u32 %v1094, 7
  %v1096 = vsub.s32 0, %v1095
  %v1097 = vrot.slane %v1093, %v1096
  %vm1098 = vcmp.eq.s32.totalorder %v1097, 1
  %vm1099 = vmpackc.low %vm1098, %vm1098
  %v1100 = vsel %vm1099, %v1076, %v1060
  %v1101 = vsel %vm1099, %v1077, %v1061
  %v1102 = vsel %vm1099, %v1078, %v1062
  %v1103 = vsel %vm1099, %v1079, %v1063
  %v1104 = vsel %vm1099, %v1080, %v1064
  %v1105 = vsel %vm1099, %v1081, %v1065
  %v1106 = vsel %vm1099, %v1082, %v1066
  %v1107 = vsel %vm1099, %v1083, %v1067
  %v1108 = vsel %vm1099, %v1084, %v1068
  %v1109 = vsel %vm1099, %v1085, %v1069
  %v1110 = vsel %vm1099, %v1086, %v1070
  %v1111 = vsel %vm1099, %v1087, %v1071
  %v1112 = vsel %vm1099, %v1088, %v1072
  %v1113 = vsel %vm1099, %v1089, %v1073
  %v1114 = vsel %vm1099, %v1090, %v1074
  %v1115 = vsel %vm1099, %v1091, %v1075
  %v1116 = vld [vmem:[%s3] sm:$0xf]
  %v1117 = vld [vmem:[%s3 + $0x4] sm:$0xf]
  %v1118 = vld [vmem:[%s3 + $0x8] sm:$0xf]
  %v1119 = vld [vmem:[%s3 + $0xc] sm:$0xf]
  %v1120 = vld [vmem:[%s3 + $0x10] sm:$0xf]
  %v1121 = vld [vmem:[%s3 + $0x14] sm:$0xf]
  %v1122 = vld [vmem:[%s3 + $0x18] sm:$0xf]
  %v1123 = vld [vmem:[%s3 + $0x1c] sm:$0xf]
  %v1124 = vld [vmem:[%s3 + $0x20] sm:$0xf]
  %v1125 = vld [vmem:[%s3 + $0x24] sm:$0xf]
  %v1126 = vld [vmem:[%s3 + $0x28] sm:$0xf]
  %v1127 = vld [vmem:[%s3 + $0x2c] sm:$0xf]
  %v1128 = vld [vmem:[%s3 + $0x30] sm:$0xf]
  %v1129 = vld [vmem:[%s3 + $0x34] sm:$0xf]
  %v1130 = vld [vmem:[%s3 + $0x38] sm:$0xf]
  %v1131 = vld [vmem:[%s3 + $0x3c] sm:$0xf]
  %v1148 = vunpack.c.l.b16 %v1100
  %v1149 = vunpack.c.l.b16 %v1101
  %v1150 = vunpack.c.l.b16 %v1102
  %v1151 = vunpack.c.l.b16 %v1103
  %v1152 = vunpack.c.l.b16 %v1104
  %v1153 = vunpack.c.l.b16 %v1105
  %v1154 = vunpack.c.l.b16 %v1106
  %v1155 = vunpack.c.l.b16 %v1107
  %v1156 = vunpack.c.l.b16 %v1108
  %v1157 = vunpack.c.l.b16 %v1109
  %v1158 = vunpack.c.l.b16 %v1110
  %v1159 = vunpack.c.l.b16 %v1111
  %v1160 = vunpack.c.l.b16 %v1112
  %v1161 = vunpack.c.l.b16 %v1113
  %v1162 = vunpack.c.l.b16 %v1114
  %v1163 = vunpack.c.l.b16 %v1115
  %v1164 = vpack.c.b16 %v1149, %v1148
  %v1165 = vpack.c.b16 %v1151, %v1150
  %v1166 = vpack.c.b16 %v1153, %v1152
  %v1167 = vpack.c.b16 %v1155, %v1154
  %v1168 = vpack.c.b16 %v1157, %v1156
  %v1169 = vpack.c.b16 %v1159, %v1158
  %v1170 = vpack.c.b16 %v1161, %v1160
  %v1171 = vpack.c.b16 %v1163, %v1162
  %v1196 = vunpack.c.l.b16 %v1116
  %v1197 = vunpack.c.l.b16 %v1117
  %v1198 = vunpack.c.l.b16 %v1118
  %v1199 = vunpack.c.l.b16 %v1119
  %v1200 = vunpack.c.l.b16 %v1120
  %v1201 = vunpack.c.l.b16 %v1121
  %v1202 = vunpack.c.l.b16 %v1122
  %v1203 = vunpack.c.l.b16 %v1123
  %v1204 = vunpack.c.l.b16 %v1124
  %v1205 = vunpack.c.l.b16 %v1125
  %v1206 = vunpack.c.l.b16 %v1126
  %v1207 = vunpack.c.l.b16 %v1127
  %v1208 = vunpack.c.l.b16 %v1128
  %v1209 = vunpack.c.l.b16 %v1129
  %v1210 = vunpack.c.l.b16 %v1130
  %v1211 = vunpack.c.l.b16 %v1131
  %v1212 = vpack.c.b16 %v1197, %v1196
  %v1213 = vpack.c.b16 %v1199, %v1198
  %v1214 = vpack.c.b16 %v1201, %v1200
  %v1215 = vpack.c.b16 %v1203, %v1202
  %v1216 = vpack.c.b16 %v1205, %v1204
  %v1217 = vpack.c.b16 %v1207, %v1206
  %v1218 = vpack.c.b16 %v1209, %v1208
  %v1219 = vpack.c.b16 %v1211, %v1210
  %1228 = vmatprep.subr.bf16.mxu0 0
  %1229 = vmatpush1.bf16.msra.mxu0 %v1212
  %1230 = vmatprep.subr.bf16.mxu0 0
  %1231 = vmatpush1.bf16.msra.mxu0 %v1213
  %1232 = vmatprep.subr.bf16.mxu0 0
  %1233 = vmatpush1.bf16.msra.mxu0 %v1214
  %1234 = vmatprep.subr.bf16.mxu0 0
  %1235 = vmatpush1.bf16.msra.mxu0 %v1215
  %1236 = vmatprep.subr.bf16.mxu0 0
  %1237 = vmatpush1.bf16.msra.mxu0 %v1216
  %1238 = vmatprep.subr.bf16.mxu0 0
  %1239 = vmatpush1.bf16.msra.mxu0 %v1217
  %1240 = vmatprep.subr.bf16.mxu0 0
  %1241 = vmatpush1.bf16.msra.mxu0 %v1218
  %1242 = vmatprep.subr.bf16.mxu0 0
  %1243 = vmatpush1.bf16.msra.mxu0 %v1219
  %1244 = vmatprep.subr.bf16.mxu0 0
  %1245 = vmatpush1.bf16.msra.mxu0 0
  %1246 = vmatprep.subr.bf16.mxu0 0
  %1247 = vmatpush1.bf16.msra.mxu0 0
  %1248 = vmatprep.subr.bf16.mxu0 0
  %1249 = vmatpush1.bf16.msra.mxu0 0
  %1250 = vmatprep.subr.bf16.mxu0 0
  %1251 = vmatpush1.bf16.msra.mxu0 0
  %1252 = vmatprep.subr.bf16.mxu0 0
  %1253 = vmatpush1.bf16.msra.mxu0 0
  %1254 = vmatprep.subr.bf16.mxu0 0
  %1255 = vmatpush1.bf16.msra.mxu0 0
  %1256 = vmatprep.subr.bf16.mxu0 0
  %1257 = vmatpush1.bf16.msra.mxu0 0
  %1258 = vmatprep.subr.bf16.mxu0 0
  %1259 = vmatpush1.bf16.msra.mxu0 0
  %1260 = vmatprep.mubr.bf16.mxu0 0
  %1261 = vmatmul.mubr.bf16.gmra.mrb[0].mxu0 %v1164
  %v1262 = vpop.f32.mrb[0].mxu0
  %v1263 = vadd.f32 0.0, %v1262
  %v1264 = vpop.f32.mrb[0].mxu0
  %v1265 = vpop.f32.mrb[0].mxu0
  %v1266 = vadd.f32 0.0, %v1265
  %v1267 = vpop.f32.mrb[0].mxu0
  %1268 = vmatprep.mubr.bf16.mxu0 0
  %1269 = vmatmul.mubr.bf16.gmra.mrb[0].mxu0 %v1165
  %v1270 = vpop.f32.mrb[0].mxu0
  %v1271 = vadd.f32 0.0, %v1270
  %v1272 = vpop.f32.mrb[0].mxu0
  %v1273 = vpop.f32.mrb[0].mxu0
  %v1274 = vadd.f32 0.0, %v1273
  %v1275 = vpop.f32.mrb[0].mxu0
  %1276 = vmatprep.mubr.bf16.mxu0 0
  %1277 = vmatmul.mubr.bf16.gmra.mrb[0].mxu0 %v1166
  %v1278 = vpop.f32.mrb[0].mxu0
  %v1279 = vadd.f32 0.0, %v1278
  %v1280 = vpop.f32.mrb[0].mxu0
  %v1281 = vpop.f32.mrb[0].mxu0
  %v1282 = vadd.f32 0.0, %v1281
  %v1283 = vpop.f32.mrb[0].mxu0
  %1284 = vmatprep.mubr.bf16.mxu0 0
  %1285 = vmatmul.mubr.bf16.gmra.mrb[0].mxu0 %v1167
  %v1286 = vpop.f32.mrb[0].mxu0
  %v1287 = vadd.f32 0.0, %v1286
  %v1288 = vpop.f32.mrb[0].mxu0
  %v1289 = vpop.f32.mrb[0].mxu0
  %v1290 = vadd.f32 0.0, %v1289
  %v1291 = vpop.f32.mrb[0].mxu0
  %1292 = vmatprep.mubr.bf16.mxu0 0
  %1293 = vmatmul.mubr.bf16.gmra.mrb[0].mxu0 %v1168
  %v1294 = vpop.f32.mrb[0].mxu0
  %v1295 = vadd.f32 0.0, %v1294
  %v1296 = vpop.f32.mrb[0].mxu0
  %v1297 = vpop.f32.mrb[0].mxu0
  %v1298 = vadd.f32 0.0, %v1297
  %v1299 = vpop.f32.mrb[0].mxu0
  %1300 = vmatprep.mubr.bf16.mxu0 0
  %1301 = vmatmul.mubr.bf16.gmra.mrb[0].mxu0 %v1169
  %v1302 = vpop.f32.mrb[0].mxu0
  %v1303 = vadd.f32 0.0, %v1302
  %v1304 = vpop.f32.mrb[0].mxu0
  %v1305 = vpop.f32.mrb[0].mxu0
  %v1306 = vadd.f32 0.0, %v1305
  %v1307 = vpop.f32.mrb[0].mxu0
  %1308 = vmatprep.mubr.bf16.mxu0 0
  %1309 = vmatmul.mubr.bf16.gmra.mrb[0].mxu0 %v1170
  %v1310 = vpop.f32.mrb[0].mxu0
  %v1311 = vadd.f32 0.0, %v1310
  %v1312 = vpop.f32.mrb[0].mxu0
  %v1313 = vpop.f32.mrb[0].mxu0
  %v1314 = vadd.f32 0.0, %v1313
  %v1315 = vpop.f32.mrb[0].mxu0
  %1316 = vmatprep.mubr.bf16.mxu0 0
  %1317 = vmatmul.mubr.bf16.gmra.mrb[0].mxu0 %v1171
  %v1318 = vpop.f32.mrb[0].mxu0
  %v1319 = vadd.f32 0.0, %v1318
  %v1320 = vpop.f32.mrb[0].mxu0
  %v1321 = vpop.f32.mrb[0].mxu0
  %v1322 = vadd.f32 0.0, %v1321
  %v1323 = vpop.f32.mrb[0].mxu0
  %1324 = vdwg.mxu0
  %1325 = vst [vmem:[#allocation2] sm:$0xff] %v1263
  %1326 = vst [vmem:[#allocation2 + $0x8] sm:$0xff] %v1266
  %1327 = vst [vmem:[#allocation2 + $0x10] sm:$0xff] %v1271
  %1328 = vst [vmem:[#allocation2 + $0x18] sm:$0xff] %v1274
  %1329 = vst [vmem:[#allocation2 + $0x20] sm:$0xff] %v1279
  %1330 = vst [vmem:[#allocation2 + $0x28] sm:$0xff] %v1282
  %1331 = vst [vmem:[#allocation2 + $0x30] sm:$0xff] %v1287
  %1332 = vst [vmem:[#allocation2 + $0x38] sm:$0xff] %v1290
  %1333 = vst [vmem:[#allocation2 + $0x40] sm:$0xff] %v1295
  %1334 = vst [vmem:[#allocation2 + $0x48] sm:$0xff] %v1298
  %1335 = vst [vmem:[#allocation2 + $0x50] sm:$0xff] %v1303
  %1336 = vst [vmem:[#allocation2 + $0x58] sm:$0xff] %v1306
  %1337 = vst [vmem:[#allocation2 + $0x60] sm:$0xff] %v1311
  %1338 = vst [vmem:[#allocation2 + $0x68] sm:$0xff] %v1314
  %1339 = vst [vmem:[#allocation2 + $0x70] sm:$0xff] %v1319
  %1340 = vst [vmem:[#allocation2 + $0x78] sm:$0xff] %v1322
  %s1341 = scalar_lea.vmem [#allocation5], 48
  %v1342 = vld [vmem:[%s1341] sm:$0xff]
  %s1343 = scalar_lea.vmem [#allocation5], 56
  %v1344 = vld [vmem:[%s1343] sm:$0xff]
  %s1345 = scalar_lea.vmem [#allocation5], 64
  %v1346 = vld [vmem:[%s1345] sm:$0xff]
  loop: start=0, step=1, limit=2
  $region44: #{network_forward.1} parent=0 // loop_pre_header
    _
  $region45: #{network_forward.1} parent=0 // loop_header
    %s1348 = sphi 0, %s1352
    %p1349 = scmp.ge.s32.totalorder %s1348, 2
    %v1353 = vphi %v1342, %v1486
    %v1354 = vphi %v1344, %v1492
    %v1355 = vphi %v1346, %v1491
    %v1356 = vphi 0.0, %v1481
  $region46: #{network_forward.1} parent=0 // loop_header_branch
    %1351 = sbr.rel (%p1349) target = $region50
  $region47: #{network_forward.1} parent=0 // loop_body
    %s1357 = smul.u32 %s1348, 8
    %v1358 = vpack.c.bf16 %v1355, %v1355
    %s1359 = smul.addr %s1357, 4
    %s1360 = scalar_lea.vmem %s6, %s1359
    %1361 = vst [vmem:[%s1360] sm:$0xf] %v1358
    %v1362 = vadd.f32 %v1356, %v1355
    %s1363 = smul.u32 %s1357, 8
    %s1364 = scalar_lea.vmem [#allocation2], %s1363
    %v1365 = vld [vmem:[%s1364] sm:$0xff]
    %v1366 = vmul.f32 %v1353, 0.75
    %v1367 = vadd.f32 %v1366, %v1365
    %v1368 = vmul.f32 %v1354, 0.96875
    %v1369 = vadd.f32 %v1368, %v1367
    %vm1370 = vcmp.ge.f32.partialorder %v1369, 5120.0
    %v1371 = vsel %vm1370, 1, 0
    %v1372 = vcvt.s32.f32 %v1371
    %v1373 = vsel %vm1370, 0.0, %v1369
    %s1374 = sadd.s32 %s1357, 1
    %v1375 = vpack.c.bf16 %v1372, %v1372
    %s1376 = smul.addr %s1374, 4
    %s1377 = scalar_lea.vmem %s6, %s1376
    %1378 = vst [vmem:[%s1377] sm:$0xf] %v1375
    %v1379 = vadd.f32 %v1362, %v1372
    %s1380 = smul.u32 %s1374, 8
    %s1381 = scalar_lea.vmem [#allocation2], %s1380
    %v1382 = vld [vmem:[%s1381] sm:$0xff]
    %v1383 = vmul.f32 %v1367, 0.75
    %v1384 = vadd.f32 %v1383, %v1382
    %v1385 = vmul.f32 %v1373, 0.96875
    %v1386 = vadd.f32 %v1385, %v1384
    %vm1387 = vcmp.ge.f32.partialorder %v1386, 5120.0
    %v1388 = vsel %vm1387, 1, 0
    %v1389 = vcvt.s32.f32 %v1388
    %v1390 = vsel %vm1387, 0.0, %v1386
    %s1391 = sadd.s32 %s1357, 2
    %v1392 = vpack.c.bf16 %v1389, %v1389
    %s1393 = smul.addr %s1391, 4
    %s1394 = scalar_lea.vmem %s6, %s1393
    %1395 = vst [vmem:[%s1394] sm:$0xf] %v1392
    %v1396 = vadd.f32 %v1379, %v1389
    %s1397 = smul.u32 %s1391, 8
    %s1398 = scalar_lea.vmem [#allocation2], %s1397
    %v1399 = vld [vmem:[%s1398] sm:$0xff]
    %v1400 = vmul.f32 %v1384, 0.75
    %v1401 = vadd.f32 %v1400, %v1399
    %v1402 = vmul.f32 %v1390, 0.96875
    %v1403 = vadd.f32 %v1402, %v1401
    %vm1404 = vcmp.ge.f32.partialorder %v1403, 5120.0
    %v1405 = vsel %vm1404, 1, 0
    %v1406 = vcvt.s32.f32 %v1405
    %v1407 = vsel %vm1404, 0.0, %v1403
    %s1408 = sadd.s32 %s1357, 3
    %v1409 = vpack.c.bf16 %v1406, %v1406
    %s1410 = smul.addr %s1408, 4
    %s1411 = scalar_lea.vmem %s6, %s1410
    %1412 = vst [vmem:[%s1411] sm:$0xf] %v1409
    %v1413 = vadd.f32 %v1396, %v1406
    %s1414 = smul.u32 %s1408, 8
    %s1415 = scalar_lea.vmem [#allocation2], %s1414
    %v1416 = vld [vmem:[%s1415] sm:$0xff]
    %v1417 = vmul.f32 %v1401, 0.75
    %v1418 = vadd.f32 %v1417, %v1416
    %v1419 = vmul.f32 %v1407, 0.96875
    %v1420 = vadd.f32 %v1419, %v1418
    %vm1421 = vcmp.ge.f32.partialorder %v1420, 5120.0
    %v1422 = vsel %vm1421, 1, 0
    %v1423 = vcvt.s32.f32 %v1422
    %v1424 = vsel %vm1421, 0.0, %v1420
    %s1425 = sadd.s32 %s1357, 4
    %v1426 = vpack.c.bf16 %v1423, %v1423
    %s1427 = smul.addr %s1425, 4
    %s1428 = scalar_lea.vmem %s6, %s1427
    %1429 = vst [vmem:[%s1428] sm:$0xf] %v1426
    %v1430 = vadd.f32 %v1413, %v1423
    %s1431 = smul.u32 %s1425, 8
    %s1432 = scalar_lea.vmem [#allocation2], %s1431
    %v1433 = vld [vmem:[%s1432] sm:$0xff]
    %v1434 = vmul.f32 %v1418, 0.75
    %v1435 = vadd.f32 %v1434, %v1433
    %v1436 = vmul.f32 %v1424, 0.96875
    %v1437 = vadd.f32 %v1436, %v1435
    %vm1438 = vcmp.ge.f32.partialorder %v1437, 5120.0
    %v1439 = vsel %vm1438, 1, 0
    %v1440 = vcvt.s32.f32 %v1439
    %v1441 = vsel %vm1438, 0.0, %v1437
    %s1442 = sadd.s32 %s1357, 5
    %v1443 = vpack.c.bf16 %v1440, %v1440
    %s1444 = smul.addr %s1442, 4
    %s1445 = scalar_lea.vmem %s6, %s1444
    %1446 = vst [vmem:[%s1445] sm:$0xf] %v1443
    %v1447 = vadd.f32 %v1430, %v1440
    %s1448 = smul.u32 %s1442, 8
    %s1449 = scalar_lea.vmem [#allocation2], %s1448
    %v1450 = vld [vmem:[%s1449] sm:$0xff]
    %v1451 = vmul.f32 %v1435, 0.75
    %v1452 = vadd.f32 %v1451, %v1450
    %v1453 = vmul.f32 %v1441, 0.96875
    %v1454 = vadd.f32 %v1453, %v1452
    %vm1455 = vcmp.ge.f32.partialorder %v1454, 5120.0
    %v1456 = vsel %vm1455, 1, 0
    %v1457 = vcvt.s32.f32 %v1456
    %v1458 = vsel %vm1455, 0.0, %v1454
    %s1459 = sadd.s32 %s1357, 6
    %v1460 = vpack.c.bf16 %v1457, %v1457
    %s1461 = smul.addr %s1459, 4
    %s1462 = scalar_lea.vmem %s6, %s1461
    %1463 = vst [vmem:[%s1462] sm:$0xf] %v1460
    %v1464 = vadd.f32 %v1447, %v1457
    %s1465 = smul.u32 %s1459, 8
    %s1466 = scalar_lea.vmem [#allocation2], %s1465
    %v1467 = vld [vmem:[%s1466] sm:$0xff]
    %v1468 = vmul.f32 %v1452, 0.75
    %v1469 = vadd.f32 %v1468, %v1467
    %v1470 = vmul.f32 %v1458, 0.96875
    %v1471 = vadd.f32 %v1470, %v1469
    %vm1472 = vcmp.ge.f32.partialorder %v1471, 5120.0
    %v1473 = vsel %vm1472, 1, 0
    %v1474 = vcvt.s32.f32 %v1473
    %v1475 = vsel %vm1472, 0.0, %v1471
    %s1476 = sadd.s32 %s1357, 7
    %v1477 = vpack.c.bf16 %v1474, %v1474
    %s1478 = smul.addr %s1476, 4
    %s1479 = scalar_lea.vmem %s6, %s1478
    %1480 = vst [vmem:[%s1479] sm:$0xf] %v1477
    %v1481 = vadd.f32 %v1464, %v1474
    %s1482 = smul.u32 %s1476, 8
    %s1483 = scalar_lea.vmem [#allocation2], %s1482
    %v1484 = vld [vmem:[%s1483] sm:$0xff]
    %v1485 = vmul.f32 %v1469, 0.75
    %v1486 = vadd.f32 %v1485, %v1484
    %v1487 = vmul.f32 %v1475, 0.96875
    %v1488 = vadd.f32 %v1487, %v1486
    %vm1489 = vcmp.ge.f32.partialorder %v1488, 5120.0
    %v1490 = vsel %vm1489, 1, 0
    %v1491 = vcvt.s32.f32 %v1490
    %v1492 = vsel %vm1489, 0.0, %v1488
  $region48: #{network_forward.1} parent=0 // loop_footer
    %s1352 = sadd.s32 1, %s1348
  $region49: #{network_forward.1} parent=0 // loop_footer_branch
    %1347 = sbr.rel target = $region45
  $region50: #{network_forward.1} parent=0 // loop_exit
    _
  %1493 = vst [vmem:[%s1341] sm:$0xff] %v1353
  %1494 = vst [vmem:[%s1343] sm:$0xff] %v1354
  %1495 = vst [vmem:[%s1345] sm:$0xff] %v1355
  %s1496 = scalar_lea.vmem %s7, 16
  %v1497 = vld [vmem:[%s1496] sm:$0xff]
  %v1498 = vadd.f32 %v1497, %v1356
  %1499 = vst [vmem:[%s1496] sm:$0xff] %v1498
  %s1500 = sadd.s32 0, 1
  %p1501 = scmp.lt.s32.totalorder %s1500, 1
  // Predicated region
  $region51: #{network_forward.1} parent=0 // pred_check
    %p1502 = pneg %p1501
  $region52: #{network_forward.1} parent=0 // pred_check_branch
    %1504 = sbr.rel (%p1502) target = $region54
  $region53: #{network_forward.1} parent=0 // pred_region
    %s1505 = scalar_lea.vmem [#allocation3], 64
    %v1506 = vld [vmem:[%s1505] sm:$0xf]
    %v1507 = vld [vmem:[%s1505 + $0x4] sm:$0xf]
    %v1508 = vld [vmem:[%s1505 + $0x8] sm:$0xf]
    %1509 = vst [vmem:[#allocation3] sm:$0xf] %v1506
    %1510 = vst [vmem:[#allocation3 + $0x4] sm:$0xf] %v1507
    %1511 = vst [vmem:[#allocation3 + $0x8] sm:$0xf] %v1508
    %s1512 = scalar_lea.vmem [#allocation4], 64
    %v1513 = vld [vmem:[%s1512] sm:$0xf]
    %v1514 = vld [vmem:[%s1512 + $0x4] sm:$0xf]
    %v1515 = vld [vmem:[%s1512 + $0x8] sm:$0xf]
    %1516 = vst [vmem:[#allocation4] sm:$0xf] %v1513
    %1517 = vst [vmem:[#allocation4 + $0x4] sm:$0xf] %v1514
    %1518 = vst [vmem:[#allocation4 + $0x8] sm:$0xf] %v1515
  $region54: #{network_forward.1} parent=0 // pred_fallthru
    _
  // Predicated region
  $region55: #{network_forward.1} parent=0 // pred_check
    _
  $region56: #{network_forward.1} parent=0 // pred_check_branch
    %1520 = sbr.rel (0) target = $region58
  $region57: #{network_forward.1} parent=0 // pred_region
    _
  $region58: #{network_forward.1} parent=0 // pred_fallthru
    _
  // Predicated region
  $region59: #{network_forward.1} parent=0 // pred_check
    _
  $region60: #{network_forward.1} parent=0 // pred_check_branch
    %1522 = sbr.rel (0) target = $region62
  $region61: #{network_forward.1} parent=0 // pred_region
    _
  $region62: #{network_forward.1} parent=0 // pred_fallthru
    _
  // Predicated region
  $region63: #{network_forward.1} parent=0 // pred_check
    _
  $region64: #{network_forward.1} parent=0 // pred_check_branch
    %1524 = sbr.rel (0) target = $region66
  $region65: #{network_forward.1} parent=0 // pred_region
    _
  $region66: #{network_forward.1} parent=0 // pred_fallthru
    _
  // Predicated region
  $region67: #{network_forward.1} parent=0 // pred_check
    _
  $region68: #{network_forward.1} parent=0 // pred_check_branch
    %1526 = sbr.rel (0) target = $region70
  $region69: #{network_forward.1} parent=0 // pred_region
    _
  $region70: #{network_forward.1} parent=0 // pred_fallthru
    _

</llo_original>
